<compile_context>
chip_gen: v5e
topology: v5e:2x2
jax: 0.10.0
libtpu: 0.0.40
codegen_flags: <defaults>
</compile_context>

<pallas_src>
import functools

import jax
import jax.numpy as jnp
from jax.experimental import pallas as pl
from jax.experimental.pallas import tpu as pltpu

# hyper_parameters = [conv1_out, conv1_k, conv2_out, conv2_k, fc1_out, fc2_out]
HYPER_PARAMETERS = [6, 5, 16, 5, 120, 84]
NUM_CLASSES = 10
GRAYSCALE = False
IN_CHANNELS = 1 if GRAYSCALE else 3

LANE = 128


def _ceil_to(n, m):
    return ((n + m - 1) // m) * m


# ----------------------------------------------------------------------------
# Pallas kernels
# ----------------------------------------------------------------------------
def _conv_tanh_pool_kernel(x_ref, w_ref, b_ref, o_ref):
    """Fused conv-as-matmul + 2x2 max-pool + bias + tanh.

    x_ref: (4, tq, Kp) bf16  -- im2col rows for the four 2x2-pool taps
    w_ref: (Kp, Coutp) bf16,  b_ref: (1, Coutp) f32,  o_ref: (tq, Coutp) bf16
    """
    four, tq, kp = x_ref.shape
    # One long matmul for all four taps keeps the MXU pipeline full (the
    # (4, tq, Kp) VMEM tile is contiguous, so this reshape is free).
    x2d = x_ref[...].reshape(four * tq, kp)
    acc = jnp.dot(x2d, w_ref[...], preferred_element_type=jnp.float32)
    acc = acc.reshape(four, tq, acc.shape[-1])
    # Max BEFORE tanh (tanh is monotone), bias added once after the max:
    # 1/4 the EUP work and 1/4 the f32 bias broadcasts.
    pooled = jnp.maximum(jnp.maximum(acc[0], acc[1]),
                         jnp.maximum(acc[2], acc[3]))
    o_ref[...] = jnp.tanh(pooled + b_ref[...]).astype(o_ref.dtype)


def _classifier_kernel(x_ref, w1_ref, b1_ref, w2_ref, b2_ref, w3_ref, b3_ref,
                       logits_ref, probas_ref, *, num_classes):
    """Fused Linear->Tanh->Linear->Tanh->Linear->Softmax (widths padded to 128)."""
    h1 = jnp.tanh(
        jnp.dot(x_ref[...], w1_ref[...], preferred_element_type=jnp.float32)
        + b1_ref[...]).astype(jnp.bfloat16)
    h2 = jnp.tanh(
        jnp.dot(h1, w2_ref[...], preferred_element_type=jnp.float32)
        + b2_ref[...]).astype(jnp.bfloat16)
    logits = (jnp.dot(h2, w3_ref[...], preferred_element_type=jnp.float32)
              + b3_ref[...])
    logits_ref[...] = logits
    # Softmax over the valid class lanes only (padded lanes masked off).
    col = jax.lax.broadcasted_iota(jnp.int32, logits.shape, 1)
    masked = jnp.where(col < num_classes, logits, -1e30)
    m = jnp.max(masked, axis=-1, keepdims=True)
    e = jnp.exp(masked - m)
    denom = jnp.sum(e, axis=-1, keepdims=True)
    probas_ref[...] = e / denom          # exact reciprocal: cost is negligible


# ----------------------------------------------------------------------------
# XLA glue + pallas_call wrappers
# ----------------------------------------------------------------------------
def _im2col_pool_rows(x, k, pad, kp):
    """x: (N,H,W,C) -> (4, N*Ho*Wo, Kp) bf16 im2col rows grouped by pool parity.

    Row block p of the leading axis holds the conv-input patches of pool tap
    (ph, pw) = (p // 2, p % 2); maxing over that axis implements MaxPool2d(2).
    Patch column order is (di, dj, c), matching w.transpose(2, 3, 1, 0).
    The Kp zero-pad and bf16 cast are folded into the concat (single HBM pass).
    """
    N, H, W, C = x.shape
    Ho, Wo = H // 2, W // 2
    K = k * k * C
    xp = jnp.pad(x, ((0, 0), (pad, pad), (pad, pad), (0, 0))).astype(jnp.bfloat16)
    cols = [xp[:, di:di + H, dj:dj + W, :] for di in range(k) for dj in range(k)]
    if kp > K:
        cols.append(jnp.zeros((N, H, W, kp - K), jnp.bfloat16))
    patches = jnp.concatenate(cols, axis=-1)             # (N, H, W, Kp)
    patches = patches.reshape(N, Ho, 2, Wo, 2, kp)
    patches = patches.transpose(2, 4, 0, 1, 3, 5)        # (2, 2, N, Ho, Wo, Kp)
    return patches.reshape(4, N * Ho * Wo, kp)


def _pick_row_tile(q, target=1024, align=16):
    """Largest row tile <= target, aligned to 16, with >=2 grid steps when
    there is enough work (so v7x's second TensorCore isn't idle)."""
    half = _ceil_to(max((q + 1) // 2, align), align)
    return max(align, min(target, half))


def conv_tanh_pool(x_nhwc, w_mat, b_row, *, cin, k):
    """Conv2d(stride=1, padding=(k-1)//2) + Tanh + MaxPool2d(2).

    x_nhwc: (N, H, W, Cany) (only the first `cin` channels are valid)
    w_mat:  (Kp, Coutp) bf16 pre-packed,  b_row: (1, Coutp) f32 pre-packed.
    Returns (N, H//2, W//2, Coutp) bf16.
    """
    N, H, W, _ = x_nhwc.shape
    pad = (k - 1) // 2
    Ho, Wo = H // 2, W // 2
    Q = N * Ho * Wo
    Kp, Coutp = w_mat.shape

    rows = _im2col_pool_rows(x_nhwc[..., :cin], k, pad, Kp)   # (4, Q, Kp) bf16

    tq = _pick_row_tile(Q)
    Qp = _ceil_to(Q, tq)
    if Qp != Q:
        rows = jnp.pad(rows, ((0, 0), (0, Qp - Q), (0, 0)))

    out = pl.pallas_call(
        _conv_tanh_pool_kernel,
        out_shape=jax.ShapeDtypeStruct((Qp, Coutp), jnp.bfloat16),
        grid=(Qp // tq,),
        in_specs=[
            pl.BlockSpec((4, tq, Kp), lambda i: (0, i, 0)),    # im2col rows (tiled)
            pl.BlockSpec((Kp, Coutp), lambda i: (0, 0)),       # weights (resident)
            pl.BlockSpec((1, Coutp), lambda i: (0, 0)),        # bias (resident)
        ],
        out_specs=pl.BlockSpec((tq, Coutp), lambda i: (i, 0)), # lane-dense output
        compiler_params=pltpu.CompilerParams(
            dimension_semantics=("parallel",),
            vmem_limit_bytes=32 * 1024 * 1024,
        ),
    )(rows, w_mat, b_row)
    if Qp != Q:
        out = out[:Q]
    return out.reshape(N, Ho, Wo, Coutp)


def classifier(pooled, packed_fc, *, valid_channels, num_classes):
    """Fused Linear->Tanh->Linear->Tanh->Linear->Softmax on the pooled features.

    pooled: (N, Hf, Wf, Cp) bf16 NHWC; only the first `valid_channels` are used
    (fc1 contracts over Hf*Wf*valid_channels = 1024, no padded-zero lanes).
    Returns (logits, probas), each (N, num_classes) f32.
    """
    N, Hf, Wf, _ = pooled.shape
    w1p, b1p, w2p, b2p, w3p, b3p = packed_fc
    in_dim = w1p.shape[0]
    h1p, h2p, nclsp = w1p.shape[1], w2p.shape[1], w3p.shape[1]

    x_flat = pooled[..., :valid_channels].reshape(N, in_dim).astype(jnp.bfloat16)

    # Batch grid (parallel) so v7x's two TCs split rows; weights stay resident.
    Np = _ceil_to(N, 16)
    if Np != N:
        x_flat = jnp.pad(x_flat, ((0, Np - N), (0, 0)))
    tb = min(128, max(16, _ceil_to(Np // 2, 16)))
    while Np % tb:
        tb -= 16

    logits_p, probas_p = pl.pallas_call(
        functools.partial(_classifier_kernel, num_classes=num_classes),
        out_shape=(jax.ShapeDtypeStruct((Np, nclsp), jnp.float32),
                   jax.ShapeDtypeStruct((Np, nclsp), jnp.float32)),
        grid=(Np // tb,),
        in_specs=[
            pl.BlockSpec((tb, in_dim), lambda i: (i, 0)),      # activations (tiled)
            pl.BlockSpec((in_dim, h1p), lambda i: (0, 0)),     # fc1 w (resident)
            pl.BlockSpec((1, h1p), lambda i: (0, 0)),
            pl.BlockSpec((h1p, h2p), lambda i: (0, 0)),        # fc2 w (resident)
            pl.BlockSpec((1, h2p), lambda i: (0, 0)),
            pl.BlockSpec((h2p, nclsp), lambda i: (0, 0)),      # fc3 w (resident)
            pl.BlockSpec((1, nclsp), lambda i: (0, 0)),
        ],
        out_specs=(pl.BlockSpec((tb, nclsp), lambda i: (i, 0)),
                   pl.BlockSpec((tb, nclsp), lambda i: (i, 0))),
        compiler_params=pltpu.CompilerParams(
            dimension_semantics=("parallel",),
            vmem_limit_bytes=32 * 1024 * 1024,
        ),
    )(x_flat, w1p, b1p, w2p, b2p, w3p, b3p)
    return logits_p[:N, :num_classes], probas_p[:N, :num_classes]


# ----------------------------------------------------------------------------
# Parameter init + one-time packing (hoisted out of the jitted forward)
# ----------------------------------------------------------------------------
def init_params(key):
    hp = HYPER_PARAMETERS
    keys = jax.random.split(key, 10)

    def w(k, shape, scale=0.05):
        return (scale * jax.random.normal(k, shape)).astype(jnp.float32)

    return {
        "conv1": (w(keys[0], (hp[0], IN_CHANNELS, hp[1], hp[1])), w(keys[1], (hp[0],))),
        "conv2": (w(keys[2], (hp[2], hp[0], hp[3], hp[3])), w(keys[3], (hp[2],))),
        "fcs": ((w(keys[4], (hp[4], hp[2] * 8 * 8)), w(keys[5], (hp[4],))),
                (w(keys[6], (hp[5], hp[4])), w(keys[7], (hp[5],))),
                (w(keys[8], (NUM_CLASSES, hp[5])), w(keys[9], (NUM_CLASSES,)))),
    }


def pack_params(params):
    """One-time transpose/pad/cast of all weights into kernel-ready layouts."""
    hp = HYPER_PARAMETERS

    def pack_conv(w, b):
        Cout, Cin, k, _ = w.shape
        K = k * k * Cin
        Kp = _ceil_to(K, LANE)
        Coutp = _ceil_to(Cout, LANE)
        w_mat = w.transpose(2, 3, 1, 0).reshape(K, Cout)       # (di, dj, c) x Cout
        w_mat = jnp.pad(w_mat, ((0, Kp - K), (0, Coutp - Cout))).astype(jnp.bfloat16)
        b_row = jnp.pad(b, (0, Coutp - Cout)).reshape(1, Coutp).astype(jnp.float32)
        return w_mat, b_row

    (w1, b1), (w2, b2), (w3, b3) = params["fcs"]
    Hf = Wf = 8
    C = hp[2]                                                  # 16 valid channels
    h1_dim = w1.shape[0]
    h2_dim = w2.shape[0]
    ncls = w3.shape[0]
    h1p = _ceil_to(h1_dim, LANE)
    h2p = _ceil_to(h2_dim, LANE)
    nclsp = _ceil_to(ncls, LANE)

    # Permute fc1 columns once so it consumes the NHWC (h, w, c) flatten of the
    # VALID channels (PyTorch flattens NCHW as (c, h, w)). K = Hf*Wf*C = 1024.
    w1t = w1.T.reshape(C, Hf, Wf, h1_dim).transpose(1, 2, 0, 3)  # (Hf, Wf, C, h1)
    w1p = w1t.reshape(Hf * Wf * C, h1_dim)
    w1p = jnp.pad(w1p, ((0, 0), (0, h1p - h1_dim))).astype(jnp.bfloat16)
    b1p = jnp.pad(b1, (0, h1p - h1_dim)).reshape(1, h1p).astype(jnp.float32)
    w2p = jnp.pad(w2.T, ((0, h1p - h1_dim), (0, h2p - h2_dim))).astype(jnp.bfloat16)
    b2p = jnp.pad(b2, (0, h2p - h2_dim)).reshape(1, h2p).astype(jnp.float32)
    w3p = jnp.pad(w3.T, ((0, h2p - h2_dim), (0, nclsp - ncls))).astype(jnp.bfloat16)
    b3p = jnp.pad(b3, (0, nclsp - ncls)).reshape(1, nclsp).astype(jnp.float32)

    return {
        "conv1": pack_conv(*params["conv1"]),
        "conv2": pack_conv(*params["conv2"]),
        "fc": (w1p, b1p, w2p, b2p, w3p, b3p),
    }


# ----------------------------------------------------------------------------
# Model forward
# ----------------------------------------------------------------------------
@jax.jit
def lenet5_forward(packed, x):
    hp = HYPER_PARAMETERS
    # One tiny NCHW -> NHWC transpose at the input; NHWC end-to-end afterwards.
    x = jnp.transpose(x, (0, 2, 3, 1))                      # (N, 32, 32, Cin)
    y = conv_tanh_pool(x, *packed["conv1"], cin=IN_CHANNELS, k=hp[1])   # (N,16,16,128)
    y = conv_tanh_pool(y, *packed["conv2"], cin=hp[0], k=hp[3])         # (N, 8, 8,128)
    logits, probas = classifier(y, packed["fc"],
                                valid_channels=hp[2], num_classes=NUM_CLASSES)
    return logits, probas


if __name__ == "__main__":
    key = jax.random.PRNGKey(0)
    pkey, xkey = jax.random.split(key)
    params = init_params(pkey)
    packed = pack_params(params)            # one-time weight packing, outside jit
    # Classifier expects hp[2]*8*8 features after two 2x2 pools -> 32x32 input.
    x = jax.random.normal(xkey, (2, IN_CHANNELS, 32, 32), dtype=jnp.float32)

    logits, probas = lenet5_forward(packed, x)
    jax.block_until_ready((logits, probas))

    assert logits.shape == (2, NUM_CLASSES)
    assert probas.shape == (2, NUM_CLASSES)
    assert bool(jnp.all(jnp.isfinite(logits)))
    # bf16 matmuls -> slightly looser tolerance on the softmax normalization.
    assert bool(jnp.allclose(jnp.sum(probas, axis=1), 1.0, atol=2e-3))
    print("KERNEL_OK")
</pallas_src>

<mosaic_0001>
module attributes {stable_mosaic.version = 11 : i64} {
  func.func @_conv_tanh_pool_kernel(%arg0: i32, %arg1: memref<4x256x128xbf16, #tpu.memory_space<vmem>>, %arg2: memref<128x128xbf16, #tpu.memory_space<vmem>>, %arg3: memref<1x128xf32, #tpu.memory_space<vmem>>, %arg4: memref<256x128xbf16, #tpu.memory_space<vmem>>) attributes {dimension_semantics = [#tpu.dimension_semantics<parallel>], iteration_bounds = array<i64: 2>, scalar_prefetch = 0 : i64, scratch_operands = 0 : i64, tpu.core_type = #tpu.core_type<tc>, window_params = [{transform_indices = @transform_0, window_bounds = array<i64: 4, 256, 128>}, {pipeline_mode = #tpu.pipeline_mode<synchronous>, transform_indices = @transform_1, window_bounds = array<i64: 128, 128>}, {pipeline_mode = #tpu.pipeline_mode<synchronous>, transform_indices = @transform_2, window_bounds = array<i64: 1, 128>}, {transform_indices = @transform_3, window_bounds = array<i64: 256, 128>}]} {
    %c0 = arith.constant 0 : index
    %c0_0 = arith.constant 0 : index
    %c0_1 = arith.constant 0 : index
    %0 = vector.load %arg1[%c0, %c0_0, %c0_1] : memref<4x256x128xbf16, #tpu.memory_space<vmem>>, vector<4x256x128xbf16>
    %1 = vector.shape_cast %0 : vector<4x256x128xbf16> to vector<1024x128xbf16>
    %c0_2 = arith.constant 0 : index
    %c0_3 = arith.constant 0 : index
    %2 = vector.load %arg2[%c0_2, %c0_3] : memref<128x128xbf16, #tpu.memory_space<vmem>>, vector<128x128xbf16>
    %cst = arith.constant dense<0.000000e+00> : vector<1024x128xf32>
    %3 = tpu.matmul %1, %2, %cst {dimension_numbers = #tpu.dot_dimension_numbers<[1], [0], [0], [1], [0, 0, 1, 1], [], []>} : vector<1024x128xbf16>, vector<128x128xbf16>, vector<1024x128xf32> -> vector<1024x128xf32>
    %4 = vector.shape_cast %3 : vector<1024x128xf32> to vector<4x256x128xf32>
    %5 = vector.extract_strided_slice %4 {offsets = [0, 0, 0], sizes = [1, 256, 128], strides = [1, 1, 1]} : vector<4x256x128xf32> to vector<1x256x128xf32>
    %6 = vector.shape_cast %5 : vector<1x256x128xf32> to vector<256x128xf32>
    %7 = vector.extract_strided_slice %4 {offsets = [1, 0, 0], sizes = [1, 256, 128], strides = [1, 1, 1]} : vector<4x256x128xf32> to vector<1x256x128xf32>
    %8 = vector.shape_cast %7 : vector<1x256x128xf32> to vector<256x128xf32>
    %9 = arith.maximumf %6, %8 : vector<256x128xf32>
    %10 = vector.extract_strided_slice %4 {offsets = [2, 0, 0], sizes = [1, 256, 128], strides = [1, 1, 1]} : vector<4x256x128xf32> to vector<1x256x128xf32>
    %11 = vector.shape_cast %10 : vector<1x256x128xf32> to vector<256x128xf32>
    %12 = vector.extract_strided_slice %4 {offsets = [3, 0, 0], sizes = [1, 256, 128], strides = [1, 1, 1]} : vector<4x256x128xf32> to vector<1x256x128xf32>
    %13 = vector.shape_cast %12 : vector<1x256x128xf32> to vector<256x128xf32>
    %14 = arith.maximumf %11, %13 : vector<256x128xf32>
    %15 = arith.maximumf %9, %14 : vector<256x128xf32>
    %c0_4 = arith.constant 0 : index
    %c0_5 = arith.constant 0 : index
    %16 = vector.load %arg3[%c0_4, %c0_5] : memref<1x128xf32, #tpu.memory_space<vmem>>, vector<1x128xf32>
    %17 = vector.broadcast %16 : vector<1x128xf32> to vector<256x128xf32>
    %18 = arith.addf %15, %17 : vector<256x128xf32>
    %19 = math.tanh %18 : vector<256x128xf32>
    %20 = arith.truncf %19 : vector<256x128xf32> to vector<256x128xbf16>
    %c0_6 = arith.constant 0 : index
    %c0_7 = arith.constant 0 : index
    %21 = vector.load %arg4[%c0_6, %c0_7] : memref<256x128xbf16, #tpu.memory_space<vmem>>, vector<256x128xbf16>
    tpu.vector_store %arg4[%c0_6, %c0_7], %20 {strides = array<i32>} : memref<256x128xbf16, #tpu.memory_space<vmem>>, vector<256x128xbf16>,
    return
  }
  func.func @transform_0(%arg0: i32) -> (i32, i32, i32) {
    %c0_i32 = arith.constant 0 : i32
    %c0_i32_0 = arith.constant 0 : i32
    %c0_i32_1 = arith.constant 0 : i32
    return %c0_i32, %arg0, %c0_i32_0 : i32, i32, i32
  }
  func.func @transform_1(%arg0: i32) -> (i32, i32) {
    %c0_i32 = arith.constant 0 : i32
    %c0_i32_0 = arith.constant 0 : i32
    %c0_i32_1 = arith.constant 0 : i32
    return %c0_i32, %c0_i32_0 : i32, i32
  }
  func.func @transform_2(%arg0: i32) -> (i32, i32) {
    %c0_i32 = arith.constant 0 : i32
    %c0_i32_0 = arith.constant 0 : i32
    %c0_i32_1 = arith.constant 0 : i32
    return %c0_i32, %c0_i32_0 : i32, i32
  }
  func.func @transform_3(%arg0: i32) -> (i32, i32) {
    %c0_i32 = arith.constant 0 : i32
    %c0_i32_0 = arith.constant 0 : i32
    return %arg0, %c0_i32 : i32, i32
  }
}

module attributes {stable_mosaic.version = 11 : i64} {
  func.func @_conv_tanh_pool_kernel(%arg0: i32, %arg1: memref<4x64x256xbf16, #tpu.memory_space<vmem>>, %arg2: memref<256x128xbf16, #tpu.memory_space<vmem>>, %arg3: memref<1x128xf32, #tpu.memory_space<vmem>>, %arg4: memref<64x128xbf16, #tpu.memory_space<vmem>>) attributes {dimension_semantics = [#tpu.dimension_semantics<parallel>], iteration_bounds = array<i64: 2>, scalar_prefetch = 0 : i64, scratch_operands = 0 : i64, tpu.core_type = #tpu.core_type<tc>, window_params = [{transform_indices = @transform_0, window_bounds = array<i64: 4, 64, 256>}, {pipeline_mode = #tpu.pipeline_mode<synchronous>, transform_indices = @transform_1, window_bounds = array<i64: 256, 128>}, {pipeline_mode = #tpu.pipeline_mode<synchronous>, transform_indices = @transform_2, window_bounds = array<i64: 1, 128>}, {transform_indices = @transform_3, window_bounds = array<i64: 64, 128>}]} {
    %c0 = arith.constant 0 : index
    %c0_0 = arith.constant 0 : index
    %c0_1 = arith.constant 0 : index
    %0 = vector.load %arg1[%c0, %c0_0, %c0_1] : memref<4x64x256xbf16, #tpu.memory_space<vmem>>, vector<4x64x256xbf16>
    %1 = vector.shape_cast %0 : vector<4x64x256xbf16> to vector<256x256xbf16>
    %c0_2 = arith.constant 0 : index
    %c0_3 = arith.constant 0 : index
    %2 = vector.load %arg2[%c0_2, %c0_3] : memref<256x128xbf16, #tpu.memory_space<vmem>>, vector<256x128xbf16>
    %cst = arith.constant dense<0.000000e+00> : vector<256x128xf32>
    %3 = tpu.matmul %1, %2, %cst {dimension_numbers = #tpu.dot_dimension_numbers<[1], [0], [0], [1], [0, 0, 1, 1], [], []>} : vector<256x256xbf16>, vector<256x128xbf16>, vector<256x128xf32> -> vector<256x128xf32>
    %4 = vector.shape_cast %3 : vector<256x128xf32> to vector<4x64x128xf32>
    %5 = vector.extract_strided_slice %4 {offsets = [0, 0, 0], sizes = [1, 64, 128], strides = [1, 1, 1]} : vector<4x64x128xf32> to vector<1x64x128xf32>
    %6 = vector.shape_cast %5 : vector<1x64x128xf32> to vector<64x128xf32>
    %7 = vector.extract_strided_slice %4 {offsets = [1, 0, 0], sizes = [1, 64, 128], strides = [1, 1, 1]} : vector<4x64x128xf32> to vector<1x64x128xf32>
    %8 = vector.shape_cast %7 : vector<1x64x128xf32> to vector<64x128xf32>
    %9 = arith.maximumf %6, %8 : vector<64x128xf32>
    %10 = vector.extract_strided_slice %4 {offsets = [2, 0, 0], sizes = [1, 64, 128], strides = [1, 1, 1]} : vector<4x64x128xf32> to vector<1x64x128xf32>
    %11 = vector.shape_cast %10 : vector<1x64x128xf32> to vector<64x128xf32>
    %12 = vector.extract_strided_slice %4 {offsets = [3, 0, 0], sizes = [1, 64, 128], strides = [1, 1, 1]} : vector<4x64x128xf32> to vector<1x64x128xf32>
    %13 = vector.shape_cast %12 : vector<1x64x128xf32> to vector<64x128xf32>
    %14 = arith.maximumf %11, %13 : vector<64x128xf32>
    %15 = arith.maximumf %9, %14 : vector<64x128xf32>
    %c0_4 = arith.constant 0 : index
    %c0_5 = arith.constant 0 : index
    %16 = vector.load %arg3[%c0_4, %c0_5] : memref<1x128xf32, #tpu.memory_space<vmem>>, vector<1x128xf32>
    %17 = vector.broadcast %16 : vector<1x128xf32> to vector<64x128xf32>
    %18 = arith.addf %15, %17 : vector<64x128xf32>
    %19 = math.tanh %18 : vector<64x128xf32>
    %20 = arith.truncf %19 : vector<64x128xf32> to vector<64x128xbf16>
    %c0_6 = arith.constant 0 : index
    %c0_7 = arith.constant 0 : index
    %21 = vector.load %arg4[%c0_6, %c0_7] : memref<64x128xbf16, #tpu.memory_space<vmem>>, vector<64x128xbf16>
    tpu.vector_store %arg4[%c0_6, %c0_7], %20 {strides = array<i32>} : memref<64x128xbf16, #tpu.memory_space<vmem>>, vector<64x128xbf16>,
    return
  }
  func.func @transform_0(%arg0: i32) -> (i32, i32, i32) {
    %c0_i32 = arith.constant 0 : i32
    %c0_i32_0 = arith.constant 0 : i32
    %c0_i32_1 = arith.constant 0 : i32
    return %c0_i32, %arg0, %c0_i32_0 : i32, i32, i32
  }
  func.func @transform_1(%arg0: i32) -> (i32, i32) {
    %c0_i32 = arith.constant 0 : i32
    %c0_i32_0 = arith.constant 0 : i32
    %c0_i32_1 = arith.constant 0 : i32
    return %c0_i32, %c0_i32_0 : i32, i32
  }
  func.func @transform_2(%arg0: i32) -> (i32, i32) {
    %c0_i32 = arith.constant 0 : i32
    %c0_i32_0 = arith.constant 0 : i32
    %c0_i32_1 = arith.constant 0 : i32
    return %c0_i32, %c0_i32_0 : i32, i32
  }
  func.func @transform_3(%arg0: i32) -> (i32, i32) {
    %c0_i32 = arith.constant 0 : i32
    %c0_i32_0 = arith.constant 0 : i32
    return %arg0, %c0_i32 : i32, i32
  }
}

module attributes {stable_mosaic.version = 11 : i64} {
  func.func @_classifier_kernel(%arg0: i32, %arg1: memref<16x1024xbf16, #tpu.memory_space<vmem>>, %arg2: memref<1024x128xbf16, #tpu.memory_space<vmem>>, %arg3: memref<1x128xf32, #tpu.memory_space<vmem>>, %arg4: memref<128x128xbf16, #tpu.memory_space<vmem>>, %arg5: memref<1x128xf32, #tpu.memory_space<vmem>>, %arg6: memref<128x128xbf16, #tpu.memory_space<vmem>>, %arg7: memref<1x128xf32, #tpu.memory_space<vmem>>, %arg8: memref<16x128xf32, #tpu.memory_space<vmem>>, %arg9: memref<16x128xf32, #tpu.memory_space<vmem>>) attributes {dimension_semantics = [#tpu.dimension_semantics<parallel>], iteration_bounds = array<i64: 1>, scalar_prefetch = 0 : i64, scratch_operands = 0 : i64, tpu.core_type = #tpu.core_type<tc>, window_params = [{transform_indices = @transform_0, window_bounds = array<i64: 16, 1024>}, {pipeline_mode = #tpu.pipeline_mode<synchronous>, transform_indices = @transform_1, window_bounds = array<i64: 1024, 128>}, {pipeline_mode = #tpu.pipeline_mode<synchronous>, transform_indices = @transform_2, window_bounds = array<i64: 1, 128>}, {pipeline_mode = #tpu.pipeline_mode<synchronous>, transform_indices = @transform_3, window_bounds = array<i64: 128, 128>}, {pipeline_mode = #tpu.pipeline_mode<synchronous>, transform_indices = @transform_4, window_bounds = array<i64: 1, 128>}, {pipeline_mode = #tpu.pipeline_mode<synchronous>, transform_indices = @transform_5, window_bounds = array<i64: 128, 128>}, {pipeline_mode = #tpu.pipeline_mode<synchronous>, transform_indices = @transform_6, window_bounds = array<i64: 1, 128>}, {transform_indices = @transform_7, window_bounds = array<i64: 16, 128>}, {transform_indices = @transform_8, window_bounds = array<i64: 16, 128>}]} {
    %c0 = arith.constant 0 : index
    %c0_0 = arith.constant 0 : index
    %0 = vector.load %arg1[%c0, %c0_0] : memref<16x1024xbf16, #tpu.memory_space<vmem>>, vector<16x1024xbf16>
    %c0_1 = arith.constant 0 : index
    %c0_2 = arith.constant 0 : index
    %1 = vector.load %arg2[%c0_1, %c0_2] : memref<1024x128xbf16, #tpu.memory_space<vmem>>, vector<1024x128xbf16>
    %cst = arith.constant dense<0.000000e+00> : vector<16x128xf32>
    %2 = tpu.matmul %0, %1, %cst {dimension_numbers = #tpu.dot_dimension_numbers<[1], [0], [0], [1], [0, 0, 1, 1], [], []>} : vector<16x1024xbf16>, vector<1024x128xbf16>, vector<16x128xf32> -> vector<16x128xf32>
    %c0_3 = arith.constant 0 : index
    %c0_4 = arith.constant 0 : index
    %3 = vector.load %arg3[%c0_3, %c0_4] : memref<1x128xf32, #tpu.memory_space<vmem>>, vector<1x128xf32>
    %4 = vector.broadcast %3 : vector<1x128xf32> to vector<16x128xf32>
    %5 = arith.addf %2, %4 : vector<16x128xf32>
    %6 = math.tanh %5 : vector<16x128xf32>
    %7 = arith.truncf %6 : vector<16x128xf32> to vector<16x128xbf16>
    %c0_5 = arith.constant 0 : index
    %c0_6 = arith.constant 0 : index
    %8 = vector.load %arg4[%c0_5, %c0_6] : memref<128x128xbf16, #tpu.memory_space<vmem>>, vector<128x128xbf16>
    %cst_7 = arith.constant dense<0.000000e+00> : vector<16x128xf32>
    %9 = tpu.matmul %7, %8, %cst_7 {dimension_numbers = #tpu.dot_dimension_numbers<[1], [0], [0], [1], [0, 0, 1, 1], [], []>} : vector<16x128xbf16>, vector<128x128xbf16>, vector<16x128xf32> -> vector<16x128xf32>
    %c0_8 = arith.constant 0 : index
    %c0_9 = arith.constant 0 : index
    %10 = vector.load %arg5[%c0_8, %c0_9] : memref<1x128xf32, #tpu.memory_space<vmem>>, vector<1x128xf32>
    %11 = vector.broadcast %10 : vector<1x128xf32> to vector<16x128xf32>
    %12 = arith.addf %9, %11 : vector<16x128xf32>
    %13 = math.tanh %12 : vector<16x128xf32>
    %14 = arith.truncf %13 : vector<16x128xf32> to vector<16x128xbf16>
    %c0_10 = arith.constant 0 : index
    %c0_11 = arith.constant 0 : index
    %15 = vector.load %arg6[%c0_10, %c0_11] : memref<128x128xbf16, #tpu.memory_space<vmem>>, vector<128x128xbf16>
    %cst_12 = arith.constant dense<0.000000e+00> : vector<16x128xf32>
    %16 = tpu.matmul %14, %15, %cst_12 {dimension_numbers = #tpu.dot_dimension_numbers<[1], [0], [0], [1], [0, 0, 1, 1], [], []>} : vector<16x128xbf16>, vector<128x128xbf16>, vector<16x128xf32> -> vector<16x128xf32>
    %c0_13 = arith.constant 0 : index
    %c0_14 = arith.constant 0 : index
    %17 = vector.load %arg7[%c0_13, %c0_14] : memref<1x128xf32, #tpu.memory_space<vmem>>, vector<1x128xf32>
    %18 = vector.broadcast %17 : vector<1x128xf32> to vector<16x128xf32>
    %19 = arith.addf %16, %18 : vector<16x128xf32>
    %c0_15 = arith.constant 0 : index
    %c0_16 = arith.constant 0 : index
    %20 = vector.load %arg8[%c0_15, %c0_16] : memref<16x128xf32, #tpu.memory_space<vmem>>, vector<16x128xf32>
    tpu.vector_store %arg8[%c0_15, %c0_16], %19 {strides = array<i32>} : memref<16x128xf32, #tpu.memory_space<vmem>>, vector<16x128xf32>,
    %21 = tpu.iota {dimensions = array<i32: 1>} : vector<16x128xi32>
    %c10_i32 = arith.constant 10 : i32
    %22 = vector.broadcast %c10_i32 : i32 to vector<16x128xi32>
    %23 = arith.cmpi slt, %21, %22 : vector<16x128xi32>
    %cst_17 = arith.constant -1.000000e+30 : f32
    %24 = vector.broadcast %cst_17 : f32 to vector<16x128xf32>
    %25 = arith.select %23, %19, %24 : vector<16x128xi1>, vector<16x128xf32>
    %cst_18 = arith.constant dense<0xFF800000> : vector<16xf32>
    %26 = vector.multi_reduction <maximumf>, %25, %cst_18 [1] : vector<16x128xf32> to vector<16xf32>
    %27 = vector.shape_cast %26 : vector<16xf32> to vector<16x1xf32>
    %28 = vector.broadcast %27 : vector<16x1xf32> to vector<16x128xf32>
    %29 = arith.subf %25, %28 : vector<16x128xf32>
    %30 = math.exp %29 : vector<16x128xf32>
    %cst_19 = arith.constant dense<0.000000e+00> : vector<16xf32>
    %31 = vector.multi_reduction <add>, %30, %cst_19 [1] : vector<16x128xf32> to vector<16xf32>
    %32 = vector.shape_cast %31 : vector<16xf32> to vector<16x1xf32>
    %33 = vector.broadcast %32 : vector<16x1xf32> to vector<16x128xf32>
    %34 = arith.divf %30, %33 : vector<16x128xf32>
    %c0_20 = arith.constant 0 : index
    %c0_21 = arith.constant 0 : index
    %35 = vector.load %arg9[%c0_20, %c0_21] : memref<16x128xf32, #tpu.memory_space<vmem>>, vector<16x128xf32>
    tpu.vector_store %arg9[%c0_20, %c0_21], %34 {strides = array<i32>} : memref<16x128xf32, #tpu.memory_space<vmem>>, vector<16x128xf32>,
    return
  }
  func.func @transform_0(%arg0: i32) -> (i32, i32) {
    %c0_i32 = arith.constant 0 : i32
    %c0_i32_0 = arith.constant 0 : i32
    return %arg0, %c0_i32 : i32, i32
  }
  func.func @transform_1(%arg0: i32) -> (i32, i32) {
    %c0_i32 = arith.constant 0 : i32
    %c0_i32_0 = arith.constant 0 : i32
    %c0_i32_1 = arith.constant 0 : i32
    return %c0_i32, %c0_i32_0 : i32, i32
  }
  func.func @transform_2(%arg0: i32) -> (i32, i32) {
    %c0_i32 = arith.constant 0 : i32
    %c0_i32_0 = arith.constant 0 : i32
    %c0_i32_1 = arith.constant 0 : i32
    return %c0_i32, %c0_i32_0 : i32, i32
  }
  func.func @transform_3(%arg0: i32) -> (i32, i32) {
    %c0_i32 = arith.constant 0 : i32
    %c0_i32_0 = arith.constant 0 : i32
    %c0_i32_1 = arith.constant 0 : i32
    return %c0_i32, %c0_i32_0 : i32, i32
  }
  func.func @transform_4(%arg0: i32) -> (i32, i32) {
    %c0_i32 = arith.constant 0 : i32
    %c0_i32_0 = arith.constant 0 : i32
    %c0_i32_1 = arith.constant 0 : i32
    return %c0_i32, %c0_i32_0 : i32, i32
  }
  func.func @transform_5(%arg0: i32) -> (i32, i32) {
    %c0_i32 = arith.constant 0 : i32
    %c0_i32_0 = arith.constant 0 : i32
    %c0_i32_1 = arith.constant 0 : i32
    return %c0_i32, %c0_i32_0 : i32, i32
  }
  func.func @transform_6(%arg0: i32) -> (i32, i32) {
    %c0_i32 = arith.constant 0 : i32
    %c0_i32_0 = arith.constant 0 : i32
    %c0_i32_1 = arith.constant 0 : i32
    return %c0_i32, %c0_i32_0 : i32, i32
  }
  func.func @transform_7(%arg0: i32) -> (i32, i32) {
    %c0_i32 = arith.constant 0 : i32
    %c0_i32_0 = arith.constant 0 : i32
    return %arg0, %c0_i32 : i32, i32
  }
  func.func @transform_8(%arg0: i32) -> (i32, i32) {
    %c0_i32 = arith.constant 0 : i32
    %c0_i32_0 = arith.constant 0 : i32
    return %arg0, %c0_i32 : i32, i32
  }
}

</mosaic_0001>

<llo_original>
// kernel: lenet5_forward.3
$region0: #{lenet5_forward.3}
  #allocation0 [shape = 'u32[]', space=smem, size = 0x4, offset = 0x4, fixed_abs, tag = 'smem constant byte address 0x4 - core index']
  #allocation1 [shape = 'u32[72,128]{1,0:T(1,128)}', space=vmem, size = 0x9000, scoped, tag = 'internal scratch']
  %s0 = inlined_call_operand.vmem [shape: bf16[4,512,128], index: 0, kind: input, shape index: {}]
  %s1 = inlined_call_operand.vmem [shape: bf16[128,128], index: 1, kind: input, shape index: {}]
  %s2 = inlined_call_operand.vmem [shape: f32[1,128], index: 2, kind: input, shape index: {}]
  %s3 = inlined_call_operand.vmem [shape: bf16[512,128], index: 3, kind: output, shape index: {}]
  %s4 = sld [smem:[#allocation0]]
  $region86: #{lenet5_forward.3} parent=0
    _
  %s6 = ssub.s32 1, %s4
  %s7 = scalar_select 0, %s6, %s4
  $region1: #{lenet5_forward.3} parent=0
    #allocation2 [shape = 'u8[524288]{0}', space=vmem, size = 0x80000, scoped, tag = 'input window, operand 0']
    loop: start=0, step=1, limit=4
    $region2: #{lenet5_forward.3} parent=1 // loop_pre_header
      _
    $region3: #{lenet5_forward.3} parent=1 // loop_header
      %s9 = sphi 0, %s13
      %p10 = scmp.ge.s32.totalorder %s9, 4
      %s19 = sphi 0, %s21
      %s22 = sphi 0, %s19
      %s23 = sphi 0, %s22
      %s39 = sphi 0, %s23
      %s43 = sphi 0, %s43
      %s45 = sphi 0, %s43
      %s46 = sphi 0, %s45
      %s60 = sphi 0, %s46
      %s64 = sphi 0, %s64
      %s66 = sphi 0, %s64
      %s67 = sphi 0, %s66
      %s81 = sphi 0, %s67
      %s87 = sphi 0, %s89
      %s90 = sphi 0, %s87
      %s91 = sphi 0, %s90
      %s107 = sphi 0, %s91
    $region4: #{lenet5_forward.3} parent=1 // loop_header_branch
      %12 = sbr.rel (%p10) target = $region8
    $region5: #{lenet5_forward.3} parent=1 // loop_body
      %s14 = ssub.s32 %s9, 1
      %s15 = ssub.s32 %s9, 2
      %s16 = sadd.s32 %s9, 1
      %s17 = ssub.s32 %s9, %s16
      %p18 = scmp.eq.s32.totalorder %s17, 0
      %s20 = sadd.s32 %s19, 1
      %s21 = scalar_select %p18, %s19, %s20
      %p24 = pneg %p18
      %p25 = scmp.eq.s32.totalorder %s9, 1
      %p26 = por %p24, %p25
      %p27 = scmp.ne.s32.totalorder %s19, %s22
      %p28 = scmp.eq.s32.totalorder %s9, 0
      %p29 = por %p27, %p28
      %p30 = scmp.ne.s32.totalorder %s19, %s22
      %p31 = scmp.eq.s32.totalorder %s14, 1
      %p32 = por %p30, %p31
      %p33 = scmp.ne.s32.totalorder %s22, %s23
      %p34 = scmp.eq.s32.totalorder %s14, 0
      %p35 = por %p33, %p34
      %p36 = scmp.ne.s32.totalorder %s22, %s23
      %p37 = scmp.eq.s32.totalorder %s15, 1
      %p38 = por %p36, %p37
      %p40 = scmp.ne.s32.totalorder %s23, %s39
      %p41 = scmp.eq.s32.totalorder %s15, 0
      %p42 = por %p40, %p41
      %s44 = sadd.s32 %s43, 1
      %p47 = scmp.eq.s32.totalorder %s9, 1
      %p48 = scmp.ne.s32.totalorder %s43, %s45
      %p49 = scmp.eq.s32.totalorder %s9, 0
      %p50 = por %p48, %p49
      %p51 = scmp.ne.s32.totalorder %s43, %s45
      %p52 = scmp.eq.s32.totalorder %s14, 1
      %p53 = por %p51, %p52
      %p54 = scmp.ne.s32.totalorder %s45, %s46
      %p55 = scmp.eq.s32.totalorder %s14, 0
      %p56 = por %p54, %p55
      %p57 = scmp.ne.s32.totalorder %s45, %s46
      %p58 = scmp.eq.s32.totalorder %s15, 1
      %p59 = por %p57, %p58
      %p61 = scmp.ne.s32.totalorder %s46, %s60
      %p62 = scmp.eq.s32.totalorder %s15, 0
      %p63 = por %p61, %p62
      %s65 = sadd.s32 %s64, 1
      %p68 = scmp.eq.s32.totalorder %s9, 1
      %p69 = scmp.ne.s32.totalorder %s64, %s66
      %p70 = scmp.eq.s32.totalorder %s9, 0
      %p71 = por %p69, %p70
      %p72 = scmp.ne.s32.totalorder %s64, %s66
      %p73 = scmp.eq.s32.totalorder %s14, 1
      %p74 = por %p72, %p73
      %p75 = scmp.ne.s32.totalorder %s66, %s67
      %p76 = scmp.eq.s32.totalorder %s14, 0
      %p77 = por %p75, %p76
      %p78 = scmp.ne.s32.totalorder %s66, %s67
      %p79 = scmp.eq.s32.totalorder %s15, 1
      %p80 = por %p78, %p79
      %p82 = scmp.ne.s32.totalorder %s67, %s81
      %p83 = scmp.eq.s32.totalorder %s15, 0
      %p84 = por %p82, %p83
      %s85 = ssub.s32 %s9, %s16
      %p86 = scmp.eq.s32.totalorder %s85, 0
      %s88 = sadd.s32 %s87, 1
      %s89 = scalar_select %p86, %s87, %s88
      %p92 = pneg %p86
      %p93 = scmp.eq.s32.totalorder %s9, 1
      %p94 = por %p92, %p93
      %p95 = scmp.ne.s32.totalorder %s87, %s90
      %p96 = scmp.eq.s32.totalorder %s9, 0
      %p97 = por %p95, %p96
      %p98 = scmp.ne.s32.totalorder %s87, %s90
      %p99 = scmp.eq.s32.totalorder %s14, 1
      %p100 = por %p98, %p99
      %p101 = scmp.ne.s32.totalorder %s90, %s91
      %p102 = scmp.eq.s32.totalorder %s14, 0
      %p103 = por %p101, %p102
      %p104 = scmp.ne.s32.totalorder %s90, %s91
      %p105 = scmp.eq.s32.totalorder %s15, 1
      %p106 = por %p104, %p105
      %p108 = scmp.ne.s32.totalorder %s91, %s107
      %p109 = scmp.eq.s32.totalorder %s15, 0
      %p110 = por %p108, %p109
      %p111 = scmp.le.s32.totalorder 1, %s9
      %p112 = scmp.lt.s32.totalorder %s9, 3
      %p113 = pnand %p111, %p112
      %p114 = pneg %p113
      // Predicated region
      $region9: #{lenet5_forward.3} parent=5 // pred_check
        _
      $region10: #{lenet5_forward.3} parent=5 // pred_check_branch
        %116 = sbr.rel (%p113) target = $region12
      $region11: #{lenet5_forward.3} parent=5 // pred_region
        %s117 = ssub.s32 %s9, 1
        // Predicated region
        $region13: #{lenet5_forward.3} parent=11 // pred_check
          %p118 = pneg %p56
        $region14: #{lenet5_forward.3} parent=11 // pred_check_branch
          %120 = sbr.rel (%p118) target = $region16
        $region15: #{lenet5_forward.3} parent=11 // pred_region
          _
        $region16: #{lenet5_forward.3} parent=11 // pred_fallthru
          _
        // Predicated region
        $region17: #{lenet5_forward.3} parent=11 // pred_check
          %p121 = pneg %p77
        $region18: #{lenet5_forward.3} parent=11 // pred_check_branch
          %123 = sbr.rel (%p121) target = $region20
        $region19: #{lenet5_forward.3} parent=11 // pred_region
          _
        $region20: #{lenet5_forward.3} parent=11 // pred_fallthru
          _
      $region12: #{lenet5_forward.3} parent=5 // pred_fallthru
        _
      %p124 = scmp.lt.s32.totalorder %s9, 2
      // Predicated region
      $region21: #{lenet5_forward.3} parent=5 // pred_check
        %p125 = pneg %p124
      $region22: #{lenet5_forward.3} parent=5 // pred_check_branch
        %127 = sbr.rel (%p125) target = $region24
      $region23: #{lenet5_forward.3} parent=5 // pred_region
        // Predicated region
        $region25: #{lenet5_forward.3} parent=23 // pred_check
          %p128 = pneg %p29
        $region26: #{lenet5_forward.3} parent=23 // pred_check_branch
          %130 = sbr.rel (%p128) target = $region28
        $region27: #{lenet5_forward.3} parent=23 // pred_region
          %s131 = sand.u32 %s19, 1
          %s132 = sand.u32 %s19, 1
          %s133 = smul.addr %s132, 512
          %s134 = scalar_lea.vmem [#allocation2], %s133
          %s135 = smul.u32 32, %s9
          %s136 = smul.addr %s135, 4
          %s137 = scalar_lea.vmem %s0, %s136
          // Predicated region
          $region29: #{lenet5_forward.3} parent=27 // pred_check
            _
          $region30: #{lenet5_forward.3} parent=27 // pred_check_branch
            %139 = sbr.rel (0) target = $region32
          $region31: #{lenet5_forward.3} parent=27 // pred_region
            // Predicated region
            $region33: #{lenet5_forward.3} parent=31 // pred_check
              _
            $region34: #{lenet5_forward.3} parent=31 // pred_check_branch
              %141 = sbr.rel target = $region36
            $region35: #{lenet5_forward.3} parent=31 // pred_region
              // Predicated region
              $region48: #{lenet5_forward.3} parent=35 // pred_check
                _
              $region49: #{lenet5_forward.3} parent=35 // pred_check_branch
                %411 = sbr.rel (0) target = $region51
              $region50: #{lenet5_forward.3} parent=35 // pred_region
                loop: start=0, step=1, limit=1
                $region52: #{lenet5_forward.3} parent=50 // loop_pre_header
                  _
                $region53: #{lenet5_forward.3} parent=50 // loop_header
                  %s413 = sphi 0, %s417
                  %p414 = scmp.ge.s32.totalorder %s413, 1
                  %s418 = sphi %s137, %s137
                  %s419 = sphi %s134, %s134
                $region54: #{lenet5_forward.3} parent=50 // loop_header_branch
                  %416 = sbr.rel (%p414) target = $region58
                $region55: #{lenet5_forward.3} parent=50 // loop_body
                  _
                $region56: #{lenet5_forward.3} parent=50 // loop_footer
                  %s417 = sadd.s32 1, %s413
                $region57: #{lenet5_forward.3} parent=50 // loop_footer_branch
                  %412 = sbr.rel target = $region53
                $region58: #{lenet5_forward.3} parent=50 // loop_exit
                  _
                %s421 = ssub.s32 16, 1
                loop: start=0, step=1, limit=1
                $region59: #{lenet5_forward.3} parent=50 // loop_pre_header
                  _
                $region60: #{lenet5_forward.3} parent=50 // loop_header
                  %s423 = sphi 0, %s427
                  %p424 = scmp.ge.s32.totalorder %s423, 1
                  %s428 = sphi %s137, %s137
                  %s429 = sphi %s134, %s134
                $region61: #{lenet5_forward.3} parent=50 // loop_header_branch
                  %426 = sbr.rel (%p424) target = $region65
                $region62: #{lenet5_forward.3} parent=50 // loop_body
                  %v430 = vld [vmem:[%s428] sm:%s421]
                  %431 = vst [vmem:[%s429] sm:%s421] %v430
                  %v432 = vld [vmem:[%s428 + $0x4] sm:%s421]
                  %433 = vst [vmem:[%s429 + $0x4] sm:%s421] %v432
                  %v434 = vld [vmem:[%s428 + $0x8] sm:%s421]
                  %435 = vst [vmem:[%s429 + $0x8] sm:%s421] %v434
                  %v436 = vld [vmem:[%s428 + $0xc] sm:%s421]
                  %437 = vst [vmem:[%s429 + $0xc] sm:%s421] %v436
                  %v438 = vld [vmem:[%s428 + $0x10] sm:%s421]
                  %439 = vst [vmem:[%s429 + $0x10] sm:%s421] %v438
                  %v440 = vld [vmem:[%s428 + $0x14] sm:%s421]
                  %441 = vst [vmem:[%s429 + $0x14] sm:%s421] %v440
                  %v442 = vld [vmem:[%s428 + $0x18] sm:%s421]
                  %443 = vst [vmem:[%s429 + $0x18] sm:%s421] %v442
                  %v444 = vld [vmem:[%s428 + $0x1c] sm:%s421]
                  %445 = vst [vmem:[%s429 + $0x1c] sm:%s421] %v444
                  %v446 = vld [vmem:[%s428 + $0x20] sm:%s421]
                  %447 = vst [vmem:[%s429 + $0x20] sm:%s421] %v446
                  %v448 = vld [vmem:[%s428 + $0x24] sm:%s421]
                  %449 = vst [vmem:[%s429 + $0x24] sm:%s421] %v448
                  %v450 = vld [vmem:[%s428 + $0x28] sm:%s421]
                  %451 = vst [vmem:[%s429 + $0x28] sm:%s421] %v450
                  %v452 = vld [vmem:[%s428 + $0x2c] sm:%s421]
                  %453 = vst [vmem:[%s429 + $0x2c] sm:%s421] %v452
                  %v454 = vld [vmem:[%s428 + $0x30] sm:%s421]
                  %455 = vst [vmem:[%s429 + $0x30] sm:%s421] %v454
                  %v456 = vld [vmem:[%s428 + $0x34] sm:%s421]
                  %457 = vst [vmem:[%s429 + $0x34] sm:%s421] %v456
                  %v458 = vld [vmem:[%s428 + $0x38] sm:%s421]
                  %459 = vst [vmem:[%s429 + $0x38] sm:%s421] %v458
                  %v460 = vld [vmem:[%s428 + $0x3c] sm:%s421]
                  %461 = vst [vmem:[%s429 + $0x3c] sm:%s421] %v460
                  %v462 = vld [vmem:[%s428 + $0x40] sm:%s421]
                  %463 = vst [vmem:[%s429 + $0x40] sm:%s421] %v462
                  %v464 = vld [vmem:[%s428 + $0x44] sm:%s421]
                  %465 = vst [vmem:[%s429 + $0x44] sm:%s421] %v464
                  %v466 = vld [vmem:[%s428 + $0x48] sm:%s421]
                  %467 = vst [vmem:[%s429 + $0x48] sm:%s421] %v466
                  %v468 = vld [vmem:[%s428 + $0x4c] sm:%s421]
                  %469 = vst [vmem:[%s429 + $0x4c] sm:%s421] %v468
                  %v470 = vld [vmem:[%s428 + $0x50] sm:%s421]
                  %471 = vst [vmem:[%s429 + $0x50] sm:%s421] %v470
                  %v472 = vld [vmem:[%s428 + $0x54] sm:%s421]
                  %473 = vst [vmem:[%s429 + $0x54] sm:%s421] %v472
                  %v474 = vld [vmem:[%s428 + $0x58] sm:%s421]
                  %475 = vst [vmem:[%s429 + $0x58] sm:%s421] %v474
                  %v476 = vld [vmem:[%s428 + $0x5c] sm:%s421]
                  %477 = vst [vmem:[%s429 + $0x5c] sm:%s421] %v476
                  %v478 = vld [vmem:[%s428 + $0x60] sm:%s421]
                  %479 = vst [vmem:[%s429 + $0x60] sm:%s421] %v478
                  %v480 = vld [vmem:[%s428 + $0x64] sm:%s421]
                  %481 = vst [vmem:[%s429 + $0x64] sm:%s421] %v480
                  %v482 = vld [vmem:[%s428 + $0x68] sm:%s421]
                  %483 = vst [vmem:[%s429 + $0x68] sm:%s421] %v482
                  %v484 = vld [vmem:[%s428 + $0x6c] sm:%s421]
                  %485 = vst [vmem:[%s429 + $0x6c] sm:%s421] %v484
                  %v486 = vld [vmem:[%s428 + $0x70] sm:%s421]
                  %487 = vst [vmem:[%s429 + $0x70] sm:%s421] %v486
                  %v488 = vld [vmem:[%s428 + $0x74] sm:%s421]
                  %489 = vst [vmem:[%s429 + $0x74] sm:%s421] %v488
                  %v490 = vld [vmem:[%s428 + $0x78] sm:%s421]
                  %491 = vst [vmem:[%s429 + $0x78] sm:%s421] %v490
                  %v492 = vld [vmem:[%s428 + $0x7c] sm:%s421]
                  %493 = vst [vmem:[%s429 + $0x7c] sm:%s421] %v492
                  %v494 = vld [vmem:[%s428 + $0x100] sm:%s421]
                  %495 = vst [vmem:[%s429 + $0x80] sm:%s421] %v494
                  %v496 = vld [vmem:[%s428 + $0x104] sm:%s421]
                  %497 = vst [vmem:[%s429 + $0x84] sm:%s421] %v496
                  %v498 = vld [vmem:[%s428 + $0x108] sm:%s421]
                  %499 = vst [vmem:[%s429 + $0x88] sm:%s421] %v498
                  %v500 = vld [vmem:[%s428 + $0x10c] sm:%s421]
                  %501 = vst [vmem:[%s429 + $0x8c] sm:%s421] %v500
                  %v502 = vld [vmem:[%s428 + $0x110] sm:%s421]
                  %503 = vst [vmem:[%s429 + $0x90] sm:%s421] %v502
                  %v504 = vld [vmem:[%s428 + $0x114] sm:%s421]
                  %505 = vst [vmem:[%s429 + $0x94] sm:%s421] %v504
                  %v506 = vld [vmem:[%s428 + $0x118] sm:%s421]
                  %507 = vst [vmem:[%s429 + $0x98] sm:%s421] %v506
                  %v508 = vld [vmem:[%s428 + $0x11c] sm:%s421]
                  %509 = vst [vmem:[%s429 + $0x9c] sm:%s421] %v508
                  %v510 = vld [vmem:[%s428 + $0x120] sm:%s421]
                  %511 = vst [vmem:[%s429 + $0xa0] sm:%s421] %v510
                  %v512 = vld [vmem:[%s428 + $0x124] sm:%s421]
                  %513 = vst [vmem:[%s429 + $0xa4] sm:%s421] %v512
                  %v514 = vld [vmem:[%s428 + $0x128] sm:%s421]
                  %515 = vst [vmem:[%s429 + $0xa8] sm:%s421] %v514
                  %v516 = vld [vmem:[%s428 + $0x12c] sm:%s421]
                  %517 = vst [vmem:[%s429 + $0xac] sm:%s421] %v516
                  %v518 = vld [vmem:[%s428 + $0x130] sm:%s421]
                  %519 = vst [vmem:[%s429 + $0xb0] sm:%s421] %v518
                  %v520 = vld [vmem:[%s428 + $0x134] sm:%s421]
                  %521 = vst [vmem:[%s429 + $0xb4] sm:%s421] %v520
                  %v522 = vld [vmem:[%s428 + $0x138] sm:%s421]
                  %523 = vst [vmem:[%s429 + $0xb8] sm:%s421] %v522
                  %v524 = vld [vmem:[%s428 + $0x13c] sm:%s421]
                  %525 = vst [vmem:[%s429 + $0xbc] sm:%s421] %v524
                  %v526 = vld [vmem:[%s428 + $0x140] sm:%s421]
                  %527 = vst [vmem:[%s429 + $0xc0] sm:%s421] %v526
                  %v528 = vld [vmem:[%s428 + $0x144] sm:%s421]
                  %529 = vst [vmem:[%s429 + $0xc4] sm:%s421] %v528
                  %v530 = vld [vmem:[%s428 + $0x148] sm:%s421]
                  %531 = vst [vmem:[%s429 + $0xc8] sm:%s421] %v530
                  %v532 = vld [vmem:[%s428 + $0x14c] sm:%s421]
                  %533 = vst [vmem:[%s429 + $0xcc] sm:%s421] %v532
                  %v534 = vld [vmem:[%s428 + $0x150] sm:%s421]
                  %535 = vst [vmem:[%s429 + $0xd0] sm:%s421] %v534
                  %v536 = vld [vmem:[%s428 + $0x154] sm:%s421]
                  %537 = vst [vmem:[%s429 + $0xd4] sm:%s421] %v536
                  %v538 = vld [vmem:[%s428 + $0x158] sm:%s421]
                  %539 = vst [vmem:[%s429 + $0xd8] sm:%s421] %v538
                  %v540 = vld [vmem:[%s428 + $0x15c] sm:%s421]
                  %541 = vst [vmem:[%s429 + $0xdc] sm:%s421] %v540
                  %v542 = vld [vmem:[%s428 + $0x160] sm:%s421]
                  %543 = vst [vmem:[%s429 + $0xe0] sm:%s421] %v542
                  %v544 = vld [vmem:[%s428 + $0x164] sm:%s421]
                  %545 = vst [vmem:[%s429 + $0xe4] sm:%s421] %v544
                  %v546 = vld [vmem:[%s428 + $0x168] sm:%s421]
                  %547 = vst [vmem:[%s429 + $0xe8] sm:%s421] %v546
                  %v548 = vld [vmem:[%s428 + $0x16c] sm:%s421]
                  %549 = vst [vmem:[%s429 + $0xec] sm:%s421] %v548
                  %v550 = vld [vmem:[%s428 + $0x170] sm:%s421]
                  %551 = vst [vmem:[%s429 + $0xf0] sm:%s421] %v550
                  %v552 = vld [vmem:[%s428 + $0x174] sm:%s421]
                  %553 = vst [vmem:[%s429 + $0xf4] sm:%s421] %v552
                  %v554 = vld [vmem:[%s428 + $0x178] sm:%s421]
                  %555 = vst [vmem:[%s429 + $0xf8] sm:%s421] %v554
                  %v556 = vld [vmem:[%s428 + $0x17c] sm:%s421]
                  %557 = vst [vmem:[%s429 + $0xfc] sm:%s421] %v556
                  %v558 = vld [vmem:[%s428 + $0x200] sm:%s421]
                  %559 = vst [vmem:[%s429 + $0x100] sm:%s421] %v558
                  %v560 = vld [vmem:[%s428 + $0x204] sm:%s421]
                  %561 = vst [vmem:[%s429 + $0x104] sm:%s421] %v560
                  %v562 = vld [vmem:[%s428 + $0x208] sm:%s421]
                  %563 = vst [vmem:[%s429 + $0x108] sm:%s421] %v562
                  %v564 = vld [vmem:[%s428 + $0x20c] sm:%s421]
                  %565 = vst [vmem:[%s429 + $0x10c] sm:%s421] %v564
                  %v566 = vld [vmem:[%s428 + $0x210] sm:%s421]
                  %567 = vst [vmem:[%s429 + $0x110] sm:%s421] %v566
                  %v568 = vld [vmem:[%s428 + $0x214] sm:%s421]
                  %569 = vst [vmem:[%s429 + $0x114] sm:%s421] %v568
                  %v570 = vld [vmem:[%s428 + $0x218] sm:%s421]
                  %571 = vst [vmem:[%s429 + $0x118] sm:%s421] %v570
                  %v572 = vld [vmem:[%s428 + $0x21c] sm:%s421]
                  %573 = vst [vmem:[%s429 + $0x11c] sm:%s421] %v572
                  %v574 = vld [vmem:[%s428 + $0x220] sm:%s421]
                  %575 = vst [vmem:[%s429 + $0x120] sm:%s421] %v574
                  %v576 = vld [vmem:[%s428 + $0x224] sm:%s421]
                  %577 = vst [vmem:[%s429 + $0x124] sm:%s421] %v576
                  %v578 = vld [vmem:[%s428 + $0x228] sm:%s421]
                  %579 = vst [vmem:[%s429 + $0x128] sm:%s421] %v578
                  %v580 = vld [vmem:[%s428 + $0x22c] sm:%s421]
                  %581 = vst [vmem:[%s429 + $0x12c] sm:%s421] %v580
                  %v582 = vld [vmem:[%s428 + $0x230] sm:%s421]
                  %583 = vst [vmem:[%s429 + $0x130] sm:%s421] %v582
                  %v584 = vld [vmem:[%s428 + $0x234] sm:%s421]
                  %585 = vst [vmem:[%s429 + $0x134] sm:%s421] %v584
                  %v586 = vld [vmem:[%s428 + $0x238] sm:%s421]
                  %587 = vst [vmem:[%s429 + $0x138] sm:%s421] %v586
                  %v588 = vld [vmem:[%s428 + $0x23c] sm:%s421]
                  %589 = vst [vmem:[%s429 + $0x13c] sm:%s421] %v588
                  %v590 = vld [vmem:[%s428 + $0x240] sm:%s421]
                  %591 = vst [vmem:[%s429 + $0x140] sm:%s421] %v590
                  %v592 = vld [vmem:[%s428 + $0x244] sm:%s421]
                  %593 = vst [vmem:[%s429 + $0x144] sm:%s421] %v592
                  %v594 = vld [vmem:[%s428 + $0x248] sm:%s421]
                  %595 = vst [vmem:[%s429 + $0x148] sm:%s421] %v594
                  %v596 = vld [vmem:[%s428 + $0x24c] sm:%s421]
                  %597 = vst [vmem:[%s429 + $0x14c] sm:%s421] %v596
                  %v598 = vld [vmem:[%s428 + $0x250] sm:%s421]
                  %599 = vst [vmem:[%s429 + $0x150] sm:%s421] %v598
                  %v600 = vld [vmem:[%s428 + $0x254] sm:%s421]
                  %601 = vst [vmem:[%s429 + $0x154] sm:%s421] %v600
                  %v602 = vld [vmem:[%s428 + $0x258] sm:%s421]
                  %603 = vst [vmem:[%s429 + $0x158] sm:%s421] %v602
                  %v604 = vld [vmem:[%s428 + $0x25c] sm:%s421]
                  %605 = vst [vmem:[%s429 + $0x15c] sm:%s421] %v604
                  %v606 = vld [vmem:[%s428 + $0x260] sm:%s421]
                  %607 = vst [vmem:[%s429 + $0x160] sm:%s421] %v606
                  %v608 = vld [vmem:[%s428 + $0x264] sm:%s421]
                  %609 = vst [vmem:[%s429 + $0x164] sm:%s421] %v608
                  %v610 = vld [vmem:[%s428 + $0x268] sm:%s421]
                  %611 = vst [vmem:[%s429 + $0x168] sm:%s421] %v610
                  %v612 = vld [vmem:[%s428 + $0x26c] sm:%s421]
                  %613 = vst [vmem:[%s429 + $0x16c] sm:%s421] %v612
                  %v614 = vld [vmem:[%s428 + $0x270] sm:%s421]
                  %615 = vst [vmem:[%s429 + $0x170] sm:%s421] %v614
                  %v616 = vld [vmem:[%s428 + $0x274] sm:%s421]
                  %617 = vst [vmem:[%s429 + $0x174] sm:%s421] %v616
                  %v618 = vld [vmem:[%s428 + $0x278] sm:%s421]
                  %619 = vst [vmem:[%s429 + $0x178] sm:%s421] %v618
                  %v620 = vld [vmem:[%s428 + $0x27c] sm:%s421]
                  %621 = vst [vmem:[%s429 + $0x17c] sm:%s421] %v620
                  %v622 = vld [vmem:[%s428 + $0x300] sm:%s421]
                  %623 = vst [vmem:[%s429 + $0x180] sm:%s421] %v622
                  %v624 = vld [vmem:[%s428 + $0x304] sm:%s421]
                  %625 = vst [vmem:[%s429 + $0x184] sm:%s421] %v624
                  %v626 = vld [vmem:[%s428 + $0x308] sm:%s421]
                  %627 = vst [vmem:[%s429 + $0x188] sm:%s421] %v626
                  %v628 = vld [vmem:[%s428 + $0x30c] sm:%s421]
                  %629 = vst [vmem:[%s429 + $0x18c] sm:%s421] %v628
                  %v630 = vld [vmem:[%s428 + $0x310] sm:%s421]
                  %631 = vst [vmem:[%s429 + $0x190] sm:%s421] %v630
                  %v632 = vld [vmem:[%s428 + $0x314] sm:%s421]
                  %633 = vst [vmem:[%s429 + $0x194] sm:%s421] %v632
                  %v634 = vld [vmem:[%s428 + $0x318] sm:%s421]
                  %635 = vst [vmem:[%s429 + $0x198] sm:%s421] %v634
                  %v636 = vld [vmem:[%s428 + $0x31c] sm:%s421]
                  %637 = vst [vmem:[%s429 + $0x19c] sm:%s421] %v636
                  %v638 = vld [vmem:[%s428 + $0x320] sm:%s421]
                  %639 = vst [vmem:[%s429 + $0x1a0] sm:%s421] %v638
                  %v640 = vld [vmem:[%s428 + $0x324] sm:%s421]
                  %641 = vst [vmem:[%s429 + $0x1a4] sm:%s421] %v640
                  %v642 = vld [vmem:[%s428 + $0x328] sm:%s421]
                  %643 = vst [vmem:[%s429 + $0x1a8] sm:%s421] %v642
                  %v644 = vld [vmem:[%s428 + $0x32c] sm:%s421]
                  %645 = vst [vmem:[%s429 + $0x1ac] sm:%s421] %v644
                  %v646 = vld [vmem:[%s428 + $0x330] sm:%s421]
                  %647 = vst [vmem:[%s429 + $0x1b0] sm:%s421] %v646
                  %v648 = vld [vmem:[%s428 + $0x334] sm:%s421]
                  %649 = vst [vmem:[%s429 + $0x1b4] sm:%s421] %v648
                  %v650 = vld [vmem:[%s428 + $0x338] sm:%s421]
                  %651 = vst [vmem:[%s429 + $0x1b8] sm:%s421] %v650
                  %v652 = vld [vmem:[%s428 + $0x33c] sm:%s421]
                  %653 = vst [vmem:[%s429 + $0x1bc] sm:%s421] %v652
                  %v654 = vld [vmem:[%s428 + $0x340] sm:%s421]
                  %655 = vst [vmem:[%s429 + $0x1c0] sm:%s421] %v654
                  %v656 = vld [vmem:[%s428 + $0x344] sm:%s421]
                  %657 = vst [vmem:[%s429 + $0x1c4] sm:%s421] %v656
                  %v658 = vld [vmem:[%s428 + $0x348] sm:%s421]
                  %659 = vst [vmem:[%s429 + $0x1c8] sm:%s421] %v658
                  %v660 = vld [vmem:[%s428 + $0x34c] sm:%s421]
                  %661 = vst [vmem:[%s429 + $0x1cc] sm:%s421] %v660
                  %v662 = vld [vmem:[%s428 + $0x350] sm:%s421]
                  %663 = vst [vmem:[%s429 + $0x1d0] sm:%s421] %v662
                  %v664 = vld [vmem:[%s428 + $0x354] sm:%s421]
                  %665 = vst [vmem:[%s429 + $0x1d4] sm:%s421] %v664
                  %v666 = vld [vmem:[%s428 + $0x358] sm:%s421]
                  %667 = vst [vmem:[%s429 + $0x1d8] sm:%s421] %v666
                  %v668 = vld [vmem:[%s428 + $0x35c] sm:%s421]
                  %669 = vst [vmem:[%s429 + $0x1dc] sm:%s421] %v668
                  %v670 = vld [vmem:[%s428 + $0x360] sm:%s421]
                  %671 = vst [vmem:[%s429 + $0x1e0] sm:%s421] %v670
                  %v672 = vld [vmem:[%s428 + $0x364] sm:%s421]
                  %673 = vst [vmem:[%s429 + $0x1e4] sm:%s421] %v672
                  %v674 = vld [vmem:[%s428 + $0x368] sm:%s421]
                  %675 = vst [vmem:[%s429 + $0x1e8] sm:%s421] %v674
                  %v676 = vld [vmem:[%s428 + $0x36c] sm:%s421]
                  %677 = vst [vmem:[%s429 + $0x1ec] sm:%s421] %v676
                  %v678 = vld [vmem:[%s428 + $0x370] sm:%s421]
                  %679 = vst [vmem:[%s429 + $0x1f0] sm:%s421] %v678
                  %v680 = vld [vmem:[%s428 + $0x374] sm:%s421]
                  %681 = vst [vmem:[%s429 + $0x1f4] sm:%s421] %v680
                  %v682 = vld [vmem:[%s428 + $0x378] sm:%s421]
                  %683 = vst [vmem:[%s429 + $0x1f8] sm:%s421] %v682
                  %v684 = vld [vmem:[%s428 + $0x37c] sm:%s421]
                  %685 = vst [vmem:[%s429 + $0x1fc] sm:%s421] %v684
                $region63: #{lenet5_forward.3} parent=50 // loop_footer
                  %s427 = sadd.s32 1, %s423
                $region64: #{lenet5_forward.3} parent=50 // loop_footer_branch
                  %422 = sbr.rel target = $region60
                $region65: #{lenet5_forward.3} parent=50 // loop_exit
                  _
              $region51: #{lenet5_forward.3} parent=35 // pred_fallthru
                _
            $region36: #{lenet5_forward.3} parent=31 // pred_fallthru
              _
            // Predicated region
            $region37: #{lenet5_forward.3} parent=31 // pred_check
              _
            $region38: #{lenet5_forward.3} parent=31 // pred_check_branch
              %143 = sbr.rel (0) target = $region40
            $region39: #{lenet5_forward.3} parent=31 // pred_region
              %s145 = ssub.s32 16, 1
              loop: start=0, step=1, limit=1
              $region41: #{lenet5_forward.3} parent=39 // loop_pre_header
                _
              $region42: #{lenet5_forward.3} parent=39 // loop_header
                %s147 = sphi 0, %s151
                %p148 = scmp.ge.s32.totalorder %s147, 1
                %s152 = sphi %s137, %s137
                %s153 = sphi %s134, %s134
              $region43: #{lenet5_forward.3} parent=39 // loop_header_branch
                %150 = sbr.rel (%p148) target = $region47
              $region44: #{lenet5_forward.3} parent=39 // loop_body
                %v154 = vld [vmem:[%s152] sm:%s145]
                %155 = vst [vmem:[%s153] sm:%s145] %v154
                %v156 = vld [vmem:[%s152 + $0x4] sm:%s145]
                %157 = vst [vmem:[%s153 + $0x4] sm:%s145] %v156
                %v158 = vld [vmem:[%s152 + $0x8] sm:%s145]
                %159 = vst [vmem:[%s153 + $0x8] sm:%s145] %v158
                %v160 = vld [vmem:[%s152 + $0xc] sm:%s145]
                %161 = vst [vmem:[%s153 + $0xc] sm:%s145] %v160
                %v162 = vld [vmem:[%s152 + $0x10] sm:%s145]
                %163 = vst [vmem:[%s153 + $0x10] sm:%s145] %v162
                %v164 = vld [vmem:[%s152 + $0x14] sm:%s145]
                %165 = vst [vmem:[%s153 + $0x14] sm:%s145] %v164
                %v166 = vld [vmem:[%s152 + $0x18] sm:%s145]
                %167 = vst [vmem:[%s153 + $0x18] sm:%s145] %v166
                %v168 = vld [vmem:[%s152 + $0x1c] sm:%s145]
                %169 = vst [vmem:[%s153 + $0x1c] sm:%s145] %v168
                %v170 = vld [vmem:[%s152 + $0x20] sm:%s145]
                %171 = vst [vmem:[%s153 + $0x20] sm:%s145] %v170
                %v172 = vld [vmem:[%s152 + $0x24] sm:%s145]
                %173 = vst [vmem:[%s153 + $0x24] sm:%s145] %v172
                %v174 = vld [vmem:[%s152 + $0x28] sm:%s145]
                %175 = vst [vmem:[%s153 + $0x28] sm:%s145] %v174
                %v176 = vld [vmem:[%s152 + $0x2c] sm:%s145]
                %177 = vst [vmem:[%s153 + $0x2c] sm:%s145] %v176
                %v178 = vld [vmem:[%s152 + $0x30] sm:%s145]
                %179 = vst [vmem:[%s153 + $0x30] sm:%s145] %v178
                %v180 = vld [vmem:[%s152 + $0x34] sm:%s145]
                %181 = vst [vmem:[%s153 + $0x34] sm:%s145] %v180
                %v182 = vld [vmem:[%s152 + $0x38] sm:%s145]
                %183 = vst [vmem:[%s153 + $0x38] sm:%s145] %v182
                %v184 = vld [vmem:[%s152 + $0x3c] sm:%s145]
                %185 = vst [vmem:[%s153 + $0x3c] sm:%s145] %v184
                %v186 = vld [vmem:[%s152 + $0x40] sm:%s145]
                %187 = vst [vmem:[%s153 + $0x40] sm:%s145] %v186
                %v188 = vld [vmem:[%s152 + $0x44] sm:%s145]
                %189 = vst [vmem:[%s153 + $0x44] sm:%s145] %v188
                %v190 = vld [vmem:[%s152 + $0x48] sm:%s145]
                %191 = vst [vmem:[%s153 + $0x48] sm:%s145] %v190
                %v192 = vld [vmem:[%s152 + $0x4c] sm:%s145]
                %193 = vst [vmem:[%s153 + $0x4c] sm:%s145] %v192
                %v194 = vld [vmem:[%s152 + $0x50] sm:%s145]
                %195 = vst [vmem:[%s153 + $0x50] sm:%s145] %v194
                %v196 = vld [vmem:[%s152 + $0x54] sm:%s145]
                %197 = vst [vmem:[%s153 + $0x54] sm:%s145] %v196
                %v198 = vld [vmem:[%s152 + $0x58] sm:%s145]
                %199 = vst [vmem:[%s153 + $0x58] sm:%s145] %v198
                %v200 = vld [vmem:[%s152 + $0x5c] sm:%s145]
                %201 = vst [vmem:[%s153 + $0x5c] sm:%s145] %v200
                %v202 = vld [vmem:[%s152 + $0x60] sm:%s145]
                %203 = vst [vmem:[%s153 + $0x60] sm:%s145] %v202
                %v204 = vld [vmem:[%s152 + $0x64] sm:%s145]
                %205 = vst [vmem:[%s153 + $0x64] sm:%s145] %v204
                %v206 = vld [vmem:[%s152 + $0x68] sm:%s145]
                %207 = vst [vmem:[%s153 + $0x68] sm:%s145] %v206
                %v208 = vld [vmem:[%s152 + $0x6c] sm:%s145]
                %209 = vst [vmem:[%s153 + $0x6c] sm:%s145] %v208
                %v210 = vld [vmem:[%s152 + $0x70] sm:%s145]
                %211 = vst [vmem:[%s153 + $0x70] sm:%s145] %v210
                %v212 = vld [vmem:[%s152 + $0x74] sm:%s145]
                %213 = vst [vmem:[%s153 + $0x74] sm:%s145] %v212
                %v214 = vld [vmem:[%s152 + $0x78] sm:%s145]
                %215 = vst [vmem:[%s153 + $0x78] sm:%s145] %v214
                %v216 = vld [vmem:[%s152 + $0x7c] sm:%s145]
                %217 = vst [vmem:[%s153 + $0x7c] sm:%s145] %v216
                %v218 = vld [vmem:[%s152 + $0x100] sm:%s145]
                %219 = vst [vmem:[%s153 + $0x80] sm:%s145] %v218
                %v220 = vld [vmem:[%s152 + $0x104] sm:%s145]
                %221 = vst [vmem:[%s153 + $0x84] sm:%s145] %v220
                %v222 = vld [vmem:[%s152 + $0x108] sm:%s145]
                %223 = vst [vmem:[%s153 + $0x88] sm:%s145] %v222
                %v224 = vld [vmem:[%s152 + $0x10c] sm:%s145]
                %225 = vst [vmem:[%s153 + $0x8c] sm:%s145] %v224
                %v226 = vld [vmem:[%s152 + $0x110] sm:%s145]
                %227 = vst [vmem:[%s153 + $0x90] sm:%s145] %v226
                %v228 = vld [vmem:[%s152 + $0x114] sm:%s145]
                %229 = vst [vmem:[%s153 + $0x94] sm:%s145] %v228
                %v230 = vld [vmem:[%s152 + $0x118] sm:%s145]
                %231 = vst [vmem:[%s153 + $0x98] sm:%s145] %v230
                %v232 = vld [vmem:[%s152 + $0x11c] sm:%s145]
                %233 = vst [vmem:[%s153 + $0x9c] sm:%s145] %v232
                %v234 = vld [vmem:[%s152 + $0x120] sm:%s145]
                %235 = vst [vmem:[%s153 + $0xa0] sm:%s145] %v234
                %v236 = vld [vmem:[%s152 + $0x124] sm:%s145]
                %237 = vst [vmem:[%s153 + $0xa4] sm:%s145] %v236
                %v238 = vld [vmem:[%s152 + $0x128] sm:%s145]
                %239 = vst [vmem:[%s153 + $0xa8] sm:%s145] %v238
                %v240 = vld [vmem:[%s152 + $0x12c] sm:%s145]
                %241 = vst [vmem:[%s153 + $0xac] sm:%s145] %v240
                %v242 = vld [vmem:[%s152 + $0x130] sm:%s145]
                %243 = vst [vmem:[%s153 + $0xb0] sm:%s145] %v242
                %v244 = vld [vmem:[%s152 + $0x134] sm:%s145]
                %245 = vst [vmem:[%s153 + $0xb4] sm:%s145] %v244
                %v246 = vld [vmem:[%s152 + $0x138] sm:%s145]
                %247 = vst [vmem:[%s153 + $0xb8] sm:%s145] %v246
                %v248 = vld [vmem:[%s152 + $0x13c] sm:%s145]
                %249 = vst [vmem:[%s153 + $0xbc] sm:%s145] %v248
                %v250 = vld [vmem:[%s152 + $0x140] sm:%s145]
                %251 = vst [vmem:[%s153 + $0xc0] sm:%s145] %v250
                %v252 = vld [vmem:[%s152 + $0x144] sm:%s145]
                %253 = vst [vmem:[%s153 + $0xc4] sm:%s145] %v252
                %v254 = vld [vmem:[%s152 + $0x148] sm:%s145]
                %255 = vst [vmem:[%s153 + $0xc8] sm:%s145] %v254
                %v256 = vld [vmem:[%s152 + $0x14c] sm:%s145]
                %257 = vst [vmem:[%s153 + $0xcc] sm:%s145] %v256
                %v258 = vld [vmem:[%s152 + $0x150] sm:%s145]
                %259 = vst [vmem:[%s153 + $0xd0] sm:%s145] %v258
                %v260 = vld [vmem:[%s152 + $0x154] sm:%s145]
                %261 = vst [vmem:[%s153 + $0xd4] sm:%s145] %v260
                %v262 = vld [vmem:[%s152 + $0x158] sm:%s145]
                %263 = vst [vmem:[%s153 + $0xd8] sm:%s145] %v262
                %v264 = vld [vmem:[%s152 + $0x15c] sm:%s145]
                %265 = vst [vmem:[%s153 + $0xdc] sm:%s145] %v264
                %v266 = vld [vmem:[%s152 + $0x160] sm:%s145]
                %267 = vst [vmem:[%s153 + $0xe0] sm:%s145] %v266
                %v268 = vld [vmem:[%s152 + $0x164] sm:%s145]
                %269 = vst [vmem:[%s153 + $0xe4] sm:%s145] %v268
                %v270 = vld [vmem:[%s152 + $0x168] sm:%s145]
                %271 = vst [vmem:[%s153 + $0xe8] sm:%s145] %v270
                %v272 = vld [vmem:[%s152 + $0x16c] sm:%s145]
                %273 = vst [vmem:[%s153 + $0xec] sm:%s145] %v272
                %v274 = vld [vmem:[%s152 + $0x170] sm:%s145]
                %275 = vst [vmem:[%s153 + $0xf0] sm:%s145] %v274
                %v276 = vld [vmem:[%s152 + $0x174] sm:%s145]
                %277 = vst [vmem:[%s153 + $0xf4] sm:%s145] %v276
                %v278 = vld [vmem:[%s152 + $0x178] sm:%s145]
                %279 = vst [vmem:[%s153 + $0xf8] sm:%s145] %v278
                %v280 = vld [vmem:[%s152 + $0x17c] sm:%s145]
                %281 = vst [vmem:[%s153 + $0xfc] sm:%s145] %v280
                %v282 = vld [vmem:[%s152 + $0x200] sm:%s145]
                %283 = vst [vmem:[%s153 + $0x100] sm:%s145] %v282
                %v284 = vld [vmem:[%s152 + $0x204] sm:%s145]
                %285 = vst [vmem:[%s153 + $0x104] sm:%s145] %v284
                %v286 = vld [vmem:[%s152 + $0x208] sm:%s145]
                %287 = vst [vmem:[%s153 + $0x108] sm:%s145] %v286
                %v288 = vld [vmem:[%s152 + $0x20c] sm:%s145]
                %289 = vst [vmem:[%s153 + $0x10c] sm:%s145] %v288
                %v290 = vld [vmem:[%s152 + $0x210] sm:%s145]
                %291 = vst [vmem:[%s153 + $0x110] sm:%s145] %v290
                %v292 = vld [vmem:[%s152 + $0x214] sm:%s145]
                %293 = vst [vmem:[%s153 + $0x114] sm:%s145] %v292
                %v294 = vld [vmem:[%s152 + $0x218] sm:%s145]
                %295 = vst [vmem:[%s153 + $0x118] sm:%s145] %v294
                %v296 = vld [vmem:[%s152 + $0x21c] sm:%s145]
                %297 = vst [vmem:[%s153 + $0x11c] sm:%s145] %v296
                %v298 = vld [vmem:[%s152 + $0x220] sm:%s145]
                %299 = vst [vmem:[%s153 + $0x120] sm:%s145] %v298
                %v300 = vld [vmem:[%s152 + $0x224] sm:%s145]
                %301 = vst [vmem:[%s153 + $0x124] sm:%s145] %v300
                %v302 = vld [vmem:[%s152 + $0x228] sm:%s145]
                %303 = vst [vmem:[%s153 + $0x128] sm:%s145] %v302
                %v304 = vld [vmem:[%s152 + $0x22c] sm:%s145]
                %305 = vst [vmem:[%s153 + $0x12c] sm:%s145] %v304
                %v306 = vld [vmem:[%s152 + $0x230] sm:%s145]
                %307 = vst [vmem:[%s153 + $0x130] sm:%s145] %v306
                %v308 = vld [vmem:[%s152 + $0x234] sm:%s145]
                %309 = vst [vmem:[%s153 + $0x134] sm:%s145] %v308
                %v310 = vld [vmem:[%s152 + $0x238] sm:%s145]
                %311 = vst [vmem:[%s153 + $0x138] sm:%s145] %v310
                %v312 = vld [vmem:[%s152 + $0x23c] sm:%s145]
                %313 = vst [vmem:[%s153 + $0x13c] sm:%s145] %v312
                %v314 = vld [vmem:[%s152 + $0x240] sm:%s145]
                %315 = vst [vmem:[%s153 + $0x140] sm:%s145] %v314
                %v316 = vld [vmem:[%s152 + $0x244] sm:%s145]
                %317 = vst [vmem:[%s153 + $0x144] sm:%s145] %v316
                %v318 = vld [vmem:[%s152 + $0x248] sm:%s145]
                %319 = vst [vmem:[%s153 + $0x148] sm:%s145] %v318
                %v320 = vld [vmem:[%s152 + $0x24c] sm:%s145]
                %321 = vst [vmem:[%s153 + $0x14c] sm:%s145] %v320
                %v322 = vld [vmem:[%s152 + $0x250] sm:%s145]
                %323 = vst [vmem:[%s153 + $0x150] sm:%s145] %v322
                %v324 = vld [vmem:[%s152 + $0x254] sm:%s145]
                %325 = vst [vmem:[%s153 + $0x154] sm:%s145] %v324
                %v326 = vld [vmem:[%s152 + $0x258] sm:%s145]
                %327 = vst [vmem:[%s153 + $0x158] sm:%s145] %v326
                %v328 = vld [vmem:[%s152 + $0x25c] sm:%s145]
                %329 = vst [vmem:[%s153 + $0x15c] sm:%s145] %v328
                %v330 = vld [vmem:[%s152 + $0x260] sm:%s145]
                %331 = vst [vmem:[%s153 + $0x160] sm:%s145] %v330
                %v332 = vld [vmem:[%s152 + $0x264] sm:%s145]
                %333 = vst [vmem:[%s153 + $0x164] sm:%s145] %v332
                %v334 = vld [vmem:[%s152 + $0x268] sm:%s145]
                %335 = vst [vmem:[%s153 + $0x168] sm:%s145] %v334
                %v336 = vld [vmem:[%s152 + $0x26c] sm:%s145]
                %337 = vst [vmem:[%s153 + $0x16c] sm:%s145] %v336
                %v338 = vld [vmem:[%s152 + $0x270] sm:%s145]
                %339 = vst [vmem:[%s153 + $0x170] sm:%s145] %v338
                %v340 = vld [vmem:[%s152 + $0x274] sm:%s145]
                %341 = vst [vmem:[%s153 + $0x174] sm:%s145] %v340
                %v342 = vld [vmem:[%s152 + $0x278] sm:%s145]
                %343 = vst [vmem:[%s153 + $0x178] sm:%s145] %v342
                %v344 = vld [vmem:[%s152 + $0x27c] sm:%s145]
                %345 = vst [vmem:[%s153 + $0x17c] sm:%s145] %v344
                %v346 = vld [vmem:[%s152 + $0x300] sm:%s145]
                %347 = vst [vmem:[%s153 + $0x180] sm:%s145] %v346
                %v348 = vld [vmem:[%s152 + $0x304] sm:%s145]
                %349 = vst [vmem:[%s153 + $0x184] sm:%s145] %v348
                %v350 = vld [vmem:[%s152 + $0x308] sm:%s145]
                %351 = vst [vmem:[%s153 + $0x188] sm:%s145] %v350
                %v352 = vld [vmem:[%s152 + $0x30c] sm:%s145]
                %353 = vst [vmem:[%s153 + $0x18c] sm:%s145] %v352
                %v354 = vld [vmem:[%s152 + $0x310] sm:%s145]
                %355 = vst [vmem:[%s153 + $0x190] sm:%s145] %v354
                %v356 = vld [vmem:[%s152 + $0x314] sm:%s145]
                %357 = vst [vmem:[%s153 + $0x194] sm:%s145] %v356
                %v358 = vld [vmem:[%s152 + $0x318] sm:%s145]
                %359 = vst [vmem:[%s153 + $0x198] sm:%s145] %v358
                %v360 = vld [vmem:[%s152 + $0x31c] sm:%s145]
                %361 = vst [vmem:[%s153 + $0x19c] sm:%s145] %v360
                %v362 = vld [vmem:[%s152 + $0x320] sm:%s145]
                %363 = vst [vmem:[%s153 + $0x1a0] sm:%s145] %v362
                %v364 = vld [vmem:[%s152 + $0x324] sm:%s145]
                %365 = vst [vmem:[%s153 + $0x1a4] sm:%s145] %v364
                %v366 = vld [vmem:[%s152 + $0x328] sm:%s145]
                %367 = vst [vmem:[%s153 + $0x1a8] sm:%s145] %v366
                %v368 = vld [vmem:[%s152 + $0x32c] sm:%s145]
                %369 = vst [vmem:[%s153 + $0x1ac] sm:%s145] %v368
                %v370 = vld [vmem:[%s152 + $0x330] sm:%s145]
                %371 = vst [vmem:[%s153 + $0x1b0] sm:%s145] %v370
                %v372 = vld [vmem:[%s152 + $0x334] sm:%s145]
                %373 = vst [vmem:[%s153 + $0x1b4] sm:%s145] %v372
                %v374 = vld [vmem:[%s152 + $0x338] sm:%s145]
                %375 = vst [vmem:[%s153 + $0x1b8] sm:%s145] %v374
                %v376 = vld [vmem:[%s152 + $0x33c] sm:%s145]
                %377 = vst [vmem:[%s153 + $0x1bc] sm:%s145] %v376
                %v378 = vld [vmem:[%s152 + $0x340] sm:%s145]
                %379 = vst [vmem:[%s153 + $0x1c0] sm:%s145] %v378
                %v380 = vld [vmem:[%s152 + $0x344] sm:%s145]
                %381 = vst [vmem:[%s153 + $0x1c4] sm:%s145] %v380
                %v382 = vld [vmem:[%s152 + $0x348] sm:%s145]
                %383 = vst [vmem:[%s153 + $0x1c8] sm:%s145] %v382
                %v384 = vld [vmem:[%s152 + $0x34c] sm:%s145]
                %385 = vst [vmem:[%s153 + $0x1cc] sm:%s145] %v384
                %v386 = vld [vmem:[%s152 + $0x350] sm:%s145]
                %387 = vst [vmem:[%s153 + $0x1d0] sm:%s145] %v386
                %v388 = vld [vmem:[%s152 + $0x354] sm:%s145]
                %389 = vst [vmem:[%s153 + $0x1d4] sm:%s145] %v388
                %v390 = vld [vmem:[%s152 + $0x358] sm:%s145]
                %391 = vst [vmem:[%s153 + $0x1d8] sm:%s145] %v390
                %v392 = vld [vmem:[%s152 + $0x35c] sm:%s145]
                %393 = vst [vmem:[%s153 + $0x1dc] sm:%s145] %v392
                %v394 = vld [vmem:[%s152 + $0x360] sm:%s145]
                %395 = vst [vmem:[%s153 + $0x1e0] sm:%s145] %v394
                %v396 = vld [vmem:[%s152 + $0x364] sm:%s145]
                %397 = vst [vmem:[%s153 + $0x1e4] sm:%s145] %v396
                %v398 = vld [vmem:[%s152 + $0x368] sm:%s145]
                %399 = vst [vmem:[%s153 + $0x1e8] sm:%s145] %v398
                %v400 = vld [vmem:[%s152 + $0x36c] sm:%s145]
                %401 = vst [vmem:[%s153 + $0x1ec] sm:%s145] %v400
                %v402 = vld [vmem:[%s152 + $0x370] sm:%s145]
                %403 = vst [vmem:[%s153 + $0x1f0] sm:%s145] %v402
                %v404 = vld [vmem:[%s152 + $0x374] sm:%s145]
                %405 = vst [vmem:[%s153 + $0x1f4] sm:%s145] %v404
                %v406 = vld [vmem:[%s152 + $0x378] sm:%s145]
                %407 = vst [vmem:[%s153 + $0x1f8] sm:%s145] %v406
                %v408 = vld [vmem:[%s152 + $0x37c] sm:%s145]
                %409 = vst [vmem:[%s153 + $0x1fc] sm:%s145] %v408
              $region45: #{lenet5_forward.3} parent=39 // loop_footer
                %s151 = sadd.s32 1, %s147
              $region46: #{lenet5_forward.3} parent=39 // loop_footer_branch
                %146 = sbr.rel target = $region42
              $region47: #{lenet5_forward.3} parent=39 // loop_exit
                _
            $region40: #{lenet5_forward.3} parent=31 // pred_fallthru
              _
          $region32: #{lenet5_forward.3} parent=27 // pred_fallthru
            _
          %686 = vnop
        $region28: #{lenet5_forward.3} parent=23 // pred_fallthru
          _
      $region24: #{lenet5_forward.3} parent=5 // pred_fallthru
        _
      %p687 = scmp.le.s32.totalorder 1, %s9
      %p688 = scmp.lt.s32.totalorder %s9, 3
      %p689 = pnand %p687, %p688
      %p690 = pneg %p689
      // Predicated region
      $region66: #{lenet5_forward.3} parent=5 // pred_check
        _
      $region67: #{lenet5_forward.3} parent=5 // pred_check_branch
        %692 = sbr.rel (%p689) target = $region69
      $region68: #{lenet5_forward.3} parent=5 // pred_region
        %s693 = ssub.s32 %s9, 1
        %s694 = sand.u32 %s22, 1
        %s695 = sand.u32 %s22, 1
        %s696 = smul.addr %s695, 512
        %s697 = scalar_lea.vmem [#allocation2], %s696
        // Predicated region
        $region70: #{lenet5_forward.3} parent=68 // pred_check
          %p698 = pneg %p35
        $region71: #{lenet5_forward.3} parent=68 // pred_check_branch
          %700 = sbr.rel (%p698) target = $region73
        $region72: #{lenet5_forward.3} parent=68 // pred_region
          _
        $region73: #{lenet5_forward.3} parent=68 // pred_fallthru
          _
        %s701 = sand.u32 %s22, 1
        %s702 = sand.u32 %s22, 1
        %s703 = smul.addr %s702, 512
        %s704 = scalar_lea.vmem [#allocation2], %s703
        %p705 = pneg %p35
        %p706 = pneg %p32
        %p707 = pneg %p56
        %p708 = pneg %p53
        %p709 = pneg %p77
        %p710 = pneg %p74
        %p711 = pneg %p103
        %p712 = pneg %p100
        %s713 = smul.u32 32, %s14
        %p714 = scmp.lt.s32.totalorder %s713, 63
        %s715 = scalar_select %p714, %s713, 63
        %s716 = smul.addr %s715, 4
        %s717 = scalar_lea.vmem %s3, %s716
        %s718 = smul.u32 32, %s14
        %s719 = smul.u32 32, %s14
        %p720 = scmp.lt.s32.totalorder %s719, 63
        %s721 = scalar_select %p720, %s719, 63
        %s722 = smul.addr %s721, 4
        %s723 = scalar_lea.vmem %s3, %s722
        %s724 = smul.u32 32, %s14
        %v725 = vld [vmem:[%s697] sm:$0xf]
        %v726 = vld [vmem:[%s697 + $0x4] sm:$0xf]
        %v727 = vld [vmem:[%s697 + $0x8] sm:$0xf]
        %v728 = vld [vmem:[%s697 + $0xc] sm:$0xf]
        %v729 = vld [vmem:[%s697 + $0x10] sm:$0xf]
        %v730 = vld [vmem:[%s697 + $0x14] sm:$0xf]
        %v731 = vld [vmem:[%s697 + $0x18] sm:$0xf]
        %v732 = vld [vmem:[%s697 + $0x1c] sm:$0xf]
        %v733 = vld [vmem:[%s697 + $0x20] sm:$0xf]
        %v734 = vld [vmem:[%s697 + $0x24] sm:$0xf]
        %v735 = vld [vmem:[%s697 + $0x28] sm:$0xf]
        %v736 = vld [vmem:[%s697 + $0x2c] sm:$0xf]
        %v737 = vld [vmem:[%s697 + $0x30] sm:$0xf]
        %v738 = vld [vmem:[%s697 + $0x34] sm:$0xf]
        %v739 = vld [vmem:[%s697 + $0x38] sm:$0xf]
        %v740 = vld [vmem:[%s697 + $0x3c] sm:$0xf]
        %v741 = vld [vmem:[%s697 + $0x40] sm:$0xf]
        %v742 = vld [vmem:[%s697 + $0x44] sm:$0xf]
        %v743 = vld [vmem:[%s697 + $0x48] sm:$0xf]
        %v744 = vld [vmem:[%s697 + $0x4c] sm:$0xf]
        %v745 = vld [vmem:[%s697 + $0x50] sm:$0xf]
        %v746 = vld [vmem:[%s697 + $0x54] sm:$0xf]
        %v747 = vld [vmem:[%s697 + $0x58] sm:$0xf]
        %v748 = vld [vmem:[%s697 + $0x5c] sm:$0xf]
        %v749 = vld [vmem:[%s697 + $0x60] sm:$0xf]
        %v750 = vld [vmem:[%s697 + $0x64] sm:$0xf]
        %v751 = vld [vmem:[%s697 + $0x68] sm:$0xf]
        %v752 = vld [vmem:[%s697 + $0x6c] sm:$0xf]
        %v753 = vld [vmem:[%s697 + $0x70] sm:$0xf]
        %v754 = vld [vmem:[%s697 + $0x74] sm:$0xf]
        %v755 = vld [vmem:[%s697 + $0x78] sm:$0xf]
        %v756 = vld [vmem:[%s697 + $0x7c] sm:$0xf]
        %v757 = vld [vmem:[%s697 + $0x80] sm:$0xf]
        %v758 = vld [vmem:[%s697 + $0x84] sm:$0xf]
        %v759 = vld [vmem:[%s697 + $0x88] sm:$0xf]
        %v760 = vld [vmem:[%s697 + $0x8c] sm:$0xf]
        %v761 = vld [vmem:[%s697 + $0x90] sm:$0xf]
        %v762 = vld [vmem:[%s697 + $0x94] sm:$0xf]
        %v763 = vld [vmem:[%s697 + $0x98] sm:$0xf]
        %v764 = vld [vmem:[%s697 + $0x9c] sm:$0xf]
        %v765 = vld [vmem:[%s697 + $0xa0] sm:$0xf]
        %v766 = vld [vmem:[%s697 + $0xa4] sm:$0xf]
        %v767 = vld [vmem:[%s697 + $0xa8] sm:$0xf]
        %v768 = vld [vmem:[%s697 + $0xac] sm:$0xf]
        %v769 = vld [vmem:[%s697 + $0xb0] sm:$0xf]
        %v770 = vld [vmem:[%s697 + $0xb4] sm:$0xf]
        %v771 = vld [vmem:[%s697 + $0xb8] sm:$0xf]
        %v772 = vld [vmem:[%s697 + $0xbc] sm:$0xf]
        %v773 = vld [vmem:[%s697 + $0xc0] sm:$0xf]
        %v774 = vld [vmem:[%s697 + $0xc4] sm:$0xf]
        %v775 = vld [vmem:[%s697 + $0xc8] sm:$0xf]
        %v776 = vld [vmem:[%s697 + $0xcc] sm:$0xf]
        %v777 = vld [vmem:[%s697 + $0xd0] sm:$0xf]
        %v778 = vld [vmem:[%s697 + $0xd4] sm:$0xf]
        %v779 = vld [vmem:[%s697 + $0xd8] sm:$0xf]
        %v780 = vld [vmem:[%s697 + $0xdc] sm:$0xf]
        %v781 = vld [vmem:[%s697 + $0xe0] sm:$0xf]
        %v782 = vld [vmem:[%s697 + $0xe4] sm:$0xf]
        %v783 = vld [vmem:[%s697 + $0xe8] sm:$0xf]
        %v784 = vld [vmem:[%s697 + $0xec] sm:$0xf]
        %v785 = vld [vmem:[%s697 + $0xf0] sm:$0xf]
        %v786 = vld [vmem:[%s697 + $0xf4] sm:$0xf]
        %v787 = vld [vmem:[%s697 + $0xf8] sm:$0xf]
        %v788 = vld [vmem:[%s697 + $0xfc] sm:$0xf]
        %v789 = vld [vmem:[%s697 + $0x100] sm:$0xf]
        %v790 = vld [vmem:[%s697 + $0x104] sm:$0xf]
        %v791 = vld [vmem:[%s697 + $0x108] sm:$0xf]
        %v792 = vld [vmem:[%s697 + $0x10c] sm:$0xf]
        %v793 = vld [vmem:[%s697 + $0x110] sm:$0xf]
        %v794 = vld [vmem:[%s697 + $0x114] sm:$0xf]
        %v795 = vld [vmem:[%s697 + $0x118] sm:$0xf]
        %v796 = vld [vmem:[%s697 + $0x11c] sm:$0xf]
        %v797 = vld [vmem:[%s697 + $0x120] sm:$0xf]
        %v798 = vld [vmem:[%s697 + $0x124] sm:$0xf]
        %v799 = vld [vmem:[%s697 + $0x128] sm:$0xf]
        %v800 = vld [vmem:[%s697 + $0x12c] sm:$0xf]
        %v801 = vld [vmem:[%s697 + $0x130] sm:$0xf]
        %v802 = vld [vmem:[%s697 + $0x134] sm:$0xf]
        %v803 = vld [vmem:[%s697 + $0x138] sm:$0xf]
        %v804 = vld [vmem:[%s697 + $0x13c] sm:$0xf]
        %v805 = vld [vmem:[%s697 + $0x140] sm:$0xf]
        %v806 = vld [vmem:[%s697 + $0x144] sm:$0xf]
        %v807 = vld [vmem:[%s697 + $0x148] sm:$0xf]
        %v808 = vld [vmem:[%s697 + $0x14c] sm:$0xf]
        %v809 = vld [vmem:[%s697 + $0x150] sm:$0xf]
        %v810 = vld [vmem:[%s697 + $0x154] sm:$0xf]
        %v811 = vld [vmem:[%s697 + $0x158] sm:$0xf]
        %v812 = vld [vmem:[%s697 + $0x15c] sm:$0xf]
        %v813 = vld [vmem:[%s697 + $0x160] sm:$0xf]
        %v814 = vld [vmem:[%s697 + $0x164] sm:$0xf]
        %v815 = vld [vmem:[%s697 + $0x168] sm:$0xf]
        %v816 = vld [vmem:[%s697 + $0x16c] sm:$0xf]
        %v817 = vld [vmem:[%s697 + $0x170] sm:$0xf]
        %v818 = vld [vmem:[%s697 + $0x174] sm:$0xf]
        %v819 = vld [vmem:[%s697 + $0x178] sm:$0xf]
        %v820 = vld [vmem:[%s697 + $0x17c] sm:$0xf]
        %v821 = vld [vmem:[%s697 + $0x180] sm:$0xf]
        %v822 = vld [vmem:[%s697 + $0x184] sm:$0xf]
        %v823 = vld [vmem:[%s697 + $0x188] sm:$0xf]
        %v824 = vld [vmem:[%s697 + $0x18c] sm:$0xf]
        %v825 = vld [vmem:[%s697 + $0x190] sm:$0xf]
        %v826 = vld [vmem:[%s697 + $0x194] sm:$0xf]
        %v827 = vld [vmem:[%s697 + $0x198] sm:$0xf]
        %v828 = vld [vmem:[%s697 + $0x19c] sm:$0xf]
        %v829 = vld [vmem:[%s697 + $0x1a0] sm:$0xf]
        %v830 = vld [vmem:[%s697 + $0x1a4] sm:$0xf]
        %v831 = vld [vmem:[%s697 + $0x1a8] sm:$0xf]
        %v832 = vld [vmem:[%s697 + $0x1ac] sm:$0xf]
        %v833 = vld [vmem:[%s697 + $0x1b0] sm:$0xf]
        %v834 = vld [vmem:[%s697 + $0x1b4] sm:$0xf]
        %v835 = vld [vmem:[%s697 + $0x1b8] sm:$0xf]
        %v836 = vld [vmem:[%s697 + $0x1bc] sm:$0xf]
        %v837 = vld [vmem:[%s697 + $0x1c0] sm:$0xf]
        %v838 = vld [vmem:[%s697 + $0x1c4] sm:$0xf]
        %v839 = vld [vmem:[%s697 + $0x1c8] sm:$0xf]
        %v840 = vld [vmem:[%s697 + $0x1cc] sm:$0xf]
        %v841 = vld [vmem:[%s697 + $0x1d0] sm:$0xf]
        %v842 = vld [vmem:[%s697 + $0x1d4] sm:$0xf]
        %v843 = vld [vmem:[%s697 + $0x1d8] sm:$0xf]
        %v844 = vld [vmem:[%s697 + $0x1dc] sm:$0xf]
        %v845 = vld [vmem:[%s697 + $0x1e0] sm:$0xf]
        %v846 = vld [vmem:[%s697 + $0x1e4] sm:$0xf]
        %v847 = vld [vmem:[%s697 + $0x1e8] sm:$0xf]
        %v848 = vld [vmem:[%s697 + $0x1ec] sm:$0xf]
        %v849 = vld [vmem:[%s697 + $0x1f0] sm:$0xf]
        %v850 = vld [vmem:[%s697 + $0x1f4] sm:$0xf]
        %v851 = vld [vmem:[%s697 + $0x1f8] sm:$0xf]
        %v852 = vld [vmem:[%s697 + $0x1fc] sm:$0xf]
        %v853 = vld [vmem:[%s1] sm:$0xf]
        %v854 = vld [vmem:[%s1 + $0x4] sm:$0xf]
        %v855 = vld [vmem:[%s1 + $0x8] sm:$0xf]
        %v856 = vld [vmem:[%s1 + $0xc] sm:$0xf]
        %v857 = vld [vmem:[%s1 + $0x10] sm:$0xf]
        %v858 = vld [vmem:[%s1 + $0x14] sm:$0xf]
        %v859 = vld [vmem:[%s1 + $0x18] sm:$0xf]
        %v860 = vld [vmem:[%s1 + $0x1c] sm:$0xf]
        %v861 = vld [vmem:[%s1 + $0x20] sm:$0xf]
        %v862 = vld [vmem:[%s1 + $0x24] sm:$0xf]
        %v863 = vld [vmem:[%s1 + $0x28] sm:$0xf]
        %v864 = vld [vmem:[%s1 + $0x2c] sm:$0xf]
        %v865 = vld [vmem:[%s1 + $0x30] sm:$0xf]
        %v866 = vld [vmem:[%s1 + $0x34] sm:$0xf]
        %v867 = vld [vmem:[%s1 + $0x38] sm:$0xf]
        %v868 = vld [vmem:[%s1 + $0x3c] sm:$0xf]
        %v997 = vunpack.c.l.b16 %v725
        %v998 = vunpack.c.l.b16 %v726
        %v999 = vunpack.c.l.b16 %v727
        %v1000 = vunpack.c.l.b16 %v728
        %v1001 = vunpack.c.l.b16 %v729
        %v1002 = vunpack.c.l.b16 %v730
        %v1003 = vunpack.c.l.b16 %v731
        %v1004 = vunpack.c.l.b16 %v732
        %v1005 = vunpack.c.l.b16 %v733
        %v1006 = vunpack.c.l.b16 %v734
        %v1007 = vunpack.c.l.b16 %v735
        %v1008 = vunpack.c.l.b16 %v736
        %v1009 = vunpack.c.l.b16 %v737
        %v1010 = vunpack.c.l.b16 %v738
        %v1011 = vunpack.c.l.b16 %v739
        %v1012 = vunpack.c.l.b16 %v740
        %v1013 = vunpack.c.l.b16 %v741
        %v1014 = vunpack.c.l.b16 %v742
        %v1015 = vunpack.c.l.b16 %v743
        %v1016 = vunpack.c.l.b16 %v744
        %v1017 = vunpack.c.l.b16 %v745
        %v1018 = vunpack.c.l.b16 %v746
        %v1019 = vunpack.c.l.b16 %v747
        %v1020 = vunpack.c.l.b16 %v748
        %v1021 = vunpack.c.l.b16 %v749
        %v1022 = vunpack.c.l.b16 %v750
        %v1023 = vunpack.c.l.b16 %v751
        %v1024 = vunpack.c.l.b16 %v752
        %v1025 = vunpack.c.l.b16 %v753
        %v1026 = vunpack.c.l.b16 %v754
        %v1027 = vunpack.c.l.b16 %v755
        %v1028 = vunpack.c.l.b16 %v756
        %v1029 = vunpack.c.l.b16 %v757
        %v1030 = vunpack.c.l.b16 %v758
        %v1031 = vunpack.c.l.b16 %v759
        %v1032 = vunpack.c.l.b16 %v760
        %v1033 = vunpack.c.l.b16 %v761
        %v1034 = vunpack.c.l.b16 %v762
        %v1035 = vunpack.c.l.b16 %v763
        %v1036 = vunpack.c.l.b16 %v764
        %v1037 = vunpack.c.l.b16 %v765
        %v1038 = vunpack.c.l.b16 %v766
        %v1039 = vunpack.c.l.b16 %v767
        %v1040 = vunpack.c.l.b16 %v768
        %v1041 = vunpack.c.l.b16 %v769
        %v1042 = vunpack.c.l.b16 %v770
        %v1043 = vunpack.c.l.b16 %v771
        %v1044 = vunpack.c.l.b16 %v772
        %v1045 = vunpack.c.l.b16 %v773
        %v1046 = vunpack.c.l.b16 %v774
        %v1047 = vunpack.c.l.b16 %v775
        %v1048 = vunpack.c.l.b16 %v776
        %v1049 = vunpack.c.l.b16 %v777
        %v1050 = vunpack.c.l.b16 %v778
        %v1051 = vunpack.c.l.b16 %v779
        %v1052 = vunpack.c.l.b16 %v780
        %v1053 = vunpack.c.l.b16 %v781
        %v1054 = vunpack.c.l.b16 %v782
        %v1055 = vunpack.c.l.b16 %v783
        %v1056 = vunpack.c.l.b16 %v784
        %v1057 = vunpack.c.l.b16 %v785
        %v1058 = vunpack.c.l.b16 %v786
        %v1059 = vunpack.c.l.b16 %v787
        %v1060 = vunpack.c.l.b16 %v788
        %v1061 = vunpack.c.l.b16 %v789
        %v1062 = vunpack.c.l.b16 %v790
        %v1063 = vunpack.c.l.b16 %v791
        %v1064 = vunpack.c.l.b16 %v792
        %v1065 = vunpack.c.l.b16 %v793
        %v1066 = vunpack.c.l.b16 %v794
        %v1067 = vunpack.c.l.b16 %v795
        %v1068 = vunpack.c.l.b16 %v796
        %v1069 = vunpack.c.l.b16 %v797
        %v1070 = vunpack.c.l.b16 %v798
        %v1071 = vunpack.c.l.b16 %v799
        %v1072 = vunpack.c.l.b16 %v800
        %v1073 = vunpack.c.l.b16 %v801
        %v1074 = vunpack.c.l.b16 %v802
        %v1075 = vunpack.c.l.b16 %v803
        %v1076 = vunpack.c.l.b16 %v804
        %v1077 = vunpack.c.l.b16 %v805
        %v1078 = vunpack.c.l.b16 %v806
        %v1079 = vunpack.c.l.b16 %v807
        %v1080 = vunpack.c.l.b16 %v808
        %v1081 = vunpack.c.l.b16 %v809
        %v1082 = vunpack.c.l.b16 %v810
        %v1083 = vunpack.c.l.b16 %v811
        %v1084 = vunpack.c.l.b16 %v812
        %v1085 = vunpack.c.l.b16 %v813
        %v1086 = vunpack.c.l.b16 %v814
        %v1087 = vunpack.c.l.b16 %v815
        %v1088 = vunpack.c.l.b16 %v816
        %v1089 = vunpack.c.l.b16 %v817
        %v1090 = vunpack.c.l.b16 %v818
        %v1091 = vunpack.c.l.b16 %v819
        %v1092 = vunpack.c.l.b16 %v820
        %v1093 = vunpack.c.l.b16 %v821
        %v1094 = vunpack.c.l.b16 %v822
        %v1095 = vunpack.c.l.b16 %v823
        %v1096 = vunpack.c.l.b16 %v824
        %v1097 = vunpack.c.l.b16 %v825
        %v1098 = vunpack.c.l.b16 %v826
        %v1099 = vunpack.c.l.b16 %v827
        %v1100 = vunpack.c.l.b16 %v828
        %v1101 = vunpack.c.l.b16 %v829
        %v1102 = vunpack.c.l.b16 %v830
        %v1103 = vunpack.c.l.b16 %v831
        %v1104 = vunpack.c.l.b16 %v832
        %v1105 = vunpack.c.l.b16 %v833
        %v1106 = vunpack.c.l.b16 %v834
        %v1107 = vunpack.c.l.b16 %v835
        %v1108 = vunpack.c.l.b16 %v836
        %v1109 = vunpack.c.l.b16 %v837
        %v1110 = vunpack.c.l.b16 %v838
        %v1111 = vunpack.c.l.b16 %v839
        %v1112 = vunpack.c.l.b16 %v840
        %v1113 = vunpack.c.l.b16 %v841
        %v1114 = vunpack.c.l.b16 %v842
        %v1115 = vunpack.c.l.b16 %v843
        %v1116 = vunpack.c.l.b16 %v844
        %v1117 = vunpack.c.l.b16 %v845
        %v1118 = vunpack.c.l.b16 %v846
        %v1119 = vunpack.c.l.b16 %v847
        %v1120 = vunpack.c.l.b16 %v848
        %v1121 = vunpack.c.l.b16 %v849
        %v1122 = vunpack.c.l.b16 %v850
        %v1123 = vunpack.c.l.b16 %v851
        %v1124 = vunpack.c.l.b16 %v852
        %v1125 = vpack.c.b16 %v998, %v997
        %v1126 = vpack.c.b16 %v1000, %v999
        %v1127 = vpack.c.b16 %v1002, %v1001
        %v1128 = vpack.c.b16 %v1004, %v1003
        %v1129 = vpack.c.b16 %v1006, %v1005
        %v1130 = vpack.c.b16 %v1008, %v1007
        %v1131 = vpack.c.b16 %v1010, %v1009
        %v1132 = vpack.c.b16 %v1012, %v1011
        %v1133 = vpack.c.b16 %v1014, %v1013
        %v1134 = vpack.c.b16 %v1016, %v1015
        %v1135 = vpack.c.b16 %v1018, %v1017
        %v1136 = vpack.c.b16 %v1020, %v1019
        %v1137 = vpack.c.b16 %v1022, %v1021
        %v1138 = vpack.c.b16 %v1024, %v1023
        %v1139 = vpack.c.b16 %v1026, %v1025
        %v1140 = vpack.c.b16 %v1028, %v1027
        %v1141 = vpack.c.b16 %v1030, %v1029
        %v1142 = vpack.c.b16 %v1032, %v1031
        %v1143 = vpack.c.b16 %v1034, %v1033
        %v1144 = vpack.c.b16 %v1036, %v1035
        %v1145 = vpack.c.b16 %v1038, %v1037
        %v1146 = vpack.c.b16 %v1040, %v1039
        %v1147 = vpack.c.b16 %v1042, %v1041
        %v1148 = vpack.c.b16 %v1044, %v1043
        %v1149 = vpack.c.b16 %v1046, %v1045
        %v1150 = vpack.c.b16 %v1048, %v1047
        %v1151 = vpack.c.b16 %v1050, %v1049
        %v1152 = vpack.c.b16 %v1052, %v1051
        %v1153 = vpack.c.b16 %v1054, %v1053
        %v1154 = vpack.c.b16 %v1056, %v1055
        %v1155 = vpack.c.b16 %v1058, %v1057
        %v1156 = vpack.c.b16 %v1060, %v1059
        %v1157 = vpack.c.b16 %v1062, %v1061
        %v1158 = vpack.c.b16 %v1064, %v1063
        %v1159 = vpack.c.b16 %v1066, %v1065
        %v1160 = vpack.c.b16 %v1068, %v1067
        %v1161 = vpack.c.b16 %v1070, %v1069
        %v1162 = vpack.c.b16 %v1072, %v1071
        %v1163 = vpack.c.b16 %v1074, %v1073
        %v1164 = vpack.c.b16 %v1076, %v1075
        %v1165 = vpack.c.b16 %v1078, %v1077
        %v1166 = vpack.c.b16 %v1080, %v1079
        %v1167 = vpack.c.b16 %v1082, %v1081
        %v1168 = vpack.c.b16 %v1084, %v1083
        %v1169 = vpack.c.b16 %v1086, %v1085
        %v1170 = vpack.c.b16 %v1088, %v1087
        %v1171 = vpack.c.b16 %v1090, %v1089
        %v1172 = vpack.c.b16 %v1092, %v1091
        %v1173 = vpack.c.b16 %v1094, %v1093
        %v1174 = vpack.c.b16 %v1096, %v1095
        %v1175 = vpack.c.b16 %v1098, %v1097
        %v1176 = vpack.c.b16 %v1100, %v1099
        %v1177 = vpack.c.b16 %v1102, %v1101
        %v1178 = vpack.c.b16 %v1104, %v1103
        %v1179 = vpack.c.b16 %v1106, %v1105
        %v1180 = vpack.c.b16 %v1108, %v1107
        %v1181 = vpack.c.b16 %v1110, %v1109
        %v1182 = vpack.c.b16 %v1112, %v1111
        %v1183 = vpack.c.b16 %v1114, %v1113
        %v1184 = vpack.c.b16 %v1116, %v1115
        %v1185 = vpack.c.b16 %v1118, %v1117
        %v1186 = vpack.c.b16 %v1120, %v1119
        %v1187 = vpack.c.b16 %v1122, %v1121
        %v1188 = vpack.c.b16 %v1124, %v1123
        %v1269 = vunpack.c.l.b16 %v853
        %v1270 = vunpack.c.l.b16 %v854
        %v1271 = vunpack.c.l.b16 %v855
        %v1272 = vunpack.c.l.b16 %v856
        %v1273 = vunpack.c.l.b16 %v857
        %v1274 = vunpack.c.l.b16 %v858
        %v1275 = vunpack.c.l.b16 %v859
        %v1276 = vunpack.c.l.b16 %v860
        %v1277 = vunpack.c.l.b16 %v861
        %v1278 = vunpack.c.l.b16 %v862
        %v1279 = vunpack.c.l.b16 %v863
        %v1280 = vunpack.c.l.b16 %v864
        %v1281 = vunpack.c.l.b16 %v865
        %v1282 = vunpack.c.l.b16 %v866
        %v1283 = vunpack.c.l.b16 %v867
        %v1284 = vunpack.c.l.b16 %v868
        %v1285 = vpack.c.b16 %v1270, %v1269
        %v1286 = vpack.c.b16 %v1272, %v1271
        %v1287 = vpack.c.b16 %v1274, %v1273
        %v1288 = vpack.c.b16 %v1276, %v1275
        %v1289 = vpack.c.b16 %v1278, %v1277
        %v1290 = vpack.c.b16 %v1280, %v1279
        %v1291 = vpack.c.b16 %v1282, %v1281
        %v1292 = vpack.c.b16 %v1284, %v1283
        %1301 = vmatpush.bf16.msra.mxu0 %v1292
        %1302 = vmatpush.bf16.msra.mxu0 %v1291
        %1303 = vmatpush.bf16.msra.mxu0 %v1290
        %1304 = vmatpush.bf16.msra.mxu0 %v1289
        %1305 = vmatpush.bf16.msra.mxu0 %v1288
        %1306 = vmatpush.bf16.msra.mxu0 %v1287
        %1307 = vmatpush.bf16.msra.mxu0 %v1286
        %1308 = vmatpush.bf16.msra.mxu0 %v1285
        %1309 = vmatmul.bf16.gmra.mxu0 %v1125
        %v1310 = vpop.f32.mrf.mxu0
        %v1311 = vadd.f32 0.0, %v1310
        %v1312 = vpop.f32.mrf.mxu0
        %v1313 = vadd.f32 0.0, %v1312
        %1314 = vmatmul.bf16.gmra.mxu0 %v1126
        %v1315 = vpop.f32.mrf.mxu0
        %v1316 = vadd.f32 0.0, %v1315
        %v1317 = vpop.f32.mrf.mxu0
        %v1318 = vadd.f32 0.0, %v1317
        %1319 = vmatmul.bf16.gmra.mxu0 %v1127
        %v1320 = vpop.f32.mrf.mxu0
        %v1321 = vadd.f32 0.0, %v1320
        %v1322 = vpop.f32.mrf.mxu0
        %v1323 = vadd.f32 0.0, %v1322
        %1324 = vmatmul.bf16.gmra.mxu0 %v1128
        %v1325 = vpop.f32.mrf.mxu0
        %v1326 = vadd.f32 0.0, %v1325
        %v1327 = vpop.f32.mrf.mxu0
        %v1328 = vadd.f32 0.0, %v1327
        %1329 = vmatmul.bf16.gmra.mxu0 %v1129
        %v1330 = vpop.f32.mrf.mxu0
        %v1331 = vadd.f32 0.0, %v1330
        %v1332 = vpop.f32.mrf.mxu0
        %v1333 = vadd.f32 0.0, %v1332
        %1334 = vmatmul.bf16.gmra.mxu0 %v1130
        %v1335 = vpop.f32.mrf.mxu0
        %v1336 = vadd.f32 0.0, %v1335
        %v1337 = vpop.f32.mrf.mxu0
        %v1338 = vadd.f32 0.0, %v1337
        %1339 = vmatmul.bf16.gmra.mxu0 %v1131
        %v1340 = vpop.f32.mrf.mxu0
        %v1341 = vadd.f32 0.0, %v1340
        %v1342 = vpop.f32.mrf.mxu0
        %v1343 = vadd.f32 0.0, %v1342
        %1344 = vmatmul.bf16.gmra.mxu0 %v1132
        %v1345 = vpop.f32.mrf.mxu0
        %v1346 = vadd.f32 0.0, %v1345
        %v1347 = vpop.f32.mrf.mxu0
        %v1348 = vadd.f32 0.0, %v1347
        %1349 = vmatmul.bf16.gmra.mxu0 %v1133
        %v1350 = vpop.f32.mrf.mxu0
        %v1351 = vadd.f32 0.0, %v1350
        %v1352 = vpop.f32.mrf.mxu0
        %v1353 = vadd.f32 0.0, %v1352
        %1354 = vmatmul.bf16.gmra.mxu0 %v1134
        %v1355 = vpop.f32.mrf.mxu0
        %v1356 = vadd.f32 0.0, %v1355
        %v1357 = vpop.f32.mrf.mxu0
        %v1358 = vadd.f32 0.0, %v1357
        %1359 = vmatmul.bf16.gmra.mxu0 %v1135
        %v1360 = vpop.f32.mrf.mxu0
        %v1361 = vadd.f32 0.0, %v1360
        %v1362 = vpop.f32.mrf.mxu0
        %v1363 = vadd.f32 0.0, %v1362
        %1364 = vmatmul.bf16.gmra.mxu0 %v1136
        %v1365 = vpop.f32.mrf.mxu0
        %v1366 = vadd.f32 0.0, %v1365
        %v1367 = vpop.f32.mrf.mxu0
        %v1368 = vadd.f32 0.0, %v1367
        %1369 = vmatmul.bf16.gmra.mxu0 %v1137
        %v1370 = vpop.f32.mrf.mxu0
        %v1371 = vadd.f32 0.0, %v1370
        %v1372 = vpop.f32.mrf.mxu0
        %v1373 = vadd.f32 0.0, %v1372
        %1374 = vmatmul.bf16.gmra.mxu0 %v1138
        %v1375 = vpop.f32.mrf.mxu0
        %v1376 = vadd.f32 0.0, %v1375
        %v1377 = vpop.f32.mrf.mxu0
        %v1378 = vadd.f32 0.0, %v1377
        %1379 = vmatmul.bf16.gmra.mxu0 %v1139
        %v1380 = vpop.f32.mrf.mxu0
        %v1381 = vadd.f32 0.0, %v1380
        %v1382 = vpop.f32.mrf.mxu0
        %v1383 = vadd.f32 0.0, %v1382
        %1384 = vmatmul.bf16.gmra.mxu0 %v1140
        %v1385 = vpop.f32.mrf.mxu0
        %v1386 = vadd.f32 0.0, %v1385
        %v1387 = vpop.f32.mrf.mxu0
        %v1388 = vadd.f32 0.0, %v1387
        %1389 = vmatmul.bf16.gmra.mxu0 %v1141
        %v1390 = vpop.f32.mrf.mxu0
        %v1391 = vadd.f32 0.0, %v1390
        %v1392 = vpop.f32.mrf.mxu0
        %v1393 = vadd.f32 0.0, %v1392
        %1394 = vmatmul.bf16.gmra.mxu0 %v1142
        %v1395 = vpop.f32.mrf.mxu0
        %v1396 = vadd.f32 0.0, %v1395
        %v1397 = vpop.f32.mrf.mxu0
        %v1398 = vadd.f32 0.0, %v1397
        %1399 = vmatmul.bf16.gmra.mxu0 %v1143
        %v1400 = vpop.f32.mrf.mxu0
        %v1401 = vadd.f32 0.0, %v1400
        %v1402 = vpop.f32.mrf.mxu0
        %v1403 = vadd.f32 0.0, %v1402
        %1404 = vmatmul.bf16.gmra.mxu0 %v1144
        %v1405 = vpop.f32.mrf.mxu0
        %v1406 = vadd.f32 0.0, %v1405
        %v1407 = vpop.f32.mrf.mxu0
        %v1408 = vadd.f32 0.0, %v1407
        %1409 = vmatmul.bf16.gmra.mxu0 %v1145
        %v1410 = vpop.f32.mrf.mxu0
        %v1411 = vadd.f32 0.0, %v1410
        %v1412 = vpop.f32.mrf.mxu0
        %v1413 = vadd.f32 0.0, %v1412
        %1414 = vmatmul.bf16.gmra.mxu0 %v1146
        %v1415 = vpop.f32.mrf.mxu0
        %v1416 = vadd.f32 0.0, %v1415
        %v1417 = vpop.f32.mrf.mxu0
        %v1418 = vadd.f32 0.0, %v1417
        %1419 = vmatmul.bf16.gmra.mxu0 %v1147
        %v1420 = vpop.f32.mrf.mxu0
        %v1421 = vadd.f32 0.0, %v1420
        %v1422 = vpop.f32.mrf.mxu0
        %v1423 = vadd.f32 0.0, %v1422
        %1424 = vmatmul.bf16.gmra.mxu0 %v1148
        %v1425 = vpop.f32.mrf.mxu0
        %v1426 = vadd.f32 0.0, %v1425
        %v1427 = vpop.f32.mrf.mxu0
        %v1428 = vadd.f32 0.0, %v1427
        %1429 = vmatmul.bf16.gmra.mxu0 %v1149
        %v1430 = vpop.f32.mrf.mxu0
        %v1431 = vadd.f32 0.0, %v1430
        %v1432 = vpop.f32.mrf.mxu0
        %v1433 = vadd.f32 0.0, %v1432
        %1434 = vmatmul.bf16.gmra.mxu0 %v1150
        %v1435 = vpop.f32.mrf.mxu0
        %v1436 = vadd.f32 0.0, %v1435
        %v1437 = vpop.f32.mrf.mxu0
        %v1438 = vadd.f32 0.0, %v1437
        %1439 = vmatmul.bf16.gmra.mxu0 %v1151
        %v1440 = vpop.f32.mrf.mxu0
        %v1441 = vadd.f32 0.0, %v1440
        %v1442 = vpop.f32.mrf.mxu0
        %v1443 = vadd.f32 0.0, %v1442
        %1444 = vmatmul.bf16.gmra.mxu0 %v1152
        %v1445 = vpop.f32.mrf.mxu0
        %v1446 = vadd.f32 0.0, %v1445
        %v1447 = vpop.f32.mrf.mxu0
        %v1448 = vadd.f32 0.0, %v1447
        %1449 = vmatmul.bf16.gmra.mxu0 %v1153
        %v1450 = vpop.f32.mrf.mxu0
        %v1451 = vadd.f32 0.0, %v1450
        %v1452 = vpop.f32.mrf.mxu0
        %v1453 = vadd.f32 0.0, %v1452
        %1454 = vmatmul.bf16.gmra.mxu0 %v1154
        %v1455 = vpop.f32.mrf.mxu0
        %v1456 = vadd.f32 0.0, %v1455
        %v1457 = vpop.f32.mrf.mxu0
        %v1458 = vadd.f32 0.0, %v1457
        %1459 = vmatmul.bf16.gmra.mxu0 %v1155
        %v1460 = vpop.f32.mrf.mxu0
        %v1461 = vadd.f32 0.0, %v1460
        %v1462 = vpop.f32.mrf.mxu0
        %v1463 = vadd.f32 0.0, %v1462
        %1464 = vmatmul.bf16.gmra.mxu0 %v1156
        %v1465 = vpop.f32.mrf.mxu0
        %v1466 = vadd.f32 0.0, %v1465
        %v1467 = vpop.f32.mrf.mxu0
        %v1468 = vadd.f32 0.0, %v1467
        %1469 = vmatmul.bf16.gmra.mxu0 %v1157
        %v1470 = vpop.f32.mrf.mxu0
        %v1471 = vadd.f32 0.0, %v1470
        %v1472 = vpop.f32.mrf.mxu0
        %v1473 = vadd.f32 0.0, %v1472
        %1474 = vmatmul.bf16.gmra.mxu0 %v1158
        %v1475 = vpop.f32.mrf.mxu0
        %v1476 = vadd.f32 0.0, %v1475
        %v1477 = vpop.f32.mrf.mxu0
        %v1478 = vadd.f32 0.0, %v1477
        %1479 = vmatmul.bf16.gmra.mxu0 %v1159
        %v1480 = vpop.f32.mrf.mxu0
        %v1481 = vadd.f32 0.0, %v1480
        %v1482 = vpop.f32.mrf.mxu0
        %v1483 = vadd.f32 0.0, %v1482
        %1484 = vmatmul.bf16.gmra.mxu0 %v1160
        %v1485 = vpop.f32.mrf.mxu0
        %v1486 = vadd.f32 0.0, %v1485
        %v1487 = vpop.f32.mrf.mxu0
        %v1488 = vadd.f32 0.0, %v1487
        %1489 = vmatmul.bf16.gmra.mxu0 %v1161
        %v1490 = vpop.f32.mrf.mxu0
        %v1491 = vadd.f32 0.0, %v1490
        %v1492 = vpop.f32.mrf.mxu0
        %v1493 = vadd.f32 0.0, %v1492
        %1494 = vmatmul.bf16.gmra.mxu0 %v1162
        %v1495 = vpop.f32.mrf.mxu0
        %v1496 = vadd.f32 0.0, %v1495
        %v1497 = vpop.f32.mrf.mxu0
        %v1498 = vadd.f32 0.0, %v1497
        %1499 = vmatmul.bf16.gmra.mxu0 %v1163
        %v1500 = vpop.f32.mrf.mxu0
        %v1501 = vadd.f32 0.0, %v1500
        %v1502 = vpop.f32.mrf.mxu0
        %v1503 = vadd.f32 0.0, %v1502
        %1504 = vmatmul.bf16.gmra.mxu0 %v1164
        %v1505 = vpop.f32.mrf.mxu0
        %v1506 = vadd.f32 0.0, %v1505
        %v1507 = vpop.f32.mrf.mxu0
        %v1508 = vadd.f32 0.0, %v1507
        %1509 = vmatmul.bf16.gmra.mxu0 %v1165
        %v1510 = vpop.f32.mrf.mxu0
        %v1511 = vadd.f32 0.0, %v1510
        %v1512 = vpop.f32.mrf.mxu0
        %v1513 = vadd.f32 0.0, %v1512
        %1514 = vmatmul.bf16.gmra.mxu0 %v1166
        %v1515 = vpop.f32.mrf.mxu0
        %v1516 = vadd.f32 0.0, %v1515
        %v1517 = vpop.f32.mrf.mxu0
        %v1518 = vadd.f32 0.0, %v1517
        %1519 = vmatmul.bf16.gmra.mxu0 %v1167
        %v1520 = vpop.f32.mrf.mxu0
        %v1521 = vadd.f32 0.0, %v1520
        %v1522 = vpop.f32.mrf.mxu0
        %v1523 = vadd.f32 0.0, %v1522
        %1524 = vmatmul.bf16.gmra.mxu0 %v1168
        %v1525 = vpop.f32.mrf.mxu0
        %v1526 = vadd.f32 0.0, %v1525
        %v1527 = vpop.f32.mrf.mxu0
        %v1528 = vadd.f32 0.0, %v1527
        %1529 = vmatmul.bf16.gmra.mxu0 %v1169
        %v1530 = vpop.f32.mrf.mxu0
        %v1531 = vadd.f32 0.0, %v1530
        %v1532 = vpop.f32.mrf.mxu0
        %v1533 = vadd.f32 0.0, %v1532
        %1534 = vmatmul.bf16.gmra.mxu0 %v1170
        %v1535 = vpop.f32.mrf.mxu0
        %v1536 = vadd.f32 0.0, %v1535
        %v1537 = vpop.f32.mrf.mxu0
        %v1538 = vadd.f32 0.0, %v1537
        %1539 = vmatmul.bf16.gmra.mxu0 %v1171
        %v1540 = vpop.f32.mrf.mxu0
        %v1541 = vadd.f32 0.0, %v1540
        %v1542 = vpop.f32.mrf.mxu0
        %v1543 = vadd.f32 0.0, %v1542
        %1544 = vmatmul.bf16.gmra.mxu0 %v1172
        %v1545 = vpop.f32.mrf.mxu0
        %v1546 = vadd.f32 0.0, %v1545
        %v1547 = vpop.f32.mrf.mxu0
        %v1548 = vadd.f32 0.0, %v1547
        %1549 = vmatmul.bf16.gmra.mxu0 %v1173
        %v1550 = vpop.f32.mrf.mxu0
        %v1551 = vadd.f32 0.0, %v1550
        %v1552 = vpop.f32.mrf.mxu0
        %v1553 = vadd.f32 0.0, %v1552
        %1554 = vmatmul.bf16.gmra.mxu0 %v1174
        %v1555 = vpop.f32.mrf.mxu0
        %v1556 = vadd.f32 0.0, %v1555
        %v1557 = vpop.f32.mrf.mxu0
        %v1558 = vadd.f32 0.0, %v1557
        %1559 = vmatmul.bf16.gmra.mxu0 %v1175
        %v1560 = vpop.f32.mrf.mxu0
        %v1561 = vadd.f32 0.0, %v1560
        %v1562 = vpop.f32.mrf.mxu0
        %v1563 = vadd.f32 0.0, %v1562
        %1564 = vmatmul.bf16.gmra.mxu0 %v1176
        %v1565 = vpop.f32.mrf.mxu0
        %v1566 = vadd.f32 0.0, %v1565
        %v1567 = vpop.f32.mrf.mxu0
        %v1568 = vadd.f32 0.0, %v1567
        %1569 = vmatmul.bf16.gmra.mxu0 %v1177
        %v1570 = vpop.f32.mrf.mxu0
        %v1571 = vadd.f32 0.0, %v1570
        %v1572 = vpop.f32.mrf.mxu0
        %v1573 = vadd.f32 0.0, %v1572
        %1574 = vmatmul.bf16.gmra.mxu0 %v1178
        %v1575 = vpop.f32.mrf.mxu0
        %v1576 = vadd.f32 0.0, %v1575
        %v1577 = vpop.f32.mrf.mxu0
        %v1578 = vadd.f32 0.0, %v1577
        %1579 = vmatmul.bf16.gmra.mxu0 %v1179
        %v1580 = vpop.f32.mrf.mxu0
        %v1581 = vadd.f32 0.0, %v1580
        %v1582 = vpop.f32.mrf.mxu0
        %v1583 = vadd.f32 0.0, %v1582
        %1584 = vmatmul.bf16.gmra.mxu0 %v1180
        %v1585 = vpop.f32.mrf.mxu0
        %v1586 = vadd.f32 0.0, %v1585
        %v1587 = vpop.f32.mrf.mxu0
        %v1588 = vadd.f32 0.0, %v1587
        %1589 = vmatmul.bf16.gmra.mxu0 %v1181
        %v1590 = vpop.f32.mrf.mxu0
        %v1591 = vadd.f32 0.0, %v1590
        %v1592 = vpop.f32.mrf.mxu0
        %v1593 = vadd.f32 0.0, %v1592
        %1594 = vmatmul.bf16.gmra.mxu0 %v1182
        %v1595 = vpop.f32.mrf.mxu0
        %v1596 = vadd.f32 0.0, %v1595
        %v1597 = vpop.f32.mrf.mxu0
        %v1598 = vadd.f32 0.0, %v1597
        %1599 = vmatmul.bf16.gmra.mxu0 %v1183
        %v1600 = vpop.f32.mrf.mxu0
        %v1601 = vadd.f32 0.0, %v1600
        %v1602 = vpop.f32.mrf.mxu0
        %v1603 = vadd.f32 0.0, %v1602
        %1604 = vmatmul.bf16.gmra.mxu0 %v1184
        %v1605 = vpop.f32.mrf.mxu0
        %v1606 = vadd.f32 0.0, %v1605
        %v1607 = vpop.f32.mrf.mxu0
        %v1608 = vadd.f32 0.0, %v1607
        %1609 = vmatmul.bf16.gmra.mxu0 %v1185
        %v1610 = vpop.f32.mrf.mxu0
        %v1611 = vadd.f32 0.0, %v1610
        %v1612 = vpop.f32.mrf.mxu0
        %v1613 = vadd.f32 0.0, %v1612
        %1614 = vmatmul.bf16.gmra.mxu0 %v1186
        %v1615 = vpop.f32.mrf.mxu0
        %v1616 = vadd.f32 0.0, %v1615
        %v1617 = vpop.f32.mrf.mxu0
        %v1618 = vadd.f32 0.0, %v1617
        %1619 = vmatmul.bf16.gmra.mxu0 %v1187
        %v1620 = vpop.f32.mrf.mxu0
        %v1621 = vadd.f32 0.0, %v1620
        %v1622 = vpop.f32.mrf.mxu0
        %v1623 = vadd.f32 0.0, %v1622
        %1624 = vmatmul.bf16.gmra.mxu0 %v1188
        %v1625 = vpop.f32.mrf.mxu0
        %v1626 = vadd.f32 0.0, %v1625
        %v1627 = vpop.f32.mrf.mxu0
        %v1628 = vadd.f32 0.0, %v1627
        %1629 = vdwg.mxu0
        %v1630 = vmax.f32 %v1311, %v1391
        %v1631 = vmax.f32 %v1313, %v1393
        %v1632 = vmax.f32 %v1316, %v1396
        %v1633 = vmax.f32 %v1318, %v1398
        %v1634 = vmax.f32 %v1321, %v1401
        %v1635 = vmax.f32 %v1323, %v1403
        %v1636 = vmax.f32 %v1326, %v1406
        %v1637 = vmax.f32 %v1328, %v1408
        %v1638 = vmax.f32 %v1331, %v1411
        %v1639 = vmax.f32 %v1333, %v1413
        %v1640 = vmax.f32 %v1336, %v1416
        %v1641 = vmax.f32 %v1338, %v1418
        %v1642 = vmax.f32 %v1341, %v1421
        %v1643 = vmax.f32 %v1343, %v1423
        %v1644 = vmax.f32 %v1346, %v1426
        %v1645 = vmax.f32 %v1348, %v1428
        %v1646 = vmax.f32 %v1351, %v1431
        %v1647 = vmax.f32 %v1353, %v1433
        %v1648 = vmax.f32 %v1356, %v1436
        %v1649 = vmax.f32 %v1358, %v1438
        %v1650 = vmax.f32 %v1361, %v1441
        %v1651 = vmax.f32 %v1363, %v1443
        %v1652 = vmax.f32 %v1366, %v1446
        %v1653 = vmax.f32 %v1368, %v1448
        %v1654 = vmax.f32 %v1371, %v1451
        %v1655 = vmax.f32 %v1373, %v1453
        %v1656 = vmax.f32 %v1376, %v1456
        %v1657 = vmax.f32 %v1378, %v1458
        %v1658 = vmax.f32 %v1381, %v1461
        %v1659 = vmax.f32 %v1383, %v1463
        %v1660 = vmax.f32 %v1386, %v1466
        %v1661 = vmax.f32 %v1388, %v1468
        %v1662 = vmax.f32 %v1471, %v1551
        %v1663 = vmax.f32 %v1473, %v1553
        %v1664 = vmax.f32 %v1476, %v1556
        %v1665 = vmax.f32 %v1478, %v1558
        %v1666 = vmax.f32 %v1481, %v1561
        %v1667 = vmax.f32 %v1483, %v1563
        %v1668 = vmax.f32 %v1486, %v1566
        %v1669 = vmax.f32 %v1488, %v1568
        %v1670 = vmax.f32 %v1491, %v1571
        %v1671 = vmax.f32 %v1493, %v1573
        %v1672 = vmax.f32 %v1496, %v1576
        %v1673 = vmax.f32 %v1498, %v1578
        %v1674 = vmax.f32 %v1501, %v1581
        %v1675 = vmax.f32 %v1503, %v1583
        %v1676 = vmax.f32 %v1506, %v1586
        %v1677 = vmax.f32 %v1508, %v1588
        %v1678 = vmax.f32 %v1511, %v1591
        %v1679 = vmax.f32 %v1513, %v1593
        %v1680 = vmax.f32 %v1516, %v1596
        %v1681 = vmax.f32 %v1518, %v1598
        %v1682 = vmax.f32 %v1521, %v1601
        %v1683 = vmax.f32 %v1523, %v1603
        %v1684 = vmax.f32 %v1526, %v1606
        %v1685 = vmax.f32 %v1528, %v1608
        %v1686 = vmax.f32 %v1531, %v1611
        %v1687 = vmax.f32 %v1533, %v1613
        %v1688 = vmax.f32 %v1536, %v1616
        %v1689 = vmax.f32 %v1538, %v1618
        %v1690 = vmax.f32 %v1541, %v1621
        %v1691 = vmax.f32 %v1543, %v1623
        %v1692 = vmax.f32 %v1546, %v1626
        %v1693 = vmax.f32 %v1548, %v1628
        %v1694 = vmax.f32 %v1630, %v1662
        %v1695 = vmax.f32 %v1631, %v1663
        %v1696 = vmax.f32 %v1632, %v1664
        %v1697 = vmax.f32 %v1633, %v1665
        %v1698 = vmax.f32 %v1634, %v1666
        %v1699 = vmax.f32 %v1635, %v1667
        %v1700 = vmax.f32 %v1636, %v1668
        %v1701 = vmax.f32 %v1637, %v1669
        %v1702 = vmax.f32 %v1638, %v1670
        %v1703 = vmax.f32 %v1639, %v1671
        %v1704 = vmax.f32 %v1640, %v1672
        %v1705 = vmax.f32 %v1641, %v1673
        %v1706 = vmax.f32 %v1642, %v1674
        %v1707 = vmax.f32 %v1643, %v1675
        %v1708 = vmax.f32 %v1644, %v1676
        %v1709 = vmax.f32 %v1645, %v1677
        %v1710 = vmax.f32 %v1646, %v1678
        %v1711 = vmax.f32 %v1647, %v1679
        %v1712 = vmax.f32 %v1648, %v1680
        %v1713 = vmax.f32 %v1649, %v1681
        %v1714 = vmax.f32 %v1650, %v1682
        %v1715 = vmax.f32 %v1651, %v1683
        %v1716 = vmax.f32 %v1652, %v1684
        %v1717 = vmax.f32 %v1653, %v1685
        %v1718 = vmax.f32 %v1654, %v1686
        %v1719 = vmax.f32 %v1655, %v1687
        %v1720 = vmax.f32 %v1656, %v1688
        %v1721 = vmax.f32 %v1657, %v1689
        %v1722 = vmax.f32 %v1658, %v1690
        %v1723 = vmax.f32 %v1659, %v1691
        %v1724 = vmax.f32 %v1660, %v1692
        %v1725 = vmax.f32 %v1661, %v1693
        %v1726 = vld [vmem:[%s2] sm:$0x1]
        %v1728 = vperm.slane %v1726, 0
        %v1730 = vadd.f32 %v1694, %v1728
        %v1731 = vadd.f32 %v1695, %v1728
        %v1732 = vadd.f32 %v1696, %v1728
        %v1733 = vadd.f32 %v1697, %v1728
        %v1734 = vadd.f32 %v1698, %v1728
        %v1735 = vadd.f32 %v1699, %v1728
        %v1736 = vadd.f32 %v1700, %v1728
        %v1737 = vadd.f32 %v1701, %v1728
        %v1738 = vadd.f32 %v1702, %v1728
        %v1739 = vadd.f32 %v1703, %v1728
        %v1740 = vadd.f32 %v1704, %v1728
        %v1741 = vadd.f32 %v1705, %v1728
        %v1742 = vadd.f32 %v1706, %v1728
        %v1743 = vadd.f32 %v1707, %v1728
        %v1744 = vadd.f32 %v1708, %v1728
        %v1745 = vadd.f32 %v1709, %v1728
        %v1746 = vadd.f32 %v1710, %v1728
        %v1747 = vadd.f32 %v1711, %v1728
        %v1748 = vadd.f32 %v1712, %v1728
        %v1749 = vadd.f32 %v1713, %v1728
        %v1750 = vadd.f32 %v1714, %v1728
        %v1751 = vadd.f32 %v1715, %v1728
        %v1752 = vadd.f32 %v1716, %v1728
        %v1753 = vadd.f32 %v1717, %v1728
        %v1754 = vadd.f32 %v1718, %v1728
        %v1755 = vadd.f32 %v1719, %v1728
        %v1756 = vadd.f32 %v1720, %v1728
        %v1757 = vadd.f32 %v1721, %v1728
        %v1758 = vadd.f32 %v1722, %v1728
        %v1759 = vadd.f32 %v1723, %v1728
        %v1760 = vadd.f32 %v1724, %v1728
        %v1761 = vadd.f32 %v1725, %v1728
        %v1762 = vtanh.pop %v1730
        %v1763 = vtanh.pop %v1731
        %v1764 = vtanh.pop %v1732
        %v1765 = vtanh.pop %v1733
        %v1766 = vtanh.pop %v1734
        %v1767 = vtanh.pop %v1735
        %v1768 = vtanh.pop %v1736
        %v1769 = vtanh.pop %v1737
        %v1770 = vtanh.pop %v1738
        %v1771 = vtanh.pop %v1739
        %v1772 = vtanh.pop %v1740
        %v1773 = vtanh.pop %v1741
        %v1774 = vtanh.pop %v1742
        %v1775 = vtanh.pop %v1743
        %v1776 = vtanh.pop %v1744
        %v1777 = vtanh.pop %v1745
        %v1778 = vtanh.pop %v1746
        %v1779 = vtanh.pop %v1747
        %v1780 = vtanh.pop %v1748
        %v1781 = vtanh.pop %v1749
        %v1782 = vtanh.pop %v1750
        %v1783 = vtanh.pop %v1751
        %v1784 = vtanh.pop %v1752
        %v1785 = vtanh.pop %v1753
        %v1786 = vtanh.pop %v1754
        %v1787 = vtanh.pop %v1755
        %v1788 = vtanh.pop %v1756
        %v1789 = vtanh.pop %v1757
        %v1790 = vtanh.pop %v1758
        %v1791 = vtanh.pop %v1759
        %v1792 = vtanh.pop %v1760
        %v1793 = vtanh.pop %v1761
        %v1794 = vpack.c.bf16 %v1762, %v1762
        %v1795 = vpack.c.bf16 %v1763, %v1763
        %v1796 = vpack.c.bf16 %v1764, %v1764
        %v1797 = vpack.c.bf16 %v1765, %v1765
        %v1798 = vpack.c.bf16 %v1766, %v1766
        %v1799 = vpack.c.bf16 %v1767, %v1767
        %v1800 = vpack.c.bf16 %v1768, %v1768
        %v1801 = vpack.c.bf16 %v1769, %v1769
        %v1802 = vpack.c.bf16 %v1770, %v1770
        %v1803 = vpack.c.bf16 %v1771, %v1771
        %v1804 = vpack.c.bf16 %v1772, %v1772
        %v1805 = vpack.c.bf16 %v1773, %v1773
        %v1806 = vpack.c.bf16 %v1774, %v1774
        %v1807 = vpack.c.bf16 %v1775, %v1775
        %v1808 = vpack.c.bf16 %v1776, %v1776
        %v1809 = vpack.c.bf16 %v1777, %v1777
        %v1810 = vpack.c.bf16 %v1778, %v1778
        %v1811 = vpack.c.bf16 %v1779, %v1779
        %v1812 = vpack.c.bf16 %v1780, %v1780
        %v1813 = vpack.c.bf16 %v1781, %v1781
        %v1814 = vpack.c.bf16 %v1782, %v1782
        %v1815 = vpack.c.bf16 %v1783, %v1783
        %v1816 = vpack.c.bf16 %v1784, %v1784
        %v1817 = vpack.c.bf16 %v1785, %v1785
        %v1818 = vpack.c.bf16 %v1786, %v1786
        %v1819 = vpack.c.bf16 %v1787, %v1787
        %v1820 = vpack.c.bf16 %v1788, %v1788
        %v1821 = vpack.c.bf16 %v1789, %v1789
        %v1822 = vpack.c.bf16 %v1790, %v1790
        %v1823 = vpack.c.bf16 %v1791, %v1791
        %v1824 = vpack.c.bf16 %v1792, %v1792
        %v1825 = vpack.c.bf16 %v1793, %v1793
        %1826 = vst [vmem:[%s723] sm:$0xf] %v1794
        %1827 = vst [vmem:[%s723 + $0x4] sm:$0xf] %v1795
        %1828 = vst [vmem:[%s723 + $0x8] sm:$0xf] %v1796
        %1829 = vst [vmem:[%s723 + $0xc] sm:$0xf] %v1797
        %1830 = vst [vmem:[%s723 + $0x10] sm:$0xf] %v1798
        %1831 = vst [vmem:[%s723 + $0x14] sm:$0xf] %v1799
        %1832 = vst [vmem:[%s723 + $0x18] sm:$0xf] %v1800
        %1833 = vst [vmem:[%s723 + $0x1c] sm:$0xf] %v1801
        %1834 = vst [vmem:[%s723 + $0x20] sm:$0xf] %v1802
        %1835 = vst [vmem:[%s723 + $0x24] sm:$0xf] %v1803
        %1836 = vst [vmem:[%s723 + $0x28] sm:$0xf] %v1804
        %1837 = vst [vmem:[%s723 + $0x2c] sm:$0xf] %v1805
        %1838 = vst [vmem:[%s723 + $0x30] sm:$0xf] %v1806
        %1839 = vst [vmem:[%s723 + $0x34] sm:$0xf] %v1807
        %1840 = vst [vmem:[%s723 + $0x38] sm:$0xf] %v1808
        %1841 = vst [vmem:[%s723 + $0x3c] sm:$0xf] %v1809
        %1842 = vst [vmem:[%s723 + $0x40] sm:$0xf] %v1810
        %1843 = vst [vmem:[%s723 + $0x44] sm:$0xf] %v1811
        %1844 = vst [vmem:[%s723 + $0x48] sm:$0xf] %v1812
        %1845 = vst [vmem:[%s723 + $0x4c] sm:$0xf] %v1813
        %1846 = vst [vmem:[%s723 + $0x50] sm:$0xf] %v1814
        %1847 = vst [vmem:[%s723 + $0x54] sm:$0xf] %v1815
        %1848 = vst [vmem:[%s723 + $0x58] sm:$0xf] %v1816
        %1849 = vst [vmem:[%s723 + $0x5c] sm:$0xf] %v1817
        %1850 = vst [vmem:[%s723 + $0x60] sm:$0xf] %v1818
        %1851 = vst [vmem:[%s723 + $0x64] sm:$0xf] %v1819
        %1852 = vst [vmem:[%s723 + $0x68] sm:$0xf] %v1820
        %1853 = vst [vmem:[%s723 + $0x6c] sm:$0xf] %v1821
        %1854 = vst [vmem:[%s723 + $0x70] sm:$0xf] %v1822
        %1855 = vst [vmem:[%s723 + $0x74] sm:$0xf] %v1823
        %1856 = vst [vmem:[%s723 + $0x78] sm:$0xf] %v1824
        %1857 = vst [vmem:[%s723 + $0x7c] sm:$0xf] %v1825
        %s1858 = smul.u32 32, %s14
        %p1859 = scmp.lt.s32.totalorder %s1858, 63
        %s1860 = scalar_select %p1859, %s1858, 63
        %s1861 = smul.addr %s1860, 4
        %s1862 = scalar_lea.vmem %s3, %s1861
        // Predicated region
        $region74: #{lenet5_forward.3} parent=68 // pred_check
          %p1863 = pneg %p100
        $region75: #{lenet5_forward.3} parent=68 // pred_check_branch
          %1865 = sbr.rel (%p1863) target = $region77
        $region76: #{lenet5_forward.3} parent=68 // pred_region
          %s1866 = smul.u32 32, %s14
        $region77: #{lenet5_forward.3} parent=68 // pred_fallthru
          _
      $region69: #{lenet5_forward.3} parent=5 // pred_fallthru
        _
      %p1867 = scmp.le.s32.totalorder 2, %s9
      // Predicated region
      $region78: #{lenet5_forward.3} parent=5 // pred_check
        %p1868 = pneg %p1867
      $region79: #{lenet5_forward.3} parent=5 // pred_check_branch
        %1870 = sbr.rel (%p1868) target = $region81
      $region80: #{lenet5_forward.3} parent=5 // pred_region
        %s1871 = ssub.s32 %s9, 2
        // Predicated region
        $region82: #{lenet5_forward.3} parent=80 // pred_check
          %p1872 = pneg %p106
        $region83: #{lenet5_forward.3} parent=80 // pred_check_branch
          %1874 = sbr.rel (%p1872) target = $region85
        $region84: #{lenet5_forward.3} parent=80 // pred_region
          %s1875 = smul.u32 32, %s15
          %p1876 = scmp.lt.s32.totalorder %s1875, 63
          %s1877 = scalar_select %p1876, %s1875, 63
          %s1878 = smul.addr %s1877, 4
          %s1879 = scalar_lea.vmem %s3, %s1878
        $region85: #{lenet5_forward.3} parent=80 // pred_fallthru
          _
      $region81: #{lenet5_forward.3} parent=5 // pred_fallthru
        _
    $region6: #{lenet5_forward.3} parent=1 // loop_footer
      %s13 = sadd.s32 1, %s9
    $region7: #{lenet5_forward.3} parent=1 // loop_footer_branch
      %8 = sbr.rel target = $region3
    $region8: #{lenet5_forward.3} parent=1 // loop_exit
      _

// kernel: lenet5_forward.4
$region0: #{lenet5_forward.4}
  #allocation0 [shape = 'u32[]', space=smem, size = 0x4, offset = 0x4, fixed_abs, tag = 'smem constant byte address 0x4 - core index']
  #allocation1 [shape = 'u32[72,128]{1,0:T(1,128)}', space=vmem, size = 0x9000, scoped, tag = 'internal scratch']
  %s0 = inlined_call_operand.vmem [shape: bf16[4,128,256], index: 0, kind: input, shape index: {}]
  %s1 = inlined_call_operand.vmem [shape: bf16[256,128], index: 1, kind: input, shape index: {}]
  %s2 = inlined_call_operand.vmem [shape: f32[1,128], index: 2, kind: input, shape index: {}]
  %s3 = inlined_call_operand.vmem [shape: bf16[128,128], index: 3, kind: output, shape index: {}]
  %s4 = sld [smem:[#allocation0]]
  $region83: #{lenet5_forward.4} parent=0
    _
  %s6 = ssub.s32 1, %s4
  %s7 = scalar_select 0, %s6, %s4
  $region1: #{lenet5_forward.4} parent=0
    #allocation2 [shape = 'u8[262144]{0}', space=vmem, size = 0x40000, scoped, tag = 'input window, operand 0']
    loop: start=0, step=1, limit=4
    $region2: #{lenet5_forward.4} parent=1 // loop_pre_header
      _
    $region3: #{lenet5_forward.4} parent=1 // loop_header
      %s9 = sphi 0, %s13
      %p10 = scmp.ge.s32.totalorder %s9, 4
      %s19 = sphi 0, %s21
      %s22 = sphi 0, %s19
      %s23 = sphi 0, %s22
      %s39 = sphi 0, %s23
      %s43 = sphi 0, %s43
      %s45 = sphi 0, %s43
      %s46 = sphi 0, %s45
      %s60 = sphi 0, %s46
      %s64 = sphi 0, %s64
      %s66 = sphi 0, %s64
      %s67 = sphi 0, %s66
      %s81 = sphi 0, %s67
      %s87 = sphi 0, %s89
      %s90 = sphi 0, %s87
      %s91 = sphi 0, %s90
      %s107 = sphi 0, %s91
    $region4: #{lenet5_forward.4} parent=1 // loop_header_branch
      %12 = sbr.rel (%p10) target = $region8
    $region5: #{lenet5_forward.4} parent=1 // loop_body
      %s14 = ssub.s32 %s9, 1
      %s15 = ssub.s32 %s9, 2
      %s16 = sadd.s32 %s9, 1
      %s17 = ssub.s32 %s9, %s16
      %p18 = scmp.eq.s32.totalorder %s17, 0
      %s20 = sadd.s32 %s19, 1
      %s21 = scalar_select %p18, %s19, %s20
      %p24 = pneg %p18
      %p25 = scmp.eq.s32.totalorder %s9, 1
      %p26 = por %p24, %p25
      %p27 = scmp.ne.s32.totalorder %s19, %s22
      %p28 = scmp.eq.s32.totalorder %s9, 0
      %p29 = por %p27, %p28
      %p30 = scmp.ne.s32.totalorder %s19, %s22
      %p31 = scmp.eq.s32.totalorder %s14, 1
      %p32 = por %p30, %p31
      %p33 = scmp.ne.s32.totalorder %s22, %s23
      %p34 = scmp.eq.s32.totalorder %s14, 0
      %p35 = por %p33, %p34
      %p36 = scmp.ne.s32.totalorder %s22, %s23
      %p37 = scmp.eq.s32.totalorder %s15, 1
      %p38 = por %p36, %p37
      %p40 = scmp.ne.s32.totalorder %s23, %s39
      %p41 = scmp.eq.s32.totalorder %s15, 0
      %p42 = por %p40, %p41
      %s44 = sadd.s32 %s43, 1
      %p47 = scmp.eq.s32.totalorder %s9, 1
      %p48 = scmp.ne.s32.totalorder %s43, %s45
      %p49 = scmp.eq.s32.totalorder %s9, 0
      %p50 = por %p48, %p49
      %p51 = scmp.ne.s32.totalorder %s43, %s45
      %p52 = scmp.eq.s32.totalorder %s14, 1
      %p53 = por %p51, %p52
      %p54 = scmp.ne.s32.totalorder %s45, %s46
      %p55 = scmp.eq.s32.totalorder %s14, 0
      %p56 = por %p54, %p55
      %p57 = scmp.ne.s32.totalorder %s45, %s46
      %p58 = scmp.eq.s32.totalorder %s15, 1
      %p59 = por %p57, %p58
      %p61 = scmp.ne.s32.totalorder %s46, %s60
      %p62 = scmp.eq.s32.totalorder %s15, 0
      %p63 = por %p61, %p62
      %s65 = sadd.s32 %s64, 1
      %p68 = scmp.eq.s32.totalorder %s9, 1
      %p69 = scmp.ne.s32.totalorder %s64, %s66
      %p70 = scmp.eq.s32.totalorder %s9, 0
      %p71 = por %p69, %p70
      %p72 = scmp.ne.s32.totalorder %s64, %s66
      %p73 = scmp.eq.s32.totalorder %s14, 1
      %p74 = por %p72, %p73
      %p75 = scmp.ne.s32.totalorder %s66, %s67
      %p76 = scmp.eq.s32.totalorder %s14, 0
      %p77 = por %p75, %p76
      %p78 = scmp.ne.s32.totalorder %s66, %s67
      %p79 = scmp.eq.s32.totalorder %s15, 1
      %p80 = por %p78, %p79
      %p82 = scmp.ne.s32.totalorder %s67, %s81
      %p83 = scmp.eq.s32.totalorder %s15, 0
      %p84 = por %p82, %p83
      %s85 = ssub.s32 %s9, %s16
      %p86 = scmp.eq.s32.totalorder %s85, 0
      %s88 = sadd.s32 %s87, 1
      %s89 = scalar_select %p86, %s87, %s88
      %p92 = pneg %p86
      %p93 = scmp.eq.s32.totalorder %s9, 1
      %p94 = por %p92, %p93
      %p95 = scmp.ne.s32.totalorder %s87, %s90
      %p96 = scmp.eq.s32.totalorder %s9, 0
      %p97 = por %p95, %p96
      %p98 = scmp.ne.s32.totalorder %s87, %s90
      %p99 = scmp.eq.s32.totalorder %s14, 1
      %p100 = por %p98, %p99
      %p101 = scmp.ne.s32.totalorder %s90, %s91
      %p102 = scmp.eq.s32.totalorder %s14, 0
      %p103 = por %p101, %p102
      %p104 = scmp.ne.s32.totalorder %s90, %s91
      %p105 = scmp.eq.s32.totalorder %s15, 1
      %p106 = por %p104, %p105
      %p108 = scmp.ne.s32.totalorder %s91, %s107
      %p109 = scmp.eq.s32.totalorder %s15, 0
      %p110 = por %p108, %p109
      %p111 = scmp.le.s32.totalorder 1, %s9
      %p112 = scmp.lt.s32.totalorder %s9, 3
      %p113 = pnand %p111, %p112
      %p114 = pneg %p113
      // Predicated region
      $region9: #{lenet5_forward.4} parent=5 // pred_check
        _
      $region10: #{lenet5_forward.4} parent=5 // pred_check_branch
        %116 = sbr.rel (%p113) target = $region12
      $region11: #{lenet5_forward.4} parent=5 // pred_region
        %s117 = ssub.s32 %s9, 1
        // Predicated region
        $region13: #{lenet5_forward.4} parent=11 // pred_check
          %p118 = pneg %p56
        $region14: #{lenet5_forward.4} parent=11 // pred_check_branch
          %120 = sbr.rel (%p118) target = $region16
        $region15: #{lenet5_forward.4} parent=11 // pred_region
          _
        $region16: #{lenet5_forward.4} parent=11 // pred_fallthru
          _
        // Predicated region
        $region17: #{lenet5_forward.4} parent=11 // pred_check
          %p121 = pneg %p77
        $region18: #{lenet5_forward.4} parent=11 // pred_check_branch
          %123 = sbr.rel (%p121) target = $region20
        $region19: #{lenet5_forward.4} parent=11 // pred_region
          _
        $region20: #{lenet5_forward.4} parent=11 // pred_fallthru
          _
      $region12: #{lenet5_forward.4} parent=5 // pred_fallthru
        _
      %p124 = scmp.lt.s32.totalorder %s9, 2
      // Predicated region
      $region21: #{lenet5_forward.4} parent=5 // pred_check
        %p125 = pneg %p124
      $region22: #{lenet5_forward.4} parent=5 // pred_check_branch
        %127 = sbr.rel (%p125) target = $region24
      $region23: #{lenet5_forward.4} parent=5 // pred_region
        // Predicated region
        $region25: #{lenet5_forward.4} parent=23 // pred_check
          %p128 = pneg %p29
        $region26: #{lenet5_forward.4} parent=23 // pred_check_branch
          %130 = sbr.rel (%p128) target = $region28
        $region27: #{lenet5_forward.4} parent=23 // pred_region
          %s131 = sand.u32 %s19, 1
          %s132 = sand.u32 %s19, 1
          %s133 = smul.addr %s132, 256
          %s134 = scalar_lea.vmem [#allocation2], %s133
          %s135 = smul.u32 8, %s9
          %s136 = smul.addr %s135, 2
          %s137 = smul.addr %s136, 4
          %s138 = scalar_lea.vmem %s0, %s137
          // Predicated region
          $region29: #{lenet5_forward.4} parent=27 // pred_check
            _
          $region30: #{lenet5_forward.4} parent=27 // pred_check_branch
            %140 = sbr.rel (0) target = $region32
          $region31: #{lenet5_forward.4} parent=27 // pred_region
            // Predicated region
            $region33: #{lenet5_forward.4} parent=31 // pred_check
              _
            $region34: #{lenet5_forward.4} parent=31 // pred_check_branch
              %142 = sbr.rel (0) target = $region36
            $region35: #{lenet5_forward.4} parent=31 // pred_region
              // Predicated region
              $region48: #{lenet5_forward.4} parent=35 // pred_check
                _
              $region49: #{lenet5_forward.4} parent=35 // pred_check_branch
                %220 = sbr.rel (0) target = $region51
              $region50: #{lenet5_forward.4} parent=35 // pred_region
                loop: start=0, step=1, limit=1
                $region52: #{lenet5_forward.4} parent=50 // loop_pre_header
                  _
                $region53: #{lenet5_forward.4} parent=50 // loop_header
                  %s222 = sphi 0, %s226
                  %p223 = scmp.ge.s32.totalorder %s222, 1
                  %s227 = sphi %s138, %s138
                  %s228 = sphi %s134, %s134
                $region54: #{lenet5_forward.4} parent=50 // loop_header_branch
                  %225 = sbr.rel (%p223) target = $region58
                $region55: #{lenet5_forward.4} parent=50 // loop_body
                  %v229 = vld [vmem:[%s227] sm:$0xff]
                  %230 = vst [vmem:[%s228] sm:$0xff] %v229
                  %v231 = vld [vmem:[%s227 + $0x8] sm:$0xff]
                  %232 = vst [vmem:[%s228 + $0x8] sm:$0xff] %v231
                  %v233 = vld [vmem:[%s227 + $0x10] sm:$0xff]
                  %234 = vst [vmem:[%s228 + $0x10] sm:$0xff] %v233
                  %v235 = vld [vmem:[%s227 + $0x18] sm:$0xff]
                  %236 = vst [vmem:[%s228 + $0x18] sm:$0xff] %v235
                  %v237 = vld [vmem:[%s227 + $0x20] sm:$0xff]
                  %238 = vst [vmem:[%s228 + $0x20] sm:$0xff] %v237
                  %v239 = vld [vmem:[%s227 + $0x28] sm:$0xff]
                  %240 = vst [vmem:[%s228 + $0x28] sm:$0xff] %v239
                  %v241 = vld [vmem:[%s227 + $0x30] sm:$0xff]
                  %242 = vst [vmem:[%s228 + $0x30] sm:$0xff] %v241
                  %v243 = vld [vmem:[%s227 + $0x38] sm:$0xff]
                  %244 = vst [vmem:[%s228 + $0x38] sm:$0xff] %v243
                  %v245 = vld [vmem:[%s227 + $0x80] sm:$0xff]
                  %246 = vst [vmem:[%s228 + $0x40] sm:$0xff] %v245
                  %v247 = vld [vmem:[%s227 + $0x88] sm:$0xff]
                  %248 = vst [vmem:[%s228 + $0x48] sm:$0xff] %v247
                  %v249 = vld [vmem:[%s227 + $0x90] sm:$0xff]
                  %250 = vst [vmem:[%s228 + $0x50] sm:$0xff] %v249
                  %v251 = vld [vmem:[%s227 + $0x98] sm:$0xff]
                  %252 = vst [vmem:[%s228 + $0x58] sm:$0xff] %v251
                  %v253 = vld [vmem:[%s227 + $0xa0] sm:$0xff]
                  %254 = vst [vmem:[%s228 + $0x60] sm:$0xff] %v253
                  %v255 = vld [vmem:[%s227 + $0xa8] sm:$0xff]
                  %256 = vst [vmem:[%s228 + $0x68] sm:$0xff] %v255
                  %v257 = vld [vmem:[%s227 + $0xb0] sm:$0xff]
                  %258 = vst [vmem:[%s228 + $0x70] sm:$0xff] %v257
                  %v259 = vld [vmem:[%s227 + $0xb8] sm:$0xff]
                  %260 = vst [vmem:[%s228 + $0x78] sm:$0xff] %v259
                  %v261 = vld [vmem:[%s227 + $0x100] sm:$0xff]
                  %262 = vst [vmem:[%s228 + $0x80] sm:$0xff] %v261
                  %v263 = vld [vmem:[%s227 + $0x108] sm:$0xff]
                  %264 = vst [vmem:[%s228 + $0x88] sm:$0xff] %v263
                  %v265 = vld [vmem:[%s227 + $0x110] sm:$0xff]
                  %266 = vst [vmem:[%s228 + $0x90] sm:$0xff] %v265
                  %v267 = vld [vmem:[%s227 + $0x118] sm:$0xff]
                  %268 = vst [vmem:[%s228 + $0x98] sm:$0xff] %v267
                  %v269 = vld [vmem:[%s227 + $0x120] sm:$0xff]
                  %270 = vst [vmem:[%s228 + $0xa0] sm:$0xff] %v269
                  %v271 = vld [vmem:[%s227 + $0x128] sm:$0xff]
                  %272 = vst [vmem:[%s228 + $0xa8] sm:$0xff] %v271
                  %v273 = vld [vmem:[%s227 + $0x130] sm:$0xff]
                  %274 = vst [vmem:[%s228 + $0xb0] sm:$0xff] %v273
                  %v275 = vld [vmem:[%s227 + $0x138] sm:$0xff]
                  %276 = vst [vmem:[%s228 + $0xb8] sm:$0xff] %v275
                  %v277 = vld [vmem:[%s227 + $0x180] sm:$0xff]
                  %278 = vst [vmem:[%s228 + $0xc0] sm:$0xff] %v277
                  %v279 = vld [vmem:[%s227 + $0x188] sm:$0xff]
                  %280 = vst [vmem:[%s228 + $0xc8] sm:$0xff] %v279
                  %v281 = vld [vmem:[%s227 + $0x190] sm:$0xff]
                  %282 = vst [vmem:[%s228 + $0xd0] sm:$0xff] %v281
                  %v283 = vld [vmem:[%s227 + $0x198] sm:$0xff]
                  %284 = vst [vmem:[%s228 + $0xd8] sm:$0xff] %v283
                  %v285 = vld [vmem:[%s227 + $0x1a0] sm:$0xff]
                  %286 = vst [vmem:[%s228 + $0xe0] sm:$0xff] %v285
                  %v287 = vld [vmem:[%s227 + $0x1a8] sm:$0xff]
                  %288 = vst [vmem:[%s228 + $0xe8] sm:$0xff] %v287
                  %v289 = vld [vmem:[%s227 + $0x1b0] sm:$0xff]
                  %290 = vst [vmem:[%s228 + $0xf0] sm:$0xff] %v289
                  %v291 = vld [vmem:[%s227 + $0x1b8] sm:$0xff]
                  %292 = vst [vmem:[%s228 + $0xf8] sm:$0xff] %v291
                $region56: #{lenet5_forward.4} parent=50 // loop_footer
                  %s226 = sadd.s32 1, %s222
                $region57: #{lenet5_forward.4} parent=50 // loop_footer_branch
                  %221 = sbr.rel target = $region53
                $region58: #{lenet5_forward.4} parent=50 // loop_exit
                  _
              $region51: #{lenet5_forward.4} parent=35 // pred_fallthru
                _
              // Predicated region
              $region59: #{lenet5_forward.4} parent=35 // pred_check
                _
              $region60: #{lenet5_forward.4} parent=35 // pred_check_branch
                %294 = sbr.rel target = $region62
              $region61: #{lenet5_forward.4} parent=35 // pred_region
                _
              $region62: #{lenet5_forward.4} parent=35 // pred_fallthru
                _
            $region36: #{lenet5_forward.4} parent=31 // pred_fallthru
              _
            // Predicated region
            $region37: #{lenet5_forward.4} parent=31 // pred_check
              _
            $region38: #{lenet5_forward.4} parent=31 // pred_check_branch
              %144 = sbr.rel target = $region40
            $region39: #{lenet5_forward.4} parent=31 // pred_region
              %s146 = ssub.s32 256, 1
              loop: start=0, step=1, limit=1
              $region41: #{lenet5_forward.4} parent=39 // loop_pre_header
                _
              $region42: #{lenet5_forward.4} parent=39 // loop_header
                %s148 = sphi 0, %s152
                %p149 = scmp.ge.s32.totalorder %s148, 1
                %s153 = sphi %s138, %s138
                %s154 = sphi %s134, %s134
              $region43: #{lenet5_forward.4} parent=39 // loop_header_branch
                %151 = sbr.rel (%p149) target = $region47
              $region44: #{lenet5_forward.4} parent=39 // loop_body
                %v155 = vld [vmem:[%s153] sm:%s146]
                %156 = vst [vmem:[%s154] sm:%s146] %v155
                %v157 = vld [vmem:[%s153 + $0x8] sm:%s146]
                %158 = vst [vmem:[%s154 + $0x8] sm:%s146] %v157
                %v159 = vld [vmem:[%s153 + $0x10] sm:%s146]
                %160 = vst [vmem:[%s154 + $0x10] sm:%s146] %v159
                %v161 = vld [vmem:[%s153 + $0x18] sm:%s146]
                %162 = vst [vmem:[%s154 + $0x18] sm:%s146] %v161
                %v163 = vld [vmem:[%s153 + $0x20] sm:%s146]
                %164 = vst [vmem:[%s154 + $0x20] sm:%s146] %v163
                %v165 = vld [vmem:[%s153 + $0x28] sm:%s146]
                %166 = vst [vmem:[%s154 + $0x28] sm:%s146] %v165
                %v167 = vld [vmem:[%s153 + $0x30] sm:%s146]
                %168 = vst [vmem:[%s154 + $0x30] sm:%s146] %v167
                %v169 = vld [vmem:[%s153 + $0x38] sm:%s146]
                %170 = vst [vmem:[%s154 + $0x38] sm:%s146] %v169
                %v171 = vld [vmem:[%s153 + $0x80] sm:%s146]
                %172 = vst [vmem:[%s154 + $0x40] sm:%s146] %v171
                %v173 = vld [vmem:[%s153 + $0x88] sm:%s146]
                %174 = vst [vmem:[%s154 + $0x48] sm:%s146] %v173
                %v175 = vld [vmem:[%s153 + $0x90] sm:%s146]
                %176 = vst [vmem:[%s154 + $0x50] sm:%s146] %v175
                %v177 = vld [vmem:[%s153 + $0x98] sm:%s146]
                %178 = vst [vmem:[%s154 + $0x58] sm:%s146] %v177
                %v179 = vld [vmem:[%s153 + $0xa0] sm:%s146]
                %180 = vst [vmem:[%s154 + $0x60] sm:%s146] %v179
                %v181 = vld [vmem:[%s153 + $0xa8] sm:%s146]
                %182 = vst [vmem:[%s154 + $0x68] sm:%s146] %v181
                %v183 = vld [vmem:[%s153 + $0xb0] sm:%s146]
                %184 = vst [vmem:[%s154 + $0x70] sm:%s146] %v183
                %v185 = vld [vmem:[%s153 + $0xb8] sm:%s146]
                %186 = vst [vmem:[%s154 + $0x78] sm:%s146] %v185
                %v187 = vld [vmem:[%s153 + $0x100] sm:%s146]
                %188 = vst [vmem:[%s154 + $0x80] sm:%s146] %v187
                %v189 = vld [vmem:[%s153 + $0x108] sm:%s146]
                %190 = vst [vmem:[%s154 + $0x88] sm:%s146] %v189
                %v191 = vld [vmem:[%s153 + $0x110] sm:%s146]
                %192 = vst [vmem:[%s154 + $0x90] sm:%s146] %v191
                %v193 = vld [vmem:[%s153 + $0x118] sm:%s146]
                %194 = vst [vmem:[%s154 + $0x98] sm:%s146] %v193
                %v195 = vld [vmem:[%s153 + $0x120] sm:%s146]
                %196 = vst [vmem:[%s154 + $0xa0] sm:%s146] %v195
                %v197 = vld [vmem:[%s153 + $0x128] sm:%s146]
                %198 = vst [vmem:[%s154 + $0xa8] sm:%s146] %v197
                %v199 = vld [vmem:[%s153 + $0x130] sm:%s146]
                %200 = vst [vmem:[%s154 + $0xb0] sm:%s146] %v199
                %v201 = vld [vmem:[%s153 + $0x138] sm:%s146]
                %202 = vst [vmem:[%s154 + $0xb8] sm:%s146] %v201
                %v203 = vld [vmem:[%s153 + $0x180] sm:%s146]
                %204 = vst [vmem:[%s154 + $0xc0] sm:%s146] %v203
                %v205 = vld [vmem:[%s153 + $0x188] sm:%s146]
                %206 = vst [vmem:[%s154 + $0xc8] sm:%s146] %v205
                %v207 = vld [vmem:[%s153 + $0x190] sm:%s146]
                %208 = vst [vmem:[%s154 + $0xd0] sm:%s146] %v207
                %v209 = vld [vmem:[%s153 + $0x198] sm:%s146]
                %210 = vst [vmem:[%s154 + $0xd8] sm:%s146] %v209
                %v211 = vld [vmem:[%s153 + $0x1a0] sm:%s146]
                %212 = vst [vmem:[%s154 + $0xe0] sm:%s146] %v211
                %v213 = vld [vmem:[%s153 + $0x1a8] sm:%s146]
                %214 = vst [vmem:[%s154 + $0xe8] sm:%s146] %v213
                %v215 = vld [vmem:[%s153 + $0x1b0] sm:%s146]
                %216 = vst [vmem:[%s154 + $0xf0] sm:%s146] %v215
                %v217 = vld [vmem:[%s153 + $0x1b8] sm:%s146]
                %218 = vst [vmem:[%s154 + $0xf8] sm:%s146] %v217
              $region45: #{lenet5_forward.4} parent=39 // loop_footer
                %s152 = sadd.s32 1, %s148
              $region46: #{lenet5_forward.4} parent=39 // loop_footer_branch
                %147 = sbr.rel target = $region42
              $region47: #{lenet5_forward.4} parent=39 // loop_exit
                _
            $region40: #{lenet5_forward.4} parent=31 // pred_fallthru
              _
          $region32: #{lenet5_forward.4} parent=27 // pred_fallthru
            _
          %295 = vnop
        $region28: #{lenet5_forward.4} parent=23 // pred_fallthru
          _
      $region24: #{lenet5_forward.4} parent=5 // pred_fallthru
        _
      %p296 = scmp.le.s32.totalorder 1, %s9
      %p297 = scmp.lt.s32.totalorder %s9, 3
      %p298 = pnand %p296, %p297
      %p299 = pneg %p298
      // Predicated region
      $region63: #{lenet5_forward.4} parent=5 // pred_check
        _
      $region64: #{lenet5_forward.4} parent=5 // pred_check_branch
        %301 = sbr.rel (%p298) target = $region66
      $region65: #{lenet5_forward.4} parent=5 // pred_region
        %s302 = ssub.s32 %s9, 1
        %s303 = sand.u32 %s22, 1
        %s304 = sand.u32 %s22, 1
        %s305 = smul.addr %s304, 256
        %s306 = scalar_lea.vmem [#allocation2], %s305
        // Predicated region
        $region67: #{lenet5_forward.4} parent=65 // pred_check
          %p307 = pneg %p35
        $region68: #{lenet5_forward.4} parent=65 // pred_check_branch
          %309 = sbr.rel (%p307) target = $region70
        $region69: #{lenet5_forward.4} parent=65 // pred_region
          _
        $region70: #{lenet5_forward.4} parent=65 // pred_fallthru
          _
        %s310 = sand.u32 %s22, 1
        %s311 = sand.u32 %s22, 1
        %s312 = smul.addr %s311, 256
        %s313 = scalar_lea.vmem [#allocation2], %s312
        %p314 = pneg %p35
        %p315 = pneg %p32
        %p316 = pneg %p56
        %p317 = pneg %p53
        %p318 = pneg %p77
        %p319 = pneg %p74
        %p320 = pneg %p103
        %p321 = pneg %p100
        %s322 = smul.u32 8, %s14
        %p323 = scmp.lt.s32.totalorder %s322, 15
        %s324 = scalar_select %p323, %s322, 15
        %s325 = smul.addr %s324, 4
        %s326 = scalar_lea.vmem %s3, %s325
        %s327 = smul.u32 8, %s14
        %s328 = smul.u32 8, %s14
        %p329 = scmp.lt.s32.totalorder %s328, 15
        %s330 = scalar_select %p329, %s328, 15
        %s331 = smul.addr %s330, 4
        %s332 = scalar_lea.vmem %s3, %s331
        %s333 = smul.u32 8, %s14
        %v334 = vld [vmem:[%s306] sm:$0xff]
        %v335 = vld [vmem:[%s306 + $0x8] sm:$0xff]
        %v336 = vld [vmem:[%s306 + $0x10] sm:$0xff]
        %v337 = vld [vmem:[%s306 + $0x18] sm:$0xff]
        %v338 = vld [vmem:[%s306 + $0x20] sm:$0xff]
        %v339 = vld [vmem:[%s306 + $0x28] sm:$0xff]
        %v340 = vld [vmem:[%s306 + $0x30] sm:$0xff]
        %v341 = vld [vmem:[%s306 + $0x38] sm:$0xff]
        %v342 = vld [vmem:[%s306 + $0x40] sm:$0xff]
        %v343 = vld [vmem:[%s306 + $0x48] sm:$0xff]
        %v344 = vld [vmem:[%s306 + $0x50] sm:$0xff]
        %v345 = vld [vmem:[%s306 + $0x58] sm:$0xff]
        %v346 = vld [vmem:[%s306 + $0x60] sm:$0xff]
        %v347 = vld [vmem:[%s306 + $0x68] sm:$0xff]
        %v348 = vld [vmem:[%s306 + $0x70] sm:$0xff]
        %v349 = vld [vmem:[%s306 + $0x78] sm:$0xff]
        %v350 = vld [vmem:[%s306 + $0x80] sm:$0xff]
        %v351 = vld [vmem:[%s306 + $0x88] sm:$0xff]
        %v352 = vld [vmem:[%s306 + $0x90] sm:$0xff]
        %v353 = vld [vmem:[%s306 + $0x98] sm:$0xff]
        %v354 = vld [vmem:[%s306 + $0xa0] sm:$0xff]
        %v355 = vld [vmem:[%s306 + $0xa8] sm:$0xff]
        %v356 = vld [vmem:[%s306 + $0xb0] sm:$0xff]
        %v357 = vld [vmem:[%s306 + $0xb8] sm:$0xff]
        %v358 = vld [vmem:[%s306 + $0xc0] sm:$0xff]
        %v359 = vld [vmem:[%s306 + $0xc8] sm:$0xff]
        %v360 = vld [vmem:[%s306 + $0xd0] sm:$0xff]
        %v361 = vld [vmem:[%s306 + $0xd8] sm:$0xff]
        %v362 = vld [vmem:[%s306 + $0xe0] sm:$0xff]
        %v363 = vld [vmem:[%s306 + $0xe8] sm:$0xff]
        %v364 = vld [vmem:[%s306 + $0xf0] sm:$0xff]
        %v365 = vld [vmem:[%s306 + $0xf8] sm:$0xff]
        %v366 = vld [vmem:[%s1] sm:$0xf]
        %v367 = vld [vmem:[%s1 + $0x4] sm:$0xf]
        %v368 = vld [vmem:[%s1 + $0x8] sm:$0xf]
        %v369 = vld [vmem:[%s1 + $0xc] sm:$0xf]
        %v370 = vld [vmem:[%s1 + $0x10] sm:$0xf]
        %v371 = vld [vmem:[%s1 + $0x14] sm:$0xf]
        %v372 = vld [vmem:[%s1 + $0x18] sm:$0xf]
        %v373 = vld [vmem:[%s1 + $0x1c] sm:$0xf]
        %v374 = vld [vmem:[%s1 + $0x20] sm:$0xf]
        %v375 = vld [vmem:[%s1 + $0x24] sm:$0xf]
        %v376 = vld [vmem:[%s1 + $0x28] sm:$0xf]
        %v377 = vld [vmem:[%s1 + $0x2c] sm:$0xf]
        %v378 = vld [vmem:[%s1 + $0x30] sm:$0xf]
        %v379 = vld [vmem:[%s1 + $0x34] sm:$0xf]
        %v380 = vld [vmem:[%s1 + $0x38] sm:$0xf]
        %v381 = vld [vmem:[%s1 + $0x3c] sm:$0xf]
        %v382 = vld [vmem:[%s1 + $0x40] sm:$0xf]
        %v383 = vld [vmem:[%s1 + $0x44] sm:$0xf]
        %v384 = vld [vmem:[%s1 + $0x48] sm:$0xf]
        %v385 = vld [vmem:[%s1 + $0x4c] sm:$0xf]
        %v386 = vld [vmem:[%s1 + $0x50] sm:$0xf]
        %v387 = vld [vmem:[%s1 + $0x54] sm:$0xf]
        %v388 = vld [vmem:[%s1 + $0x58] sm:$0xf]
        %v389 = vld [vmem:[%s1 + $0x5c] sm:$0xf]
        %v390 = vld [vmem:[%s1 + $0x60] sm:$0xf]
        %v391 = vld [vmem:[%s1 + $0x64] sm:$0xf]
        %v392 = vld [vmem:[%s1 + $0x68] sm:$0xf]
        %v393 = vld [vmem:[%s1 + $0x6c] sm:$0xf]
        %v394 = vld [vmem:[%s1 + $0x70] sm:$0xf]
        %v395 = vld [vmem:[%s1 + $0x74] sm:$0xf]
        %v396 = vld [vmem:[%s1 + $0x78] sm:$0xf]
        %v397 = vld [vmem:[%s1 + $0x7c] sm:$0xf]
        %v430 = vunpack.c.l.b16 %v334
        %v431 = vunpack.c.h.b16 %v334
        %v432 = vunpack.c.l.b16 %v335
        %v433 = vunpack.c.h.b16 %v335
        %v434 = vunpack.c.l.b16 %v336
        %v435 = vunpack.c.h.b16 %v336
        %v436 = vunpack.c.l.b16 %v337
        %v437 = vunpack.c.h.b16 %v337
        %v438 = vunpack.c.l.b16 %v338
        %v439 = vunpack.c.h.b16 %v338
        %v440 = vunpack.c.l.b16 %v339
        %v441 = vunpack.c.h.b16 %v339
        %v442 = vunpack.c.l.b16 %v340
        %v443 = vunpack.c.h.b16 %v340
        %v444 = vunpack.c.l.b16 %v341
        %v445 = vunpack.c.h.b16 %v341
        %v446 = vunpack.c.l.b16 %v342
        %v447 = vunpack.c.h.b16 %v342
        %v448 = vunpack.c.l.b16 %v343
        %v449 = vunpack.c.h.b16 %v343
        %v450 = vunpack.c.l.b16 %v344
        %v451 = vunpack.c.h.b16 %v344
        %v452 = vunpack.c.l.b16 %v345
        %v453 = vunpack.c.h.b16 %v345
        %v454 = vunpack.c.l.b16 %v346
        %v455 = vunpack.c.h.b16 %v346
        %v456 = vunpack.c.l.b16 %v347
        %v457 = vunpack.c.h.b16 %v347
        %v458 = vunpack.c.l.b16 %v348
        %v459 = vunpack.c.h.b16 %v348
        %v460 = vunpack.c.l.b16 %v349
        %v461 = vunpack.c.h.b16 %v349
        %v462 = vunpack.c.l.b16 %v350
        %v463 = vunpack.c.h.b16 %v350
        %v464 = vunpack.c.l.b16 %v351
        %v465 = vunpack.c.h.b16 %v351
        %v466 = vunpack.c.l.b16 %v352
        %v467 = vunpack.c.h.b16 %v352
        %v468 = vunpack.c.l.b16 %v353
        %v469 = vunpack.c.h.b16 %v353
        %v470 = vunpack.c.l.b16 %v354
        %v471 = vunpack.c.h.b16 %v354
        %v472 = vunpack.c.l.b16 %v355
        %v473 = vunpack.c.h.b16 %v355
        %v474 = vunpack.c.l.b16 %v356
        %v475 = vunpack.c.h.b16 %v356
        %v476 = vunpack.c.l.b16 %v357
        %v477 = vunpack.c.h.b16 %v357
        %v478 = vunpack.c.l.b16 %v358
        %v479 = vunpack.c.h.b16 %v358
        %v480 = vunpack.c.l.b16 %v359
        %v481 = vunpack.c.h.b16 %v359
        %v482 = vunpack.c.l.b16 %v360
        %v483 = vunpack.c.h.b16 %v360
        %v484 = vunpack.c.l.b16 %v361
        %v485 = vunpack.c.h.b16 %v361
        %v486 = vunpack.c.l.b16 %v362
        %v487 = vunpack.c.h.b16 %v362
        %v488 = vunpack.c.l.b16 %v363
        %v489 = vunpack.c.h.b16 %v363
        %v490 = vunpack.c.l.b16 %v364
        %v491 = vunpack.c.h.b16 %v364
        %v492 = vunpack.c.l.b16 %v365
        %v493 = vunpack.c.h.b16 %v365
        %v494 = vpack.c.b16 %v432, %v430
        %v495 = vpack.c.b16 %v433, %v431
        %v496 = vpack.c.b16 %v436, %v434
        %v497 = vpack.c.b16 %v437, %v435
        %v498 = vpack.c.b16 %v440, %v438
        %v499 = vpack.c.b16 %v441, %v439
        %v500 = vpack.c.b16 %v444, %v442
        %v501 = vpack.c.b16 %v445, %v443
        %v502 = vpack.c.b16 %v448, %v446
        %v503 = vpack.c.b16 %v449, %v447
        %v504 = vpack.c.b16 %v452, %v450
        %v505 = vpack.c.b16 %v453, %v451
        %v506 = vpack.c.b16 %v456, %v454
        %v507 = vpack.c.b16 %v457, %v455
        %v508 = vpack.c.b16 %v460, %v458
        %v509 = vpack.c.b16 %v461, %v459
        %v510 = vpack.c.b16 %v464, %v462
        %v511 = vpack.c.b16 %v465, %v463
        %v512 = vpack.c.b16 %v468, %v466
        %v513 = vpack.c.b16 %v469, %v467
        %v514 = vpack.c.b16 %v472, %v470
        %v515 = vpack.c.b16 %v473, %v471
        %v516 = vpack.c.b16 %v476, %v474
        %v517 = vpack.c.b16 %v477, %v475
        %v518 = vpack.c.b16 %v480, %v478
        %v519 = vpack.c.b16 %v481, %v479
        %v520 = vpack.c.b16 %v484, %v482
        %v521 = vpack.c.b16 %v485, %v483
        %v522 = vpack.c.b16 %v488, %v486
        %v523 = vpack.c.b16 %v489, %v487
        %v524 = vpack.c.b16 %v492, %v490
        %v525 = vpack.c.b16 %v493, %v491
        %v590 = vunpack.c.l.b16 %v366
        %v591 = vunpack.c.l.b16 %v367
        %v592 = vunpack.c.l.b16 %v368
        %v593 = vunpack.c.l.b16 %v369
        %v594 = vunpack.c.l.b16 %v370
        %v595 = vunpack.c.l.b16 %v371
        %v596 = vunpack.c.l.b16 %v372
        %v597 = vunpack.c.l.b16 %v373
        %v598 = vunpack.c.l.b16 %v374
        %v599 = vunpack.c.l.b16 %v375
        %v600 = vunpack.c.l.b16 %v376
        %v601 = vunpack.c.l.b16 %v377
        %v602 = vunpack.c.l.b16 %v378
        %v603 = vunpack.c.l.b16 %v379
        %v604 = vunpack.c.l.b16 %v380
        %v605 = vunpack.c.l.b16 %v381
        %v606 = vunpack.c.l.b16 %v382
        %v607 = vunpack.c.l.b16 %v383
        %v608 = vunpack.c.l.b16 %v384
        %v609 = vunpack.c.l.b16 %v385
        %v610 = vunpack.c.l.b16 %v386
        %v611 = vunpack.c.l.b16 %v387
        %v612 = vunpack.c.l.b16 %v388
        %v613 = vunpack.c.l.b16 %v389
        %v614 = vunpack.c.l.b16 %v390
        %v615 = vunpack.c.l.b16 %v391
        %v616 = vunpack.c.l.b16 %v392
        %v617 = vunpack.c.l.b16 %v393
        %v618 = vunpack.c.l.b16 %v394
        %v619 = vunpack.c.l.b16 %v395
        %v620 = vunpack.c.l.b16 %v396
        %v621 = vunpack.c.l.b16 %v397
        %v622 = vpack.c.b16 %v591, %v590
        %v623 = vpack.c.b16 %v593, %v592
        %v624 = vpack.c.b16 %v595, %v594
        %v625 = vpack.c.b16 %v597, %v596
        %v626 = vpack.c.b16 %v599, %v598
        %v627 = vpack.c.b16 %v601, %v600
        %v628 = vpack.c.b16 %v603, %v602
        %v629 = vpack.c.b16 %v605, %v604
        %v630 = vpack.c.b16 %v607, %v606
        %v631 = vpack.c.b16 %v609, %v608
        %v632 = vpack.c.b16 %v611, %v610
        %v633 = vpack.c.b16 %v613, %v612
        %v634 = vpack.c.b16 %v615, %v614
        %v635 = vpack.c.b16 %v617, %v616
        %v636 = vpack.c.b16 %v619, %v618
        %v637 = vpack.c.b16 %v621, %v620
        %654 = vmatpush.bf16.msra.mxu0 %v629
        %655 = vmatpush.bf16.msra.mxu0 %v628
        %656 = vmatpush.bf16.msra.mxu0 %v627
        %657 = vmatpush.bf16.msra.mxu0 %v626
        %658 = vmatpush.bf16.msra.mxu0 %v625
        %659 = vmatpush.bf16.msra.mxu0 %v624
        %660 = vmatpush.bf16.msra.mxu0 %v623
        %661 = vmatpush.bf16.msra.mxu0 %v622
        %662 = vmatmul.bf16.gmra.mxu0 %v494
        %v663 = vpop.f32.mrf.mxu0
        %v664 = vadd.f32 0.0, %v663
        %v665 = vpop.f32.mrf.mxu0
        %v666 = vadd.f32 0.0, %v665
        %667 = vmatmul.bf16.gmra.mxu0 %v496
        %v668 = vpop.f32.mrf.mxu0
        %v669 = vadd.f32 0.0, %v668
        %v670 = vpop.f32.mrf.mxu0
        %v671 = vadd.f32 0.0, %v670
        %672 = vmatmul.bf16.gmra.mxu0 %v498
        %v673 = vpop.f32.mrf.mxu0
        %v674 = vadd.f32 0.0, %v673
        %v675 = vpop.f32.mrf.mxu0
        %v676 = vadd.f32 0.0, %v675
        %677 = vmatmul.bf16.gmra.mxu0 %v500
        %v678 = vpop.f32.mrf.mxu0
        %v679 = vadd.f32 0.0, %v678
        %v680 = vpop.f32.mrf.mxu0
        %v681 = vadd.f32 0.0, %v680
        %682 = vmatmul.bf16.gmra.mxu0 %v502
        %v683 = vpop.f32.mrf.mxu0
        %v684 = vadd.f32 0.0, %v683
        %v685 = vpop.f32.mrf.mxu0
        %v686 = vadd.f32 0.0, %v685
        %687 = vmatmul.bf16.gmra.mxu0 %v504
        %v688 = vpop.f32.mrf.mxu0
        %v689 = vadd.f32 0.0, %v688
        %v690 = vpop.f32.mrf.mxu0
        %v691 = vadd.f32 0.0, %v690
        %692 = vmatmul.bf16.gmra.mxu0 %v506
        %v693 = vpop.f32.mrf.mxu0
        %v694 = vadd.f32 0.0, %v693
        %v695 = vpop.f32.mrf.mxu0
        %v696 = vadd.f32 0.0, %v695
        %697 = vmatmul.bf16.gmra.mxu0 %v508
        %v698 = vpop.f32.mrf.mxu0
        %v699 = vadd.f32 0.0, %v698
        %v700 = vpop.f32.mrf.mxu0
        %v701 = vadd.f32 0.0, %v700
        %702 = vmatmul.bf16.gmra.mxu0 %v510
        %v703 = vpop.f32.mrf.mxu0
        %v704 = vadd.f32 0.0, %v703
        %v705 = vpop.f32.mrf.mxu0
        %v706 = vadd.f32 0.0, %v705
        %707 = vmatmul.bf16.gmra.mxu0 %v512
        %v708 = vpop.f32.mrf.mxu0
        %v709 = vadd.f32 0.0, %v708
        %v710 = vpop.f32.mrf.mxu0
        %v711 = vadd.f32 0.0, %v710
        %712 = vmatmul.bf16.gmra.mxu0 %v514
        %v713 = vpop.f32.mrf.mxu0
        %v714 = vadd.f32 0.0, %v713
        %v715 = vpop.f32.mrf.mxu0
        %v716 = vadd.f32 0.0, %v715
        %717 = vmatmul.bf16.gmra.mxu0 %v516
        %v718 = vpop.f32.mrf.mxu0
        %v719 = vadd.f32 0.0, %v718
        %v720 = vpop.f32.mrf.mxu0
        %v721 = vadd.f32 0.0, %v720
        %722 = vmatmul.bf16.gmra.mxu0 %v518
        %v723 = vpop.f32.mrf.mxu0
        %v724 = vadd.f32 0.0, %v723
        %v725 = vpop.f32.mrf.mxu0
        %v726 = vadd.f32 0.0, %v725
        %727 = vmatmul.bf16.gmra.mxu0 %v520
        %v728 = vpop.f32.mrf.mxu0
        %v729 = vadd.f32 0.0, %v728
        %v730 = vpop.f32.mrf.mxu0
        %v731 = vadd.f32 0.0, %v730
        %732 = vmatmul.bf16.gmra.mxu0 %v522
        %v733 = vpop.f32.mrf.mxu0
        %v734 = vadd.f32 0.0, %v733
        %v735 = vpop.f32.mrf.mxu0
        %v736 = vadd.f32 0.0, %v735
        %737 = vmatmul.bf16.gmra.mxu0 %v524
        %v738 = vpop.f32.mrf.mxu0
        %v739 = vadd.f32 0.0, %v738
        %v740 = vpop.f32.mrf.mxu0
        %v741 = vadd.f32 0.0, %v740
        %742 = vdwg.mxu0
        %743 = vmatpush.bf16.msra.mxu0 %v637
        %744 = vmatpush.bf16.msra.mxu0 %v636
        %745 = vmatpush.bf16.msra.mxu0 %v635
        %746 = vmatpush.bf16.msra.mxu0 %v634
        %747 = vmatpush.bf16.msra.mxu0 %v633
        %748 = vmatpush.bf16.msra.mxu0 %v632
        %749 = vmatpush.bf16.msra.mxu0 %v631
        %750 = vmatpush.bf16.msra.mxu0 %v630
        %751 = vmatmul.bf16.gmra.mxu0 %v495
        %v752 = vpop.f32.mrf.mxu0
        %v753 = vadd.f32 %v664, %v752
        %v754 = vpop.f32.mrf.mxu0
        %v755 = vadd.f32 %v666, %v754
        %756 = vmatmul.bf16.gmra.mxu0 %v497
        %v757 = vpop.f32.mrf.mxu0
        %v758 = vadd.f32 %v669, %v757
        %v759 = vpop.f32.mrf.mxu0
        %v760 = vadd.f32 %v671, %v759
        %761 = vmatmul.bf16.gmra.mxu0 %v499
        %v762 = vpop.f32.mrf.mxu0
        %v763 = vadd.f32 %v674, %v762
        %v764 = vpop.f32.mrf.mxu0
        %v765 = vadd.f32 %v676, %v764
        %766 = vmatmul.bf16.gmra.mxu0 %v501
        %v767 = vpop.f32.mrf.mxu0
        %v768 = vadd.f32 %v679, %v767
        %v769 = vpop.f32.mrf.mxu0
        %v770 = vadd.f32 %v681, %v769
        %771 = vmatmul.bf16.gmra.mxu0 %v503
        %v772 = vpop.f32.mrf.mxu0
        %v773 = vadd.f32 %v684, %v772
        %v774 = vpop.f32.mrf.mxu0
        %v775 = vadd.f32 %v686, %v774
        %776 = vmatmul.bf16.gmra.mxu0 %v505
        %v777 = vpop.f32.mrf.mxu0
        %v778 = vadd.f32 %v689, %v777
        %v779 = vpop.f32.mrf.mxu0
        %v780 = vadd.f32 %v691, %v779
        %781 = vmatmul.bf16.gmra.mxu0 %v507
        %v782 = vpop.f32.mrf.mxu0
        %v783 = vadd.f32 %v694, %v782
        %v784 = vpop.f32.mrf.mxu0
        %v785 = vadd.f32 %v696, %v784
        %786 = vmatmul.bf16.gmra.mxu0 %v509
        %v787 = vpop.f32.mrf.mxu0
        %v788 = vadd.f32 %v699, %v787
        %v789 = vpop.f32.mrf.mxu0
        %v790 = vadd.f32 %v701, %v789
        %791 = vmatmul.bf16.gmra.mxu0 %v511
        %v792 = vpop.f32.mrf.mxu0
        %v793 = vadd.f32 %v704, %v792
        %v794 = vpop.f32.mrf.mxu0
        %v795 = vadd.f32 %v706, %v794
        %796 = vmatmul.bf16.gmra.mxu0 %v513
        %v797 = vpop.f32.mrf.mxu0
        %v798 = vadd.f32 %v709, %v797
        %v799 = vpop.f32.mrf.mxu0
        %v800 = vadd.f32 %v711, %v799
        %801 = vmatmul.bf16.gmra.mxu0 %v515
        %v802 = vpop.f32.mrf.mxu0
        %v803 = vadd.f32 %v714, %v802
        %v804 = vpop.f32.mrf.mxu0
        %v805 = vadd.f32 %v716, %v804
        %806 = vmatmul.bf16.gmra.mxu0 %v517
        %v807 = vpop.f32.mrf.mxu0
        %v808 = vadd.f32 %v719, %v807
        %v809 = vpop.f32.mrf.mxu0
        %v810 = vadd.f32 %v721, %v809
        %811 = vmatmul.bf16.gmra.mxu0 %v519
        %v812 = vpop.f32.mrf.mxu0
        %v813 = vadd.f32 %v724, %v812
        %v814 = vpop.f32.mrf.mxu0
        %v815 = vadd.f32 %v726, %v814
        %816 = vmatmul.bf16.gmra.mxu0 %v521
        %v817 = vpop.f32.mrf.mxu0
        %v818 = vadd.f32 %v729, %v817
        %v819 = vpop.f32.mrf.mxu0
        %v820 = vadd.f32 %v731, %v819
        %821 = vmatmul.bf16.gmra.mxu0 %v523
        %v822 = vpop.f32.mrf.mxu0
        %v823 = vadd.f32 %v734, %v822
        %v824 = vpop.f32.mrf.mxu0
        %v825 = vadd.f32 %v736, %v824
        %826 = vmatmul.bf16.gmra.mxu0 %v525
        %v827 = vpop.f32.mrf.mxu0
        %v828 = vadd.f32 %v739, %v827
        %v829 = vpop.f32.mrf.mxu0
        %v830 = vadd.f32 %v741, %v829
        %831 = vdwg.mxu0
        %v832 = vmax.f32 %v753, %v773
        %v833 = vmax.f32 %v755, %v775
        %v834 = vmax.f32 %v758, %v778
        %v835 = vmax.f32 %v760, %v780
        %v836 = vmax.f32 %v763, %v783
        %v837 = vmax.f32 %v765, %v785
        %v838 = vmax.f32 %v768, %v788
        %v839 = vmax.f32 %v770, %v790
        %v840 = vmax.f32 %v793, %v813
        %v841 = vmax.f32 %v795, %v815
        %v842 = vmax.f32 %v798, %v818
        %v843 = vmax.f32 %v800, %v820
        %v844 = vmax.f32 %v803, %v823
        %v845 = vmax.f32 %v805, %v825
        %v846 = vmax.f32 %v808, %v828
        %v847 = vmax.f32 %v810, %v830
        %v848 = vmax.f32 %v832, %v840
        %v849 = vmax.f32 %v833, %v841
        %v850 = vmax.f32 %v834, %v842
        %v851 = vmax.f32 %v835, %v843
        %v852 = vmax.f32 %v836, %v844
        %v853 = vmax.f32 %v837, %v845
        %v854 = vmax.f32 %v838, %v846
        %v855 = vmax.f32 %v839, %v847
        %v856 = vld [vmem:[%s2] sm:$0x1]
        %v858 = vperm.slane %v856, 0
        %v860 = vadd.f32 %v848, %v858
        %v861 = vadd.f32 %v849, %v858
        %v862 = vadd.f32 %v850, %v858
        %v863 = vadd.f32 %v851, %v858
        %v864 = vadd.f32 %v852, %v858
        %v865 = vadd.f32 %v853, %v858
        %v866 = vadd.f32 %v854, %v858
        %v867 = vadd.f32 %v855, %v858
        %v868 = vtanh.pop %v860
        %v869 = vtanh.pop %v861
        %v870 = vtanh.pop %v862
        %v871 = vtanh.pop %v863
        %v872 = vtanh.pop %v864
        %v873 = vtanh.pop %v865
        %v874 = vtanh.pop %v866
        %v875 = vtanh.pop %v867
        %v876 = vpack.c.bf16 %v868, %v868
        %v877 = vpack.c.bf16 %v869, %v869
        %v878 = vpack.c.bf16 %v870, %v870
        %v879 = vpack.c.bf16 %v871, %v871
        %v880 = vpack.c.bf16 %v872, %v872
        %v881 = vpack.c.bf16 %v873, %v873
        %v882 = vpack.c.bf16 %v874, %v874
        %v883 = vpack.c.bf16 %v875, %v875
        %884 = vst [vmem:[%s332] sm:$0xf] %v876
        %885 = vst [vmem:[%s332 + $0x4] sm:$0xf] %v877
        %886 = vst [vmem:[%s332 + $0x8] sm:$0xf] %v878
        %887 = vst [vmem:[%s332 + $0xc] sm:$0xf] %v879
        %888 = vst [vmem:[%s332 + $0x10] sm:$0xf] %v880
        %889 = vst [vmem:[%s332 + $0x14] sm:$0xf] %v881
        %890 = vst [vmem:[%s332 + $0x18] sm:$0xf] %v882
        %891 = vst [vmem:[%s332 + $0x1c] sm:$0xf] %v883
        %s892 = smul.u32 8, %s14
        %p893 = scmp.lt.s32.totalorder %s892, 15
        %s894 = scalar_select %p893, %s892, 15
        %s895 = smul.addr %s894, 4
        %s896 = scalar_lea.vmem %s3, %s895
        // Predicated region
        $region71: #{lenet5_forward.4} parent=65 // pred_check
          %p897 = pneg %p100
        $region72: #{lenet5_forward.4} parent=65 // pred_check_branch
          %899 = sbr.rel (%p897) target = $region74
        $region73: #{lenet5_forward.4} parent=65 // pred_region
          %s900 = smul.u32 8, %s14
        $region74: #{lenet5_forward.4} parent=65 // pred_fallthru
          _
      $region66: #{lenet5_forward.4} parent=5 // pred_fallthru
        _
      %p901 = scmp.le.s32.totalorder 2, %s9
      // Predicated region
      $region75: #{lenet5_forward.4} parent=5 // pred_check
        %p902 = pneg %p901
      $region76: #{lenet5_forward.4} parent=5 // pred_check_branch
        %904 = sbr.rel (%p902) target = $region78
      $region77: #{lenet5_forward.4} parent=5 // pred_region
        %s905 = ssub.s32 %s9, 2
        // Predicated region
        $region79: #{lenet5_forward.4} parent=77 // pred_check
          %p906 = pneg %p106
        $region80: #{lenet5_forward.4} parent=77 // pred_check_branch
          %908 = sbr.rel (%p906) target = $region82
        $region81: #{lenet5_forward.4} parent=77 // pred_region
          %s909 = smul.u32 8, %s15
          %p910 = scmp.lt.s32.totalorder %s909, 15
          %s911 = scalar_select %p910, %s909, 15
          %s912 = smul.addr %s911, 4
          %s913 = scalar_lea.vmem %s3, %s912
        $region82: #{lenet5_forward.4} parent=77 // pred_fallthru
          _
      $region78: #{lenet5_forward.4} parent=5 // pred_fallthru
        _
    $region6: #{lenet5_forward.4} parent=1 // loop_footer
      %s13 = sadd.s32 1, %s9
    $region7: #{lenet5_forward.4} parent=1 // loop_footer_branch
      %8 = sbr.rel target = $region3
    $region8: #{lenet5_forward.4} parent=1 // loop_exit
      _

// kernel: lenet5_forward.5
$region0: #{lenet5_forward.5}
  #allocation0 [shape = 'u32[]', space=smem, size = 0x4, offset = 0x4, fixed_abs, tag = 'smem constant byte address 0x4 - core index']
  #allocation1 [shape = 'u32[72,128]{1,0:T(1,128)}', space=vmem, size = 0x9000, scoped, tag = 'internal scratch']
  %s0 = inlined_call_operand.vmem [shape: bf16[16,1024], index: 0, kind: input, shape index: {}]
  %s1 = inlined_call_operand.vmem [shape: bf16[1024,128], index: 1, kind: input, shape index: {}]
  %s2 = inlined_call_operand.vmem [shape: f32[1,128], index: 2, kind: input, shape index: {}]
  %s3 = inlined_call_operand.vmem [shape: bf16[128,128], index: 3, kind: input, shape index: {}]
  %s4 = inlined_call_operand.vmem [shape: f32[1,128], index: 4, kind: input, shape index: {}]
  %s5 = inlined_call_operand.vmem [shape: bf16[128,128], index: 5, kind: input, shape index: {}]
  %s6 = inlined_call_operand.vmem [shape: f32[1,128], index: 6, kind: input, shape index: {}]
  %s7 = inlined_call_operand.vmem [shape: f32[16,128], index: 7, kind: output, shape index: {0}]
  %s8 = inlined_call_operand.vmem [shape: f32[16,128], index: 8, kind: output, shape index: {1}]
  %9 = xla_tuple %s7, %s8
  %s10 = sld [smem:[#allocation0]]
  $region46: #{lenet5_forward.5} parent=0
    _
  %s12 = ssub.s32 1, %s10
  %s13 = scalar_select 0, %s12, %s10
  // Predicated region
  $region2: #{lenet5_forward.5} parent=0 // pred_check
    _
  $region3: #{lenet5_forward.5} parent=0 // pred_check_branch
    %15 = sbr.rel (0) target = $region5
  $region4: #{lenet5_forward.5} parent=0 // pred_region
    _
  $region5: #{lenet5_forward.5} parent=0 // pred_fallthru
    _
  // Predicated region
  $region6: #{lenet5_forward.5} parent=0 // pred_check
    _
  $region7: #{lenet5_forward.5} parent=0 // pred_check_branch
    %17 = sbr.rel (0) target = $region9
  $region8: #{lenet5_forward.5} parent=0 // pred_region
    _
  $region9: #{lenet5_forward.5} parent=0 // pred_fallthru
    _
  // Predicated region
  $region10: #{lenet5_forward.5} parent=0 // pred_check
    _
  $region11: #{lenet5_forward.5} parent=0 // pred_check_branch
    %19 = sbr.rel (0) target = $region13
  $region12: #{lenet5_forward.5} parent=0 // pred_region
    _
  $region13: #{lenet5_forward.5} parent=0 // pred_fallthru
    _
  // Predicated region
  $region14: #{lenet5_forward.5} parent=0 // pred_check
    _
  $region15: #{lenet5_forward.5} parent=0 // pred_check_branch
    %21 = sbr.rel (0) target = $region17
  $region16: #{lenet5_forward.5} parent=0 // pred_region
    _
  $region17: #{lenet5_forward.5} parent=0 // pred_fallthru
    _
  // Predicated region
  $region18: #{lenet5_forward.5} parent=0 // pred_check
    _
  $region19: #{lenet5_forward.5} parent=0 // pred_check_branch
    %23 = sbr.rel (0) target = $region21
  $region20: #{lenet5_forward.5} parent=0 // pred_region
    _
  $region21: #{lenet5_forward.5} parent=0 // pred_fallthru
    _
  // Predicated region
  $region22: #{lenet5_forward.5} parent=0 // pred_check
    _
  $region23: #{lenet5_forward.5} parent=0 // pred_check_branch
    %25 = sbr.rel (0) target = $region25
  $region24: #{lenet5_forward.5} parent=0 // pred_region
    _
  $region25: #{lenet5_forward.5} parent=0 // pred_fallthru
    _
  // Predicated region
  $region26: #{lenet5_forward.5} parent=0 // pred_check
    _
  $region27: #{lenet5_forward.5} parent=0 // pred_check_branch
    %27 = sbr.rel (0) target = $region29
  $region28: #{lenet5_forward.5} parent=0 // pred_region
    _
  $region29: #{lenet5_forward.5} parent=0 // pred_fallthru
    _
  %v28 = vld [vmem:[%s0] sm:$0xff]
  %v29 = vld [vmem:[%s0 + $0x8] sm:$0xff]
  %v30 = vld [vmem:[%s0 + $0x10] sm:$0xff]
  %v31 = vld [vmem:[%s0 + $0x18] sm:$0xff]
  %v32 = vld [vmem:[%s0 + $0x20] sm:$0xff]
  %v33 = vld [vmem:[%s0 + $0x28] sm:$0xff]
  %v34 = vld [vmem:[%s0 + $0x30] sm:$0xff]
  %v35 = vld [vmem:[%s0 + $0x38] sm:$0xff]
  %v36 = vld [vmem:[%s1] sm:$0xf]
  %v37 = vld [vmem:[%s1 + $0x4] sm:$0xf]
  %v38 = vld [vmem:[%s1 + $0x8] sm:$0xf]
  %v39 = vld [vmem:[%s1 + $0xc] sm:$0xf]
  %v40 = vld [vmem:[%s1 + $0x10] sm:$0xf]
  %v41 = vld [vmem:[%s1 + $0x14] sm:$0xf]
  %v42 = vld [vmem:[%s1 + $0x18] sm:$0xf]
  %v43 = vld [vmem:[%s1 + $0x1c] sm:$0xf]
  %v44 = vld [vmem:[%s1 + $0x20] sm:$0xf]
  %v45 = vld [vmem:[%s1 + $0x24] sm:$0xf]
  %v46 = vld [vmem:[%s1 + $0x28] sm:$0xf]
  %v47 = vld [vmem:[%s1 + $0x2c] sm:$0xf]
  %v48 = vld [vmem:[%s1 + $0x30] sm:$0xf]
  %v49 = vld [vmem:[%s1 + $0x34] sm:$0xf]
  %v50 = vld [vmem:[%s1 + $0x38] sm:$0xf]
  %v51 = vld [vmem:[%s1 + $0x3c] sm:$0xf]
  %v52 = vld [vmem:[%s1 + $0x40] sm:$0xf]
  %v53 = vld [vmem:[%s1 + $0x44] sm:$0xf]
  %v54 = vld [vmem:[%s1 + $0x48] sm:$0xf]
  %v55 = vld [vmem:[%s1 + $0x4c] sm:$0xf]
  %v56 = vld [vmem:[%s1 + $0x50] sm:$0xf]
  %v57 = vld [vmem:[%s1 + $0x54] sm:$0xf]
  %v58 = vld [vmem:[%s1 + $0x58] sm:$0xf]
  %v59 = vld [vmem:[%s1 + $0x5c] sm:$0xf]
  %v60 = vld [vmem:[%s1 + $0x60] sm:$0xf]
  %v61 = vld [vmem:[%s1 + $0x64] sm:$0xf]
  %v62 = vld [vmem:[%s1 + $0x68] sm:$0xf]
  %v63 = vld [vmem:[%s1 + $0x6c] sm:$0xf]
  %v64 = vld [vmem:[%s1 + $0x70] sm:$0xf]
  %v65 = vld [vmem:[%s1 + $0x74] sm:$0xf]
  %v66 = vld [vmem:[%s1 + $0x78] sm:$0xf]
  %v67 = vld [vmem:[%s1 + $0x7c] sm:$0xf]
  %v68 = vld [vmem:[%s1 + $0x80] sm:$0xf]
  %v69 = vld [vmem:[%s1 + $0x84] sm:$0xf]
  %v70 = vld [vmem:[%s1 + $0x88] sm:$0xf]
  %v71 = vld [vmem:[%s1 + $0x8c] sm:$0xf]
  %v72 = vld [vmem:[%s1 + $0x90] sm:$0xf]
  %v73 = vld [vmem:[%s1 + $0x94] sm:$0xf]
  %v74 = vld [vmem:[%s1 + $0x98] sm:$0xf]
  %v75 = vld [vmem:[%s1 + $0x9c] sm:$0xf]
  %v76 = vld [vmem:[%s1 + $0xa0] sm:$0xf]
  %v77 = vld [vmem:[%s1 + $0xa4] sm:$0xf]
  %v78 = vld [vmem:[%s1 + $0xa8] sm:$0xf]
  %v79 = vld [vmem:[%s1 + $0xac] sm:$0xf]
  %v80 = vld [vmem:[%s1 + $0xb0] sm:$0xf]
  %v81 = vld [vmem:[%s1 + $0xb4] sm:$0xf]
  %v82 = vld [vmem:[%s1 + $0xb8] sm:$0xf]
  %v83 = vld [vmem:[%s1 + $0xbc] sm:$0xf]
  %v84 = vld [vmem:[%s1 + $0xc0] sm:$0xf]
  %v85 = vld [vmem:[%s1 + $0xc4] sm:$0xf]
  %v86 = vld [vmem:[%s1 + $0xc8] sm:$0xf]
  %v87 = vld [vmem:[%s1 + $0xcc] sm:$0xf]
  %v88 = vld [vmem:[%s1 + $0xd0] sm:$0xf]
  %v89 = vld [vmem:[%s1 + $0xd4] sm:$0xf]
  %v90 = vld [vmem:[%s1 + $0xd8] sm:$0xf]
  %v91 = vld [vmem:[%s1 + $0xdc] sm:$0xf]
  %v92 = vld [vmem:[%s1 + $0xe0] sm:$0xf]
  %v93 = vld [vmem:[%s1 + $0xe4] sm:$0xf]
  %v94 = vld [vmem:[%s1 + $0xe8] sm:$0xf]
  %v95 = vld [vmem:[%s1 + $0xec] sm:$0xf]
  %v96 = vld [vmem:[%s1 + $0xf0] sm:$0xf]
  %v97 = vld [vmem:[%s1 + $0xf4] sm:$0xf]
  %v98 = vld [vmem:[%s1 + $0xf8] sm:$0xf]
  %v99 = vld [vmem:[%s1 + $0xfc] sm:$0xf]
  %v100 = vld [vmem:[%s1 + $0x100] sm:$0xf]
  %v101 = vld [vmem:[%s1 + $0x104] sm:$0xf]
  %v102 = vld [vmem:[%s1 + $0x108] sm:$0xf]
  %v103 = vld [vmem:[%s1 + $0x10c] sm:$0xf]
  %v104 = vld [vmem:[%s1 + $0x110] sm:$0xf]
  %v105 = vld [vmem:[%s1 + $0x114] sm:$0xf]
  %v106 = vld [vmem:[%s1 + $0x118] sm:$0xf]
  %v107 = vld [vmem:[%s1 + $0x11c] sm:$0xf]
  %v108 = vld [vmem:[%s1 + $0x120] sm:$0xf]
  %v109 = vld [vmem:[%s1 + $0x124] sm:$0xf]
  %v110 = vld [vmem:[%s1 + $0x128] sm:$0xf]
  %v111 = vld [vmem:[%s1 + $0x12c] sm:$0xf]
  %v112 = vld [vmem:[%s1 + $0x130] sm:$0xf]
  %v113 = vld [vmem:[%s1 + $0x134] sm:$0xf]
  %v114 = vld [vmem:[%s1 + $0x138] sm:$0xf]
  %v115 = vld [vmem:[%s1 + $0x13c] sm:$0xf]
  %v116 = vld [vmem:[%s1 + $0x140] sm:$0xf]
  %v117 = vld [vmem:[%s1 + $0x144] sm:$0xf]
  %v118 = vld [vmem:[%s1 + $0x148] sm:$0xf]
  %v119 = vld [vmem:[%s1 + $0x14c] sm:$0xf]
  %v120 = vld [vmem:[%s1 + $0x150] sm:$0xf]
  %v121 = vld [vmem:[%s1 + $0x154] sm:$0xf]
  %v122 = vld [vmem:[%s1 + $0x158] sm:$0xf]
  %v123 = vld [vmem:[%s1 + $0x15c] sm:$0xf]
  %v124 = vld [vmem:[%s1 + $0x160] sm:$0xf]
  %v125 = vld [vmem:[%s1 + $0x164] sm:$0xf]
  %v126 = vld [vmem:[%s1 + $0x168] sm:$0xf]
  %v127 = vld [vmem:[%s1 + $0x16c] sm:$0xf]
  %v128 = vld [vmem:[%s1 + $0x170] sm:$0xf]
  %v129 = vld [vmem:[%s1 + $0x174] sm:$0xf]
  %v130 = vld [vmem:[%s1 + $0x178] sm:$0xf]
  %v131 = vld [vmem:[%s1 + $0x17c] sm:$0xf]
  %v132 = vld [vmem:[%s1 + $0x180] sm:$0xf]
  %v133 = vld [vmem:[%s1 + $0x184] sm:$0xf]
  %v134 = vld [vmem:[%s1 + $0x188] sm:$0xf]
  %v135 = vld [vmem:[%s1 + $0x18c] sm:$0xf]
  %v136 = vld [vmem:[%s1 + $0x190] sm:$0xf]
  %v137 = vld [vmem:[%s1 + $0x194] sm:$0xf]
  %v138 = vld [vmem:[%s1 + $0x198] sm:$0xf]
  %v139 = vld [vmem:[%s1 + $0x19c] sm:$0xf]
  %v140 = vld [vmem:[%s1 + $0x1a0] sm:$0xf]
  %v141 = vld [vmem:[%s1 + $0x1a4] sm:$0xf]
  %v142 = vld [vmem:[%s1 + $0x1a8] sm:$0xf]
  %v143 = vld [vmem:[%s1 + $0x1ac] sm:$0xf]
  %v144 = vld [vmem:[%s1 + $0x1b0] sm:$0xf]
  %v145 = vld [vmem:[%s1 + $0x1b4] sm:$0xf]
  %v146 = vld [vmem:[%s1 + $0x1b8] sm:$0xf]
  %v147 = vld [vmem:[%s1 + $0x1bc] sm:$0xf]
  %v148 = vld [vmem:[%s1 + $0x1c0] sm:$0xf]
  %v149 = vld [vmem:[%s1 + $0x1c4] sm:$0xf]
  %v150 = vld [vmem:[%s1 + $0x1c8] sm:$0xf]
  %v151 = vld [vmem:[%s1 + $0x1cc] sm:$0xf]
  %v152 = vld [vmem:[%s1 + $0x1d0] sm:$0xf]
  %v153 = vld [vmem:[%s1 + $0x1d4] sm:$0xf]
  %v154 = vld [vmem:[%s1 + $0x1d8] sm:$0xf]
  %v155 = vld [vmem:[%s1 + $0x1dc] sm:$0xf]
  %v156 = vld [vmem:[%s1 + $0x1e0] sm:$0xf]
  %v157 = vld [vmem:[%s1 + $0x1e4] sm:$0xf]
  %v158 = vld [vmem:[%s1 + $0x1e8] sm:$0xf]
  %v159 = vld [vmem:[%s1 + $0x1ec] sm:$0xf]
  %v160 = vld [vmem:[%s1 + $0x1f0] sm:$0xf]
  %v161 = vld [vmem:[%s1 + $0x1f4] sm:$0xf]
  %v162 = vld [vmem:[%s1 + $0x1f8] sm:$0xf]
  %v163 = vld [vmem:[%s1 + $0x1fc] sm:$0xf]
  %v164 = vld [vmem:[%s2] sm:$0x1]
  %v166 = vperm.slane %v164, 0
  %v176 = vunpack.c.l.b16 %v28
  %v177 = vunpack.c.h.b16 %v28
  %v178 = vunpack.c.l.b16 %v29
  %v179 = vunpack.c.h.b16 %v29
  %v180 = vunpack.c.l.b16 %v30
  %v181 = vunpack.c.h.b16 %v30
  %v182 = vunpack.c.l.b16 %v31
  %v183 = vunpack.c.h.b16 %v31
  %v184 = vunpack.c.l.b16 %v32
  %v185 = vunpack.c.h.b16 %v32
  %v186 = vunpack.c.l.b16 %v33
  %v187 = vunpack.c.h.b16 %v33
  %v188 = vunpack.c.l.b16 %v34
  %v189 = vunpack.c.h.b16 %v34
  %v190 = vunpack.c.l.b16 %v35
  %v191 = vunpack.c.h.b16 %v35
  %v192 = vpack.c.b16 %v184, %v176
  %v193 = vpack.c.b16 %v185, %v177
  %v194 = vpack.c.b16 %v186, %v178
  %v195 = vpack.c.b16 %v187, %v179
  %v196 = vpack.c.b16 %v188, %v180
  %v197 = vpack.c.b16 %v189, %v181
  %v198 = vpack.c.b16 %v190, %v182
  %v199 = vpack.c.b16 %v191, %v183
  %v336 = vunpack.c.l.b16 %v36
  %v337 = vunpack.c.l.b16 %v37
  %v338 = vunpack.c.l.b16 %v38
  %v339 = vunpack.c.l.b16 %v39
  %v340 = vunpack.c.l.b16 %v40
  %v341 = vunpack.c.l.b16 %v41
  %v342 = vunpack.c.l.b16 %v42
  %v343 = vunpack.c.l.b16 %v43
  %v344 = vunpack.c.l.b16 %v44
  %v345 = vunpack.c.l.b16 %v45
  %v346 = vunpack.c.l.b16 %v46
  %v347 = vunpack.c.l.b16 %v47
  %v348 = vunpack.c.l.b16 %v48
  %v349 = vunpack.c.l.b16 %v49
  %v350 = vunpack.c.l.b16 %v50
  %v351 = vunpack.c.l.b16 %v51
  %v352 = vunpack.c.l.b16 %v52
  %v353 = vunpack.c.l.b16 %v53
  %v354 = vunpack.c.l.b16 %v54
  %v355 = vunpack.c.l.b16 %v55
  %v356 = vunpack.c.l.b16 %v56
  %v357 = vunpack.c.l.b16 %v57
  %v358 = vunpack.c.l.b16 %v58
  %v359 = vunpack.c.l.b16 %v59
  %v360 = vunpack.c.l.b16 %v60
  %v361 = vunpack.c.l.b16 %v61
  %v362 = vunpack.c.l.b16 %v62
  %v363 = vunpack.c.l.b16 %v63
  %v364 = vunpack.c.l.b16 %v64
  %v365 = vunpack.c.l.b16 %v65
  %v366 = vunpack.c.l.b16 %v66
  %v367 = vunpack.c.l.b16 %v67
  %v368 = vunpack.c.l.b16 %v68
  %v369 = vunpack.c.l.b16 %v69
  %v370 = vunpack.c.l.b16 %v70
  %v371 = vunpack.c.l.b16 %v71
  %v372 = vunpack.c.l.b16 %v72
  %v373 = vunpack.c.l.b16 %v73
  %v374 = vunpack.c.l.b16 %v74
  %v375 = vunpack.c.l.b16 %v75
  %v376 = vunpack.c.l.b16 %v76
  %v377 = vunpack.c.l.b16 %v77
  %v378 = vunpack.c.l.b16 %v78
  %v379 = vunpack.c.l.b16 %v79
  %v380 = vunpack.c.l.b16 %v80
  %v381 = vunpack.c.l.b16 %v81
  %v382 = vunpack.c.l.b16 %v82
  %v383 = vunpack.c.l.b16 %v83
  %v384 = vunpack.c.l.b16 %v84
  %v385 = vunpack.c.l.b16 %v85
  %v386 = vunpack.c.l.b16 %v86
  %v387 = vunpack.c.l.b16 %v87
  %v388 = vunpack.c.l.b16 %v88
  %v389 = vunpack.c.l.b16 %v89
  %v390 = vunpack.c.l.b16 %v90
  %v391 = vunpack.c.l.b16 %v91
  %v392 = vunpack.c.l.b16 %v92
  %v393 = vunpack.c.l.b16 %v93
  %v394 = vunpack.c.l.b16 %v94
  %v395 = vunpack.c.l.b16 %v95
  %v396 = vunpack.c.l.b16 %v96
  %v397 = vunpack.c.l.b16 %v97
  %v398 = vunpack.c.l.b16 %v98
  %v399 = vunpack.c.l.b16 %v99
  %v400 = vunpack.c.l.b16 %v100
  %v401 = vunpack.c.l.b16 %v101
  %v402 = vunpack.c.l.b16 %v102
  %v403 = vunpack.c.l.b16 %v103
  %v404 = vunpack.c.l.b16 %v104
  %v405 = vunpack.c.l.b16 %v105
  %v406 = vunpack.c.l.b16 %v106
  %v407 = vunpack.c.l.b16 %v107
  %v408 = vunpack.c.l.b16 %v108
  %v409 = vunpack.c.l.b16 %v109
  %v410 = vunpack.c.l.b16 %v110
  %v411 = vunpack.c.l.b16 %v111
  %v412 = vunpack.c.l.b16 %v112
  %v413 = vunpack.c.l.b16 %v113
  %v414 = vunpack.c.l.b16 %v114
  %v415 = vunpack.c.l.b16 %v115
  %v416 = vunpack.c.l.b16 %v116
  %v417 = vunpack.c.l.b16 %v117
  %v418 = vunpack.c.l.b16 %v118
  %v419 = vunpack.c.l.b16 %v119
  %v420 = vunpack.c.l.b16 %v120
  %v421 = vunpack.c.l.b16 %v121
  %v422 = vunpack.c.l.b16 %v122
  %v423 = vunpack.c.l.b16 %v123
  %v424 = vunpack.c.l.b16 %v124
  %v425 = vunpack.c.l.b16 %v125
  %v426 = vunpack.c.l.b16 %v126
  %v427 = vunpack.c.l.b16 %v127
  %v428 = vunpack.c.l.b16 %v128
  %v429 = vunpack.c.l.b16 %v129
  %v430 = vunpack.c.l.b16 %v130
  %v431 = vunpack.c.l.b16 %v131
  %v432 = vunpack.c.l.b16 %v132
  %v433 = vunpack.c.l.b16 %v133
  %v434 = vunpack.c.l.b16 %v134
  %v435 = vunpack.c.l.b16 %v135
  %v436 = vunpack.c.l.b16 %v136
  %v437 = vunpack.c.l.b16 %v137
  %v438 = vunpack.c.l.b16 %v138
  %v439 = vunpack.c.l.b16 %v139
  %v440 = vunpack.c.l.b16 %v140
  %v441 = vunpack.c.l.b16 %v141
  %v442 = vunpack.c.l.b16 %v142
  %v443 = vunpack.c.l.b16 %v143
  %v444 = vunpack.c.l.b16 %v144
  %v445 = vunpack.c.l.b16 %v145
  %v446 = vunpack.c.l.b16 %v146
  %v447 = vunpack.c.l.b16 %v147
  %v448 = vunpack.c.l.b16 %v148
  %v449 = vunpack.c.l.b16 %v149
  %v450 = vunpack.c.l.b16 %v150
  %v451 = vunpack.c.l.b16 %v151
  %v452 = vunpack.c.l.b16 %v152
  %v453 = vunpack.c.l.b16 %v153
  %v454 = vunpack.c.l.b16 %v154
  %v455 = vunpack.c.l.b16 %v155
  %v456 = vunpack.c.l.b16 %v156
  %v457 = vunpack.c.l.b16 %v157
  %v458 = vunpack.c.l.b16 %v158
  %v459 = vunpack.c.l.b16 %v159
  %v460 = vunpack.c.l.b16 %v160
  %v461 = vunpack.c.l.b16 %v161
  %v462 = vunpack.c.l.b16 %v162
  %v463 = vunpack.c.l.b16 %v163
  %v464 = vpack.c.b16 %v337, %v336
  %v465 = vpack.c.b16 %v339, %v338
  %v466 = vpack.c.b16 %v341, %v340
  %v467 = vpack.c.b16 %v343, %v342
  %v468 = vpack.c.b16 %v345, %v344
  %v469 = vpack.c.b16 %v347, %v346
  %v470 = vpack.c.b16 %v349, %v348
  %v471 = vpack.c.b16 %v351, %v350
  %v472 = vpack.c.b16 %v353, %v352
  %v473 = vpack.c.b16 %v355, %v354
  %v474 = vpack.c.b16 %v357, %v356
  %v475 = vpack.c.b16 %v359, %v358
  %v476 = vpack.c.b16 %v361, %v360
  %v477 = vpack.c.b16 %v363, %v362
  %v478 = vpack.c.b16 %v365, %v364
  %v479 = vpack.c.b16 %v367, %v366
  %v480 = vpack.c.b16 %v369, %v368
  %v481 = vpack.c.b16 %v371, %v370
  %v482 = vpack.c.b16 %v373, %v372
  %v483 = vpack.c.b16 %v375, %v374
  %v484 = vpack.c.b16 %v377, %v376
  %v485 = vpack.c.b16 %v379, %v378
  %v486 = vpack.c.b16 %v381, %v380
  %v487 = vpack.c.b16 %v383, %v382
  %v488 = vpack.c.b16 %v385, %v384
  %v489 = vpack.c.b16 %v387, %v386
  %v490 = vpack.c.b16 %v389, %v388
  %v491 = vpack.c.b16 %v391, %v390
  %v492 = vpack.c.b16 %v393, %v392
  %v493 = vpack.c.b16 %v395, %v394
  %v494 = vpack.c.b16 %v397, %v396
  %v495 = vpack.c.b16 %v399, %v398
  %v496 = vpack.c.b16 %v401, %v400
  %v497 = vpack.c.b16 %v403, %v402
  %v498 = vpack.c.b16 %v405, %v404
  %v499 = vpack.c.b16 %v407, %v406
  %v500 = vpack.c.b16 %v409, %v408
  %v501 = vpack.c.b16 %v411, %v410
  %v502 = vpack.c.b16 %v413, %v412
  %v503 = vpack.c.b16 %v415, %v414
  %v504 = vpack.c.b16 %v417, %v416
  %v505 = vpack.c.b16 %v419, %v418
  %v506 = vpack.c.b16 %v421, %v420
  %v507 = vpack.c.b16 %v423, %v422
  %v508 = vpack.c.b16 %v425, %v424
  %v509 = vpack.c.b16 %v427, %v426
  %v510 = vpack.c.b16 %v429, %v428
  %v511 = vpack.c.b16 %v431, %v430
  %v512 = vpack.c.b16 %v433, %v432
  %v513 = vpack.c.b16 %v435, %v434
  %v514 = vpack.c.b16 %v437, %v436
  %v515 = vpack.c.b16 %v439, %v438
  %v516 = vpack.c.b16 %v441, %v440
  %v517 = vpack.c.b16 %v443, %v442
  %v518 = vpack.c.b16 %v445, %v444
  %v519 = vpack.c.b16 %v447, %v446
  %v520 = vpack.c.b16 %v449, %v448
  %v521 = vpack.c.b16 %v451, %v450
  %v522 = vpack.c.b16 %v453, %v452
  %v523 = vpack.c.b16 %v455, %v454
  %v524 = vpack.c.b16 %v457, %v456
  %v525 = vpack.c.b16 %v459, %v458
  %v526 = vpack.c.b16 %v461, %v460
  %v527 = vpack.c.b16 %v463, %v462
  %592 = vmatpush.bf16.msra.mxu0 %v471
  %593 = vmatpush.bf16.msra.mxu0 %v470
  %594 = vmatpush.bf16.msra.mxu0 %v469
  %595 = vmatpush.bf16.msra.mxu0 %v468
  %596 = vmatpush.bf16.msra.mxu0 %v467
  %597 = vmatpush.bf16.msra.mxu0 %v466
  %598 = vmatpush.bf16.msra.mxu0 %v465
  %599 = vmatpush.bf16.msra.mxu0 %v464
  %600 = vmatmul.bf16.gmra.mxu0 %v192
  %v601 = vpop.f32.mrf.mxu0
  %v602 = vadd.f32 %v166, %v601
  %v603 = vpop.f32.mrf.mxu0
  %v604 = vadd.f32 %v166, %v603
  %605 = vdwg.mxu0
  %606 = vmatpush.bf16.msra.mxu0 %v479
  %607 = vmatpush.bf16.msra.mxu0 %v478
  %608 = vmatpush.bf16.msra.mxu0 %v477
  %609 = vmatpush.bf16.msra.mxu0 %v476
  %610 = vmatpush.bf16.msra.mxu0 %v475
  %611 = vmatpush.bf16.msra.mxu0 %v474
  %612 = vmatpush.bf16.msra.mxu0 %v473
  %613 = vmatpush.bf16.msra.mxu0 %v472
  %614 = vmatmul.bf16.gmra.mxu0 %v193
  %v615 = vpop.f32.mrf.mxu0
  %v616 = vadd.f32 %v602, %v615
  %v617 = vpop.f32.mrf.mxu0
  %v618 = vadd.f32 %v604, %v617
  %619 = vdwg.mxu0
  %620 = vmatpush.bf16.msra.mxu0 %v487
  %621 = vmatpush.bf16.msra.mxu0 %v486
  %622 = vmatpush.bf16.msra.mxu0 %v485
  %623 = vmatpush.bf16.msra.mxu0 %v484
  %624 = vmatpush.bf16.msra.mxu0 %v483
  %625 = vmatpush.bf16.msra.mxu0 %v482
  %626 = vmatpush.bf16.msra.mxu0 %v481
  %627 = vmatpush.bf16.msra.mxu0 %v480
  %628 = vmatmul.bf16.gmra.mxu0 %v194
  %v629 = vpop.f32.mrf.mxu0
  %v630 = vadd.f32 %v616, %v629
  %v631 = vpop.f32.mrf.mxu0
  %v632 = vadd.f32 %v618, %v631
  %633 = vdwg.mxu0
  %634 = vmatpush.bf16.msra.mxu0 %v495
  %635 = vmatpush.bf16.msra.mxu0 %v494
  %636 = vmatpush.bf16.msra.mxu0 %v493
  %637 = vmatpush.bf16.msra.mxu0 %v492
  %638 = vmatpush.bf16.msra.mxu0 %v491
  %639 = vmatpush.bf16.msra.mxu0 %v490
  %640 = vmatpush.bf16.msra.mxu0 %v489
  %641 = vmatpush.bf16.msra.mxu0 %v488
  %642 = vmatmul.bf16.gmra.mxu0 %v195
  %v643 = vpop.f32.mrf.mxu0
  %v644 = vadd.f32 %v630, %v643
  %v645 = vpop.f32.mrf.mxu0
  %v646 = vadd.f32 %v632, %v645
  %647 = vdwg.mxu0
  %648 = vmatpush.bf16.msra.mxu0 %v503
  %649 = vmatpush.bf16.msra.mxu0 %v502
  %650 = vmatpush.bf16.msra.mxu0 %v501
  %651 = vmatpush.bf16.msra.mxu0 %v500
  %652 = vmatpush.bf16.msra.mxu0 %v499
  %653 = vmatpush.bf16.msra.mxu0 %v498
  %654 = vmatpush.bf16.msra.mxu0 %v497
  %655 = vmatpush.bf16.msra.mxu0 %v496
  %656 = vmatmul.bf16.gmra.mxu0 %v196
  %v657 = vpop.f32.mrf.mxu0
  %v658 = vadd.f32 %v644, %v657
  %v659 = vpop.f32.mrf.mxu0
  %v660 = vadd.f32 %v646, %v659
  %661 = vdwg.mxu0
  %662 = vmatpush.bf16.msra.mxu0 %v511
  %663 = vmatpush.bf16.msra.mxu0 %v510
  %664 = vmatpush.bf16.msra.mxu0 %v509
  %665 = vmatpush.bf16.msra.mxu0 %v508
  %666 = vmatpush.bf16.msra.mxu0 %v507
  %667 = vmatpush.bf16.msra.mxu0 %v506
  %668 = vmatpush.bf16.msra.mxu0 %v505
  %669 = vmatpush.bf16.msra.mxu0 %v504
  %670 = vmatmul.bf16.gmra.mxu0 %v197
  %v671 = vpop.f32.mrf.mxu0
  %v672 = vadd.f32 %v658, %v671
  %v673 = vpop.f32.mrf.mxu0
  %v674 = vadd.f32 %v660, %v673
  %675 = vdwg.mxu0
  %676 = vmatpush.bf16.msra.mxu0 %v519
  %677 = vmatpush.bf16.msra.mxu0 %v518
  %678 = vmatpush.bf16.msra.mxu0 %v517
  %679 = vmatpush.bf16.msra.mxu0 %v516
  %680 = vmatpush.bf16.msra.mxu0 %v515
  %681 = vmatpush.bf16.msra.mxu0 %v514
  %682 = vmatpush.bf16.msra.mxu0 %v513
  %683 = vmatpush.bf16.msra.mxu0 %v512
  %684 = vmatmul.bf16.gmra.mxu0 %v198
  %v685 = vpop.f32.mrf.mxu0
  %v686 = vadd.f32 %v672, %v685
  %v687 = vpop.f32.mrf.mxu0
  %v688 = vadd.f32 %v674, %v687
  %689 = vdwg.mxu0
  %690 = vmatpush.bf16.msra.mxu0 %v527
  %691 = vmatpush.bf16.msra.mxu0 %v526
  %692 = vmatpush.bf16.msra.mxu0 %v525
  %693 = vmatpush.bf16.msra.mxu0 %v524
  %694 = vmatpush.bf16.msra.mxu0 %v523
  %695 = vmatpush.bf16.msra.mxu0 %v522
  %696 = vmatpush.bf16.msra.mxu0 %v521
  %697 = vmatpush.bf16.msra.mxu0 %v520
  %698 = vmatmul.bf16.gmra.mxu0 %v199
  %v699 = vpop.f32.mrf.mxu0
  %v700 = vadd.f32 %v686, %v699
  %v701 = vpop.f32.mrf.mxu0
  %v702 = vadd.f32 %v688, %v701
  %703 = vdwg.mxu0
  %v704 = vtanh.pop %v700
  %v705 = vtanh.pop %v702
  %v706 = vpack.c.bf16 %v705, %v704
  %v707 = vld [vmem:[%s3] sm:$0xf]
  %v708 = vld [vmem:[%s3 + $0x4] sm:$0xf]
  %v709 = vld [vmem:[%s3 + $0x8] sm:$0xf]
  %v710 = vld [vmem:[%s3 + $0xc] sm:$0xf]
  %v711 = vld [vmem:[%s3 + $0x10] sm:$0xf]
  %v712 = vld [vmem:[%s3 + $0x14] sm:$0xf]
  %v713 = vld [vmem:[%s3 + $0x18] sm:$0xf]
  %v714 = vld [vmem:[%s3 + $0x1c] sm:$0xf]
  %v715 = vld [vmem:[%s3 + $0x20] sm:$0xf]
  %v716 = vld [vmem:[%s3 + $0x24] sm:$0xf]
  %v717 = vld [vmem:[%s3 + $0x28] sm:$0xf]
  %v718 = vld [vmem:[%s3 + $0x2c] sm:$0xf]
  %v719 = vld [vmem:[%s3 + $0x30] sm:$0xf]
  %v720 = vld [vmem:[%s3 + $0x34] sm:$0xf]
  %v721 = vld [vmem:[%s3 + $0x38] sm:$0xf]
  %v722 = vld [vmem:[%s3 + $0x3c] sm:$0xf]
  %v723 = vld [vmem:[%s4] sm:$0x1]
  %v725 = vperm.slane %v723, 0
  %v743 = vunpack.c.l.b16 %v707
  %v744 = vunpack.c.l.b16 %v708
  %v745 = vunpack.c.l.b16 %v709
  %v746 = vunpack.c.l.b16 %v710
  %v747 = vunpack.c.l.b16 %v711
  %v748 = vunpack.c.l.b16 %v712
  %v749 = vunpack.c.l.b16 %v713
  %v750 = vunpack.c.l.b16 %v714
  %v751 = vunpack.c.l.b16 %v715
  %v752 = vunpack.c.l.b16 %v716
  %v753 = vunpack.c.l.b16 %v717
  %v754 = vunpack.c.l.b16 %v718
  %v755 = vunpack.c.l.b16 %v719
  %v756 = vunpack.c.l.b16 %v720
  %v757 = vunpack.c.l.b16 %v721
  %v758 = vunpack.c.l.b16 %v722
  %v759 = vpack.c.b16 %v744, %v743
  %v760 = vpack.c.b16 %v746, %v745
  %v761 = vpack.c.b16 %v748, %v747
  %v762 = vpack.c.b16 %v750, %v749
  %v763 = vpack.c.b16 %v752, %v751
  %v764 = vpack.c.b16 %v754, %v753
  %v765 = vpack.c.b16 %v756, %v755
  %v766 = vpack.c.b16 %v758, %v757
  %775 = vmatpush.bf16.msra.mxu0 %v766
  %776 = vmatpush.bf16.msra.mxu0 %v765
  %777 = vmatpush.bf16.msra.mxu0 %v764
  %778 = vmatpush.bf16.msra.mxu0 %v763
  %779 = vmatpush.bf16.msra.mxu0 %v762
  %780 = vmatpush.bf16.msra.mxu0 %v761
  %781 = vmatpush.bf16.msra.mxu0 %v760
  %782 = vmatpush.bf16.msra.mxu0 %v759
  %783 = vmatmul.bf16.gmra.mxu0 %v706
  %v784 = vpop.f32.mrf.mxu0
  %v785 = vadd.f32 %v725, %v784
  %v786 = vpop.f32.mrf.mxu0
  %v787 = vadd.f32 %v725, %v786
  %788 = vdwg.mxu0
  %v789 = vtanh.pop %v785
  %v790 = vtanh.pop %v787
  %v791 = vpack.c.bf16 %v790, %v789
  %v792 = vld [vmem:[%s5] sm:$0xf]
  %v793 = vld [vmem:[%s5 + $0x4] sm:$0xf]
  %v794 = vld [vmem:[%s5 + $0x8] sm:$0xf]
  %v795 = vld [vmem:[%s5 + $0xc] sm:$0xf]
  %v796 = vld [vmem:[%s5 + $0x10] sm:$0xf]
  %v797 = vld [vmem:[%s5 + $0x14] sm:$0xf]
  %v798 = vld [vmem:[%s5 + $0x18] sm:$0xf]
  %v799 = vld [vmem:[%s5 + $0x1c] sm:$0xf]
  %v800 = vld [vmem:[%s5 + $0x20] sm:$0xf]
  %v801 = vld [vmem:[%s5 + $0x24] sm:$0xf]
  %v802 = vld [vmem:[%s5 + $0x28] sm:$0xf]
  %v803 = vld [vmem:[%s5 + $0x2c] sm:$0xf]
  %v804 = vld [vmem:[%s5 + $0x30] sm:$0xf]
  %v805 = vld [vmem:[%s5 + $0x34] sm:$0xf]
  %v806 = vld [vmem:[%s5 + $0x38] sm:$0xf]
  %v807 = vld [vmem:[%s5 + $0x3c] sm:$0xf]
  %v808 = vld [vmem:[%s6] sm:$0x1]
  %v810 = vperm.slane %v808, 0
  %v828 = vunpack.c.l.b16 %v792
  %v829 = vunpack.c.l.b16 %v793
  %v830 = vunpack.c.l.b16 %v794
  %v831 = vunpack.c.l.b16 %v795
  %v832 = vunpack.c.l.b16 %v796
  %v833 = vunpack.c.l.b16 %v797
  %v834 = vunpack.c.l.b16 %v798
  %v835 = vunpack.c.l.b16 %v799
  %v836 = vunpack.c.l.b16 %v800
  %v837 = vunpack.c.l.b16 %v801
  %v838 = vunpack.c.l.b16 %v802
  %v839 = vunpack.c.l.b16 %v803
  %v840 = vunpack.c.l.b16 %v804
  %v841 = vunpack.c.l.b16 %v805
  %v842 = vunpack.c.l.b16 %v806
  %v843 = vunpack.c.l.b16 %v807
  %v844 = vpack.c.b16 %v829, %v828
  %v845 = vpack.c.b16 %v831, %v830
  %v846 = vpack.c.b16 %v833, %v832
  %v847 = vpack.c.b16 %v835, %v834
  %v848 = vpack.c.b16 %v837, %v836
  %v849 = vpack.c.b16 %v839, %v838
  %v850 = vpack.c.b16 %v841, %v840
  %v851 = vpack.c.b16 %v843, %v842
  %860 = vmatpush.bf16.msra.mxu0 %v851
  %861 = vmatpush.bf16.msra.mxu0 %v850
  %862 = vmatpush.bf16.msra.mxu0 %v849
  %863 = vmatpush.bf16.msra.mxu0 %v848
  %864 = vmatpush.bf16.msra.mxu0 %v847
  %865 = vmatpush.bf16.msra.mxu0 %v846
  %866 = vmatpush.bf16.msra.mxu0 %v845
  %867 = vmatpush.bf16.msra.mxu0 %v844
  %868 = vmatmul.bf16.gmra.mxu0 %v791
  %v869 = vpop.f32.mrf.mxu0
  %v870 = vadd.f32 %v810, %v869
  %v871 = vpop.f32.mrf.mxu0
  %v872 = vadd.f32 %v810, %v871
  %873 = vdwg.mxu0
  %874 = vst [vmem:[%s7] sm:$0xff] %v870
  %875 = vst [vmem:[%s7 + $0x8] sm:$0xff] %v872
  %v876 = vlaneseq
  %v877 = vand.u32 %v876, 127
  %vm878 = vcmp.lt.s32.totalorder %v877, 10
  %v879 = vsel %vm878, %v870, -1e+30
  %v880 = vsel %vm878, %v872, -1e+30
  %881 = vmax.xlane.f32.xlu0 %v879
  %v882 = vpop.xlane.xlu0 %881
  %883 = vmax.xlane.f32.xlu0 %v880
  %v884 = vpop.xlane.xlu0 %883
  %v885 = vsub.f32 %v879, %v882
  %v886 = vsub.f32 %v880, %v884
  %v887 = vmul.f32 %v885, 1.442695
  %v888 = vpow.pop %v887
  %v889 = vmul.f32 %v886, 1.442695
  %v890 = vpow.pop %v889
  %891 = vadd.xlane.f32.xlu0 %v888
  %v892 = vpop.xlane.xlu0 %891
  %893 = vadd.xlane.f32.xlu0 %v890
  %v894 = vpop.xlane.xlu0 %893
  %v895 = vrcp.pop %v892
  %v896 = vmul.f32 %v892, %v895
  %v897 = vsub.f32 1.0, %v896
  %v898 = vmul.f32 %v895, %v897
  %v899 = vadd.f32 %v895, %v898
  %vm900 = vweird.f32 %v892
  %vm901 = vweird.f32 %v895
  %vm902 = vmor %vm900, %vm901
  %v903 = vsel %vm902, %v895, %v899
  %v904 = vand.u32 2147483647, %v892
  %vm905 = vcmp.eq.f32.partialorder %v904, 8.507059e+37
  %v906 = vand.u32 %v892, 2147483648
  %v907 = vor.u32 1.1754944e-38, %v906
  %v908 = vsel %vm905, %v907, %v903
  %v909 = vmul.f32 %v888, %v908
  %v910 = vrcp.pop %v894
  %v911 = vmul.f32 %v894, %v910
  %v912 = vsub.f32 1.0, %v911
  %v913 = vmul.f32 %v910, %v912
  %v914 = vadd.f32 %v910, %v913
  %vm915 = vweird.f32 %v894
  %vm916 = vweird.f32 %v910
  %vm917 = vmor %vm915, %vm916
  %v918 = vsel %vm917, %v910, %v914
  %v919 = vand.u32 2147483647, %v894
  %vm920 = vcmp.eq.f32.partialorder %v919, 8.507059e+37
  %v921 = vand.u32 %v894, 2147483648
  %v922 = vor.u32 1.1754944e-38, %v921
  %v923 = vsel %vm920, %v922, %v918
  %v924 = vmul.f32 %v890, %v923
  %925 = vst [vmem:[%s8] sm:$0xff] %v909
  %926 = vst [vmem:[%s8 + $0x8] sm:$0xff] %v924
  // Predicated region
  $region30: #{lenet5_forward.5} parent=0 // pred_check
    _
  $region31: #{lenet5_forward.5} parent=0 // pred_check_branch
    %928 = sbr.rel (0) target = $region33
  $region32: #{lenet5_forward.5} parent=0 // pred_region
    _
  $region33: #{lenet5_forward.5} parent=0 // pred_fallthru
    _
  // Predicated region
  $region34: #{lenet5_forward.5} parent=0 // pred_check
    _
  $region35: #{lenet5_forward.5} parent=0 // pred_check_branch
    %930 = sbr.rel (0) target = $region37
  $region36: #{lenet5_forward.5} parent=0 // pred_region
    _
  $region37: #{lenet5_forward.5} parent=0 // pred_fallthru
    _
  // Predicated region
  $region38: #{lenet5_forward.5} parent=0 // pred_check
    _
  $region39: #{lenet5_forward.5} parent=0 // pred_check_branch
    %932 = sbr.rel (0) target = $region41
  $region40: #{lenet5_forward.5} parent=0 // pred_region
    _
  $region41: #{lenet5_forward.5} parent=0 // pred_fallthru
    _
  // Predicated region
  $region42: #{lenet5_forward.5} parent=0 // pred_check
    _
  $region43: #{lenet5_forward.5} parent=0 // pred_check_branch
    %934 = sbr.rel (0) target = $region45
  $region44: #{lenet5_forward.5} parent=0 // pred_region
    _
  $region45: #{lenet5_forward.5} parent=0 // pred_fallthru
    _

</llo_original>
